<compile_context>
chip_gen: v7x
topology: tpu7x:2x2x1
jax: 0.10.0
libtpu: 0.0.40
codegen_flags: <defaults>
</compile_context>

<pallas_src>
import jax
import jax.numpy as jnp
import numpy as np
from jax.experimental import pallas as pl
from jax.experimental.pallas import tpu as pltpu

EPS = 1e-5  # PyTorch BatchNorm2d default eps


def residual_block(x_nchw, params):
    """Fused Residual_Block forward.  x_nchw: (N, 64, H, W) float32, NCHW."""
    w1, b1, g1, be1, a, w2, b2, g2, be2 = params
    del b1, b2  # exactly cancelled by training-mode BatchNorm's mean subtraction

    x = jnp.asarray(x_nchw, jnp.float32)
    N, C, H, W = x.shape
    HW = H * W
    M = N * HW
    K = 9 * C

    # Layout assumptions of this whole-activation kernel (hold for the module's
    # fixed C=64 and the small test spatial size).
    assert C % 16 == 0, "channels must be sublane-tile aligned"
    assert HW % 128 == 0, "per-image spatial size must be lane-tile aligned"

    # Flattened, H-only-padded scratch geometry (per image & channel it is one
    # lane vector):
    #   [ LPAD zeros | top halo row (W) | H data rows (H*W) | bottom halo | tail ]
    # LPAD is chosen so the data region starts on a 128-lane boundary; the W
    # border of the conv is handled by lane masks instead of W padding, so all
    # interior/patch/output stores stay aligned and unmasked.
    LPAD = (-W) % 128
    FRONT = LPAD + W                  # first data lane (128-aligned)
    BACK = LPAD + (H + 1) * W         # one past last data lane (128-aligned)
    LTOT = ((LPAD + (H + 2) * W + 1) + 127) // 128 * 128

    x_flat = x.reshape(N, C, HW)      # NCHW is already channel-major: free view

    # HWIO (3,3,Cin,Cout) -> W^T (Cout, 9*Cin); row order (dy, dx, cin) matches
    # the im2col row order tap*C + cin.  bf16 operands, f32 accumulation.
    w1t = jnp.asarray(w1, jnp.float32).reshape(K, C).T.astype(jnp.bfloat16)
    w2t = jnp.asarray(w2, jnp.float32).reshape(K, C).T.astype(jnp.bfloat16)

    g1c = jnp.asarray(g1, jnp.float32).reshape(C, 1)
    be1c = jnp.asarray(be1, jnp.float32).reshape(C, 1)
    g2c = jnp.asarray(g2, jnp.float32).reshape(C, 1)
    be2c = jnp.asarray(be2, jnp.float32).reshape(C, 1)
    a11 = jnp.reshape(jnp.asarray(a, jnp.float32), (1, 1))

    inv_m = 1.0 / M

    def kernel(x_ref, w1_ref, g1_ref, be1_ref, a_ref, w2_ref, g2_ref, be2_ref,
               out_ref, pad_ref, patch_ref):
        # ---- zero only the halo/padding lanes (128-aligned, written once) ----
        pad_ref[:, :, 0:FRONT] = jnp.zeros((N, C, FRONT), jnp.bfloat16)
        pad_ref[:, :, BACK:LTOT] = jnp.zeros((N, C, LTOT - BACK), jnp.bfloat16)

        # Lane masks: positions whose left/right tap would read across a row
        # boundary (the conv's W border) are forced to zero.
        col = jax.lax.broadcasted_iota(jnp.int32, (1, HW), 1) % W
        not_first_col = col != 0          # valid lanes for the dx=0 tap
        not_last_col = col != (W - 1)     # valid lanes for the dx=2 tap

        def build_patches():
            # Channel-major im2col: patches^T rows = tap*C + cin (sublane
            # aligned), cols = n*HW + i*W + j (lane aligned).  Each dy slab is
            # a contiguous lane-slice of the flat padded scratch; the dx=+-1
            # taps are the same slab shifted by one lane plus the border mask.
            for n in range(N):
                for dy in range(3):
                    s = LPAD + dy * W
                    center = pad_ref[n, :, s:s + HW]
                    left = pad_ref[n, :, s - 1:s - 1 + HW]
                    right = pad_ref[n, :, s + 1:s + 1 + HW]
                    left = jnp.where(not_first_col, left, jnp.zeros_like(left))
                    right = jnp.where(not_last_col, right, jnp.zeros_like(right))
                    c0, c1 = n * HW, (n + 1) * HW
                    patch_ref[(dy * 3 + 0) * C:(dy * 3 + 1) * C, c0:c1] = left
                    patch_ref[(dy * 3 + 1) * C:(dy * 3 + 2) * C, c0:c1] = center
                    patch_ref[(dy * 3 + 2) * C:(dy * 3 + 3) * C, c0:c1] = right

        def conv_t(w_ref):
            # out^T (C, M) = W^T (C, 9C) @ patches^T (9C, M): MXU output/lane
            # dim is M (512 here), not C=64.
            return jnp.dot(w_ref[...], patch_ref[...],
                           preferred_element_type=jnp.float32)

        def batchnorm(y, g_ref, be_ref):
            # Training-mode BN, one pass: biased batch stats over all M
            # positions per channel, affine pre-folded into scale/shift.
            s1 = jnp.sum(y, axis=1, keepdims=True)
            s2 = jnp.sum(y * y, axis=1, keepdims=True)
            mean = s1 * inv_m
            var = s2 * inv_m - mean * mean
            scale = g_ref[...] * jax.lax.rsqrt(var + EPS)
            shift = be_ref[...] - mean * scale
            return y * scale + shift

        # ---- conv1 -> bn1 -> PReLU ----
        for n in range(N):   # single bf16 cast; aligned, unmasked interior store
            pad_ref[n, :, FRONT:BACK] = x_ref[n].astype(jnp.bfloat16)
        build_patches()
        y = batchnorm(conv_t(w1_ref), g1_ref, be1_ref)
        y = jnp.where(y >= 0.0, y, a_ref[...] * y)

        # ---- conv2 -> bn2 (halo lanes are still zero; rewrite interior only) --
        for n in range(N):
            pad_ref[n, :, FRONT:BACK] = y[:, n * HW:(n + 1) * HW].astype(jnp.bfloat16)
        build_patches()
        z = batchnorm(conv_t(w2_ref), g2_ref, be2_ref)

        # ---- residual add; output stays channel-major == NCHW-flat ----
        for n in range(N):
            out_ref[n] = z[:, n * HW:(n + 1) * HW] + x_ref[n]

    # VMEM budget from the actual buffers plus headroom for f32 temporaries,
    # capped at 48 MiB so v7x (64 MiB physical / TC) keeps compiler headroom.
    pad_bytes = N * C * LTOT * 2
    patch_bytes = K * M * 2
    io_bytes = 2 * N * C * HW * 4
    w_bytes = 2 * C * K * 2
    tmp_bytes = 4 * C * M * 4
    need = pad_bytes + patch_bytes + io_bytes + w_bytes + tmp_bytes
    vmem_limit = int(min(48 * 1024 * 1024, max(32 * 1024 * 1024, 2 * need)))

    cost = pl.CostEstimate(
        flops=2 * 2 * M * K * C,            # two (C,9C)x(9C,M) GEMMs
        transcendentals=2 * C,              # per-channel rsqrt, two BNs
        bytes_accessed=io_bytes + w_bytes + 8 * C * 4)

    out_flat = pl.pallas_call(
        kernel,
        out_shape=jax.ShapeDtypeStruct((N, C, HW), jnp.float32),
        in_specs=[pl.BlockSpec(memory_space=pltpu.MemorySpace.VMEM)] * 8,
        out_specs=pl.BlockSpec(memory_space=pltpu.MemorySpace.VMEM),
        scratch_shapes=[
            pltpu.VMEM((N, C, LTOT), jnp.bfloat16),   # flat H-padded activation
            pltpu.VMEM((K, M), jnp.bfloat16),         # patches^T (9C, N*H*W)
        ],
        compiler_params=pltpu.CompilerParams(vmem_limit_bytes=vmem_limit),
        cost_estimate=cost,
    )(x_flat, w1t, g1c, be1c, a11, w2t, g2c, be2c)

    return out_flat.reshape(N, C, H, W)


def reference_nchw(x_nchw, params):
    """Pure-JAX f32 reference (same math as the PyTorch module, training mode)."""
    w1, b1, g1, be1, a, w2, b2, g2, be2 = params
    x = jnp.transpose(x_nchw, (0, 2, 3, 1))

    def conv(x, w, b):
        y = jax.lax.conv_general_dilated(
            x, w, window_strides=(1, 1), padding="SAME",
            dimension_numbers=("NHWC", "HWIO", "NHWC"))
        return y + b

    def bn(y, g, be):
        mean = jnp.mean(y, axis=(0, 1, 2), keepdims=True)
        var = jnp.mean((y - mean) ** 2, axis=(0, 1, 2), keepdims=True)
        return (y - mean) * jax.lax.rsqrt(var + EPS) * g + be

    y = bn(conv(x, w1, b1), g1, be1)
    y = jnp.where(y >= 0.0, y, a * y)
    y = bn(conv(y, w2, b2), g2, be2)
    y = y + x
    return jnp.transpose(y, (0, 3, 1, 2))


if __name__ == "__main__":
    key = jax.random.PRNGKey(0)
    kx, k1, kb1, k2, kb2 = jax.random.split(key, 5)

    # Channels are fixed to 64 by the module's __init__; small spatial size.
    N, C, H, W = 2, 64, 16, 16
    x = jax.random.normal(kx, (N, C, H, W), jnp.float32)

    # Deterministic parameter init (Conv2d-style uniform bounds; BN defaults;
    # PReLU default slope 0.25).  Conv weights stored as HWIO (3, 3, Cin, Cout).
    bound = 1.0 / np.sqrt(C * 3 * 3)
    w1 = jax.random.uniform(k1, (3, 3, C, C), jnp.float32, -bound, bound)
    b1 = jax.random.uniform(kb1, (C,), jnp.float32, -bound, bound)
    w2 = jax.random.uniform(k2, (3, 3, C, C), jnp.float32, -bound, bound)
    b2 = jax.random.uniform(kb2, (C,), jnp.float32, -bound, bound)
    g1 = jnp.ones((C,), jnp.float32)
    be1 = jnp.zeros((C,), jnp.float32)
    g2 = jnp.ones((C,), jnp.float32)
    be2 = jnp.zeros((C,), jnp.float32)
    a = jnp.float32(0.25)
    params = (w1, b1, g1, be1, a, w2, b2, g2, be2)

    out = residual_block(x, params)
    out = jax.block_until_ready(out)

    ref = reference_nchw(x, params)
    # Tolerance reflects the deliberate bf16-MXU-operand trade (f32 accumulate);
    # BN re-normalization keeps the per-stage error at the few-1e-3 level.
    np.testing.assert_allclose(np.asarray(out), np.asarray(ref),
                               rtol=2e-2, atol=3e-2)
    print("KERNEL_OK")
</pallas_src>

<mosaic_0001>
module attributes {stable_mosaic.version = 11 : i64} {
  func.func @kernel(%arg0: memref<2x64x256xf32, #tpu.memory_space<vmem>>, %arg1: memref<64x576xbf16, #tpu.memory_space<vmem>>, %arg2: memref<64x1xf32, #tpu.memory_space<vmem>>, %arg3: memref<64x1xf32, #tpu.memory_space<vmem>>, %arg4: memref<1x1xf32, #tpu.memory_space<vmem>>, %arg5: memref<64x576xbf16, #tpu.memory_space<vmem>>, %arg6: memref<64x1xf32, #tpu.memory_space<vmem>>, %arg7: memref<64x1xf32, #tpu.memory_space<vmem>>, %arg8: memref<2x64x256xf32, #tpu.memory_space<vmem>>, %arg9: memref<2x64x512xbf16, #tpu.memory_space<vmem>>, %arg10: memref<576x512xbf16, #tpu.memory_space<vmem>>) attributes {dimension_semantics = [], scalar_prefetch = 0 : i64, scratch_operands = 2 : i64, tpu.core_type = #tpu.core_type<tc>} {
    %cst = arith.constant 0.000000e+00 : bf16
    %0 = vector.broadcast %cst : bf16 to vector<2x64x128xbf16>
    %c0 = arith.constant 0 : index
    %c0_0 = arith.constant 0 : index
    %c0_1 = arith.constant 0 : index
    %1 = vector.load %arg9[%c0, %c0_0, %c0_1] : memref<2x64x512xbf16, #tpu.memory_space<vmem>>, vector<2x64x128xbf16>
    tpu.vector_store %arg9[%c0, %c0_0, %c0_1], %0 {strides = array<i32>} : memref<2x64x512xbf16, #tpu.memory_space<vmem>>, vector<2x64x128xbf16>,
    %cst_2 = arith.constant 0.000000e+00 : bf16
    %2 = vector.broadcast %cst_2 : bf16 to vector<2x64x128xbf16>
    %c0_3 = arith.constant 0 : index
    %c0_4 = arith.constant 0 : index
    %c384 = arith.constant 384 : index
    %3 = vector.load %arg9[%c0_3, %c0_4, %c384] : memref<2x64x512xbf16, #tpu.memory_space<vmem>>, vector<2x64x128xbf16>
    tpu.vector_store %arg9[%c0_3, %c0_4, %c384], %2 {strides = array<i32>} : memref<2x64x512xbf16, #tpu.memory_space<vmem>>, vector<2x64x128xbf16>,
    %4 = tpu.iota {dimensions = array<i32: 1>} : vector<1x256xi32>
    %c16_i32 = arith.constant 16 : i32
    %c0_i32 = arith.constant 0 : i32
    %5 = arith.cmpi eq, %c16_i32, %c0_i32 : i32
    %c1_i32 = arith.constant 1 : i32
    %6 = arith.select %5, %c1_i32, %c16_i32 : i32
    %7 = vector.broadcast %6 : i32 to vector<1x256xi32>
    %8 = arith.remsi %4, %7 : vector<1x256xi32>
    %c0_i32_5 = arith.constant 0 : i32
    %9 = vector.broadcast %c0_i32_5 : i32 to vector<1x256xi32>
    %10 = arith.cmpi ne, %8, %9 : vector<1x256xi32>
    %c0_i32_6 = arith.constant 0 : i32
    %11 = vector.broadcast %c0_i32_6 : i32 to vector<1x256xi32>
    %12 = arith.cmpi slt, %8, %11 : vector<1x256xi32>
    %c0_i32_7 = arith.constant 0 : i32
    %13 = arith.cmpi slt, %6, %c0_i32_7 : i32
    %14 = vector.broadcast %13 : i1 to vector<1x256xi1>
    %15 = vector.broadcast %14 : vector<1x256xi1> to vector<1x256xi1>
    %16 = arith.xori %12, %15 : vector<1x256xi1>
    %17 = arith.andi %16, %10 : vector<1x256xi1>
    %18 = vector.broadcast %6 : i32 to vector<1x256xi32>
    %19 = arith.addi %8, %18 : vector<1x256xi32>
    %20 = arith.select %17, %19, %8 : vector<1x256xi1>, vector<1x256xi32>
    %c0_i32_8 = arith.constant 0 : i32
    %21 = vector.broadcast %c0_i32_8 : i32 to vector<1x256xi32>
    %22 = arith.cmpi ne, %20, %21 : vector<1x256xi32>
    %c15_i32 = arith.constant 15 : i32
    %23 = vector.broadcast %c15_i32 : i32 to vector<1x256xi32>
    %24 = arith.cmpi ne, %20, %23 : vector<1x256xi32>
    %c0_9 = arith.constant 0 : index
    %c0_10 = arith.constant 0 : index
    %c0_11 = arith.constant 0 : index
    %25 = vector.load %arg0[%c0_9, %c0_10, %c0_11] : memref<2x64x256xf32, #tpu.memory_space<vmem>>, vector<1x64x256xf32>
    %26 = vector.shape_cast %25 : vector<1x64x256xf32> to vector<64x256xf32>
    %27 = arith.truncf %26 : vector<64x256xf32> to vector<64x256xbf16>
    %c0_12 = arith.constant 0 : index
    %c0_13 = arith.constant 0 : index
    %c128 = arith.constant 128 : index
    %28 = vector.load %arg9[%c0_12, %c0_13, %c128] : memref<2x64x512xbf16, #tpu.memory_space<vmem>>, vector<1x64x256xbf16>
    %29 = vector.shape_cast %28 : vector<1x64x256xbf16> to vector<64x256xbf16>
    %30 = vector.shape_cast %27 : vector<64x256xbf16> to vector<1x64x256xbf16>
    tpu.vector_store %arg9[%c0_12, %c0_13, %c128], %30 {strides = array<i32>} : memref<2x64x512xbf16, #tpu.memory_space<vmem>>, vector<1x64x256xbf16>,
    %c1 = arith.constant 1 : index
    %c0_14 = arith.constant 0 : index
    %c0_15 = arith.constant 0 : index
    %31 = vector.load %arg0[%c1, %c0_14, %c0_15] : memref<2x64x256xf32, #tpu.memory_space<vmem>>, vector<1x64x256xf32>
    %32 = vector.shape_cast %31 : vector<1x64x256xf32> to vector<64x256xf32>
    %33 = arith.truncf %32 : vector<64x256xf32> to vector<64x256xbf16>
    %c1_16 = arith.constant 1 : index
    %c0_17 = arith.constant 0 : index
    %c128_18 = arith.constant 128 : index
    %34 = vector.load %arg9[%c1_16, %c0_17, %c128_18] : memref<2x64x512xbf16, #tpu.memory_space<vmem>>, vector<1x64x256xbf16>
    %35 = vector.shape_cast %34 : vector<1x64x256xbf16> to vector<64x256xbf16>
    %36 = vector.shape_cast %33 : vector<64x256xbf16> to vector<1x64x256xbf16>
    tpu.vector_store %arg9[%c1_16, %c0_17, %c128_18], %36 {strides = array<i32>} : memref<2x64x512xbf16, #tpu.memory_space<vmem>>, vector<1x64x256xbf16>,
    %c0_19 = arith.constant 0 : index
    %c0_20 = arith.constant 0 : index
    %c112 = arith.constant 112 : index
    %37 = vector.load %arg9[%c0_19, %c0_20, %c112] : memref<2x64x512xbf16, #tpu.memory_space<vmem>>, vector<1x64x256xbf16>
    %38 = vector.shape_cast %37 : vector<1x64x256xbf16> to vector<64x256xbf16>
    %c0_21 = arith.constant 0 : index
    %c0_22 = arith.constant 0 : index
    %c111 = arith.constant 111 : index
    %39 = vector.load %arg9[%c0_21, %c0_22, %c111] : memref<2x64x512xbf16, #tpu.memory_space<vmem>>, vector<1x64x256xbf16>
    %40 = vector.shape_cast %39 : vector<1x64x256xbf16> to vector<64x256xbf16>
    %c0_23 = arith.constant 0 : index
    %c0_24 = arith.constant 0 : index
    %c113 = arith.constant 113 : index
    %41 = vector.load %arg9[%c0_23, %c0_24, %c113] : memref<2x64x512xbf16, #tpu.memory_space<vmem>>, vector<1x64x256xbf16>
    %42 = vector.shape_cast %41 : vector<1x64x256xbf16> to vector<64x256xbf16>
    %cst_25 = arith.constant 0.000000e+00 : bf16
    %43 = vector.broadcast %cst_25 : bf16 to vector<64x256xbf16>
    %44 = vector.shape_cast %22 : vector<1x256xi1> to vector<1x256xi1>
    %45 = vector.broadcast %44 : vector<1x256xi1> to vector<64x256xi1>
    %46 = arith.select %45, %40, %43 : vector<64x256xi1>, vector<64x256xbf16>
    %cst_26 = arith.constant 0.000000e+00 : bf16
    %47 = vector.broadcast %cst_26 : bf16 to vector<64x256xbf16>
    %48 = vector.shape_cast %24 : vector<1x256xi1> to vector<1x256xi1>
    %49 = vector.broadcast %48 : vector<1x256xi1> to vector<64x256xi1>
    %50 = arith.select %49, %42, %47 : vector<64x256xi1>, vector<64x256xbf16>
    %c0_27 = arith.constant 0 : index
    %c0_28 = arith.constant 0 : index
    %51 = vector.load %arg10[%c0_27, %c0_28] : memref<576x512xbf16, #tpu.memory_space<vmem>>, vector<64x256xbf16>
    tpu.vector_store %arg10[%c0_27, %c0_28], %46 {strides = array<i32>} : memref<576x512xbf16, #tpu.memory_space<vmem>>, vector<64x256xbf16>,
    %c64 = arith.constant 64 : index
    %c0_29 = arith.constant 0 : index
    %52 = vector.load %arg10[%c64, %c0_29] : memref<576x512xbf16, #tpu.memory_space<vmem>>, vector<64x256xbf16>
    tpu.vector_store %arg10[%c64, %c0_29], %38 {strides = array<i32>} : memref<576x512xbf16, #tpu.memory_space<vmem>>, vector<64x256xbf16>,
    %c128_30 = arith.constant 128 : index
    %c0_31 = arith.constant 0 : index
    %53 = vector.load %arg10[%c128_30, %c0_31] : memref<576x512xbf16, #tpu.memory_space<vmem>>, vector<64x256xbf16>
    tpu.vector_store %arg10[%c128_30, %c0_31], %50 {strides = array<i32>} : memref<576x512xbf16, #tpu.memory_space<vmem>>, vector<64x256xbf16>,
    %c0_32 = arith.constant 0 : index
    %c0_33 = arith.constant 0 : index
    %c128_34 = arith.constant 128 : index
    %54 = vector.load %arg9[%c0_32, %c0_33, %c128_34] : memref<2x64x512xbf16, #tpu.memory_space<vmem>>, vector<1x64x256xbf16>
    %55 = vector.shape_cast %54 : vector<1x64x256xbf16> to vector<64x256xbf16>
    %c0_35 = arith.constant 0 : index
    %c0_36 = arith.constant 0 : index
    %c127 = arith.constant 127 : index
    %56 = vector.load %arg9[%c0_35, %c0_36, %c127] : memref<2x64x512xbf16, #tpu.memory_space<vmem>>, vector<1x64x256xbf16>
    %57 = vector.shape_cast %56 : vector<1x64x256xbf16> to vector<64x256xbf16>
    %c0_37 = arith.constant 0 : index
    %c0_38 = arith.constant 0 : index
    %c129 = arith.constant 129 : index
    %58 = vector.load %arg9[%c0_37, %c0_38, %c129] : memref<2x64x512xbf16, #tpu.memory_space<vmem>>, vector<1x64x256xbf16>
    %59 = vector.shape_cast %58 : vector<1x64x256xbf16> to vector<64x256xbf16>
    %cst_39 = arith.constant 0.000000e+00 : bf16
    %60 = vector.broadcast %cst_39 : bf16 to vector<64x256xbf16>
    %61 = vector.shape_cast %22 : vector<1x256xi1> to vector<1x256xi1>
    %62 = vector.broadcast %61 : vector<1x256xi1> to vector<64x256xi1>
    %63 = arith.select %62, %57, %60 : vector<64x256xi1>, vector<64x256xbf16>
    %cst_40 = arith.constant 0.000000e+00 : bf16
    %64 = vector.broadcast %cst_40 : bf16 to vector<64x256xbf16>
    %65 = vector.shape_cast %24 : vector<1x256xi1> to vector<1x256xi1>
    %66 = vector.broadcast %65 : vector<1x256xi1> to vector<64x256xi1>
    %67 = arith.select %66, %59, %64 : vector<64x256xi1>, vector<64x256xbf16>
    %c192 = arith.constant 192 : index
    %c0_41 = arith.constant 0 : index
    %68 = vector.load %arg10[%c192, %c0_41] : memref<576x512xbf16, #tpu.memory_space<vmem>>, vector<64x256xbf16>
    tpu.vector_store %arg10[%c192, %c0_41], %63 {strides = array<i32>} : memref<576x512xbf16, #tpu.memory_space<vmem>>, vector<64x256xbf16>,
    %c256 = arith.constant 256 : index
    %c0_42 = arith.constant 0 : index
    %69 = vector.load %arg10[%c256, %c0_42] : memref<576x512xbf16, #tpu.memory_space<vmem>>, vector<64x256xbf16>
    tpu.vector_store %arg10[%c256, %c0_42], %55 {strides = array<i32>} : memref<576x512xbf16, #tpu.memory_space<vmem>>, vector<64x256xbf16>,
    %c320 = arith.constant 320 : index
    %c0_43 = arith.constant 0 : index
    %70 = vector.load %arg10[%c320, %c0_43] : memref<576x512xbf16, #tpu.memory_space<vmem>>, vector<64x256xbf16>
    tpu.vector_store %arg10[%c320, %c0_43], %67 {strides = array<i32>} : memref<576x512xbf16, #tpu.memory_space<vmem>>, vector<64x256xbf16>,
    %c0_44 = arith.constant 0 : index
    %c0_45 = arith.constant 0 : index
    %c144 = arith.constant 144 : index
    %71 = vector.load %arg9[%c0_44, %c0_45, %c144] : memref<2x64x512xbf16, #tpu.memory_space<vmem>>, vector<1x64x256xbf16>
    %72 = vector.shape_cast %71 : vector<1x64x256xbf16> to vector<64x256xbf16>
    %c0_46 = arith.constant 0 : index
    %c0_47 = arith.constant 0 : index
    %c143 = arith.constant 143 : index
    %73 = vector.load %arg9[%c0_46, %c0_47, %c143] : memref<2x64x512xbf16, #tpu.memory_space<vmem>>, vector<1x64x256xbf16>
    %74 = vector.shape_cast %73 : vector<1x64x256xbf16> to vector<64x256xbf16>
    %c0_48 = arith.constant 0 : index
    %c0_49 = arith.constant 0 : index
    %c145 = arith.constant 145 : index
    %75 = vector.load %arg9[%c0_48, %c0_49, %c145] : memref<2x64x512xbf16, #tpu.memory_space<vmem>>, vector<1x64x256xbf16>
    %76 = vector.shape_cast %75 : vector<1x64x256xbf16> to vector<64x256xbf16>
    %cst_50 = arith.constant 0.000000e+00 : bf16
    %77 = vector.broadcast %cst_50 : bf16 to vector<64x256xbf16>
    %78 = vector.shape_cast %22 : vector<1x256xi1> to vector<1x256xi1>
    %79 = vector.broadcast %78 : vector<1x256xi1> to vector<64x256xi1>
    %80 = arith.select %79, %74, %77 : vector<64x256xi1>, vector<64x256xbf16>
    %cst_51 = arith.constant 0.000000e+00 : bf16
    %81 = vector.broadcast %cst_51 : bf16 to vector<64x256xbf16>
    %82 = vector.shape_cast %24 : vector<1x256xi1> to vector<1x256xi1>
    %83 = vector.broadcast %82 : vector<1x256xi1> to vector<64x256xi1>
    %84 = arith.select %83, %76, %81 : vector<64x256xi1>, vector<64x256xbf16>
    %c384_52 = arith.constant 384 : index
    %c0_53 = arith.constant 0 : index
    %85 = vector.load %arg10[%c384_52, %c0_53] : memref<576x512xbf16, #tpu.memory_space<vmem>>, vector<64x256xbf16>
    tpu.vector_store %arg10[%c384_52, %c0_53], %80 {strides = array<i32>} : memref<576x512xbf16, #tpu.memory_space<vmem>>, vector<64x256xbf16>,
    %c448 = arith.constant 448 : index
    %c0_54 = arith.constant 0 : index
    %86 = vector.load %arg10[%c448, %c0_54] : memref<576x512xbf16, #tpu.memory_space<vmem>>, vector<64x256xbf16>
    tpu.vector_store %arg10[%c448, %c0_54], %72 {strides = array<i32>} : memref<576x512xbf16, #tpu.memory_space<vmem>>, vector<64x256xbf16>,
    %c512 = arith.constant 512 : index
    %c0_55 = arith.constant 0 : index
    %87 = vector.load %arg10[%c512, %c0_55] : memref<576x512xbf16, #tpu.memory_space<vmem>>, vector<64x256xbf16>
    tpu.vector_store %arg10[%c512, %c0_55], %84 {strides = array<i32>} : memref<576x512xbf16, #tpu.memory_space<vmem>>, vector<64x256xbf16>,
    %c1_56 = arith.constant 1 : index
    %c0_57 = arith.constant 0 : index
    %c112_58 = arith.constant 112 : index
    %88 = vector.load %arg9[%c1_56, %c0_57, %c112_58] : memref<2x64x512xbf16, #tpu.memory_space<vmem>>, vector<1x64x256xbf16>
    %89 = vector.shape_cast %88 : vector<1x64x256xbf16> to vector<64x256xbf16>
    %c1_59 = arith.constant 1 : index
    %c0_60 = arith.constant 0 : index
    %c111_61 = arith.constant 111 : index
    %90 = vector.load %arg9[%c1_59, %c0_60, %c111_61] : memref<2x64x512xbf16, #tpu.memory_space<vmem>>, vector<1x64x256xbf16>
    %91 = vector.shape_cast %90 : vector<1x64x256xbf16> to vector<64x256xbf16>
    %c1_62 = arith.constant 1 : index
    %c0_63 = arith.constant 0 : index
    %c113_64 = arith.constant 113 : index
    %92 = vector.load %arg9[%c1_62, %c0_63, %c113_64] : memref<2x64x512xbf16, #tpu.memory_space<vmem>>, vector<1x64x256xbf16>
    %93 = vector.shape_cast %92 : vector<1x64x256xbf16> to vector<64x256xbf16>
    %cst_65 = arith.constant 0.000000e+00 : bf16
    %94 = vector.broadcast %cst_65 : bf16 to vector<64x256xbf16>
    %95 = vector.shape_cast %22 : vector<1x256xi1> to vector<1x256xi1>
    %96 = vector.broadcast %95 : vector<1x256xi1> to vector<64x256xi1>
    %97 = arith.select %96, %91, %94 : vector<64x256xi1>, vector<64x256xbf16>
    %cst_66 = arith.constant 0.000000e+00 : bf16
    %98 = vector.broadcast %cst_66 : bf16 to vector<64x256xbf16>
    %99 = vector.shape_cast %24 : vector<1x256xi1> to vector<1x256xi1>
    %100 = vector.broadcast %99 : vector<1x256xi1> to vector<64x256xi1>
    %101 = arith.select %100, %93, %98 : vector<64x256xi1>, vector<64x256xbf16>
    %c0_67 = arith.constant 0 : index
    %c256_68 = arith.constant 256 : index
    %102 = vector.load %arg10[%c0_67, %c256_68] : memref<576x512xbf16, #tpu.memory_space<vmem>>, vector<64x256xbf16>
    tpu.vector_store %arg10[%c0_67, %c256_68], %97 {strides = array<i32>} : memref<576x512xbf16, #tpu.memory_space<vmem>>, vector<64x256xbf16>,
    %c64_69 = arith.constant 64 : index
    %c256_70 = arith.constant 256 : index
    %103 = vector.load %arg10[%c64_69, %c256_70] : memref<576x512xbf16, #tpu.memory_space<vmem>>, vector<64x256xbf16>
    tpu.vector_store %arg10[%c64_69, %c256_70], %89 {strides = array<i32>} : memref<576x512xbf16, #tpu.memory_space<vmem>>, vector<64x256xbf16>,
    %c128_71 = arith.constant 128 : index
    %c256_72 = arith.constant 256 : index
    %104 = vector.load %arg10[%c128_71, %c256_72] : memref<576x512xbf16, #tpu.memory_space<vmem>>, vector<64x256xbf16>
    tpu.vector_store %arg10[%c128_71, %c256_72], %101 {strides = array<i32>} : memref<576x512xbf16, #tpu.memory_space<vmem>>, vector<64x256xbf16>,
    %c1_73 = arith.constant 1 : index
    %c0_74 = arith.constant 0 : index
    %c128_75 = arith.constant 128 : index
    %105 = vector.load %arg9[%c1_73, %c0_74, %c128_75] : memref<2x64x512xbf16, #tpu.memory_space<vmem>>, vector<1x64x256xbf16>
    %106 = vector.shape_cast %105 : vector<1x64x256xbf16> to vector<64x256xbf16>
    %c1_76 = arith.constant 1 : index
    %c0_77 = arith.constant 0 : index
    %c127_78 = arith.constant 127 : index
    %107 = vector.load %arg9[%c1_76, %c0_77, %c127_78] : memref<2x64x512xbf16, #tpu.memory_space<vmem>>, vector<1x64x256xbf16>
    %108 = vector.shape_cast %107 : vector<1x64x256xbf16> to vector<64x256xbf16>
    %c1_79 = arith.constant 1 : index
    %c0_80 = arith.constant 0 : index
    %c129_81 = arith.constant 129 : index
    %109 = vector.load %arg9[%c1_79, %c0_80, %c129_81] : memref<2x64x512xbf16, #tpu.memory_space<vmem>>, vector<1x64x256xbf16>
    %110 = vector.shape_cast %109 : vector<1x64x256xbf16> to vector<64x256xbf16>
    %cst_82 = arith.constant 0.000000e+00 : bf16
    %111 = vector.broadcast %cst_82 : bf16 to vector<64x256xbf16>
    %112 = vector.shape_cast %22 : vector<1x256xi1> to vector<1x256xi1>
    %113 = vector.broadcast %112 : vector<1x256xi1> to vector<64x256xi1>
    %114 = arith.select %113, %108, %111 : vector<64x256xi1>, vector<64x256xbf16>
    %cst_83 = arith.constant 0.000000e+00 : bf16
    %115 = vector.broadcast %cst_83 : bf16 to vector<64x256xbf16>
    %116 = vector.shape_cast %24 : vector<1x256xi1> to vector<1x256xi1>
    %117 = vector.broadcast %116 : vector<1x256xi1> to vector<64x256xi1>
    %118 = arith.select %117, %110, %115 : vector<64x256xi1>, vector<64x256xbf16>
    %c192_84 = arith.constant 192 : index
    %c256_85 = arith.constant 256 : index
    %119 = vector.load %arg10[%c192_84, %c256_85] : memref<576x512xbf16, #tpu.memory_space<vmem>>, vector<64x256xbf16>
    tpu.vector_store %arg10[%c192_84, %c256_85], %114 {strides = array<i32>} : memref<576x512xbf16, #tpu.memory_space<vmem>>, vector<64x256xbf16>,
    %c256_86 = arith.constant 256 : index
    %c256_87 = arith.constant 256 : index
    %120 = vector.load %arg10[%c256_86, %c256_87] : memref<576x512xbf16, #tpu.memory_space<vmem>>, vector<64x256xbf16>
    tpu.vector_store %arg10[%c256_86, %c256_87], %106 {strides = array<i32>} : memref<576x512xbf16, #tpu.memory_space<vmem>>, vector<64x256xbf16>,
    %c320_88 = arith.constant 320 : index
    %c256_89 = arith.constant 256 : index
    %121 = vector.load %arg10[%c320_88, %c256_89] : memref<576x512xbf16, #tpu.memory_space<vmem>>, vector<64x256xbf16>
    tpu.vector_store %arg10[%c320_88, %c256_89], %118 {strides = array<i32>} : memref<576x512xbf16, #tpu.memory_space<vmem>>, vector<64x256xbf16>,
    %c1_90 = arith.constant 1 : index
    %c0_91 = arith.constant 0 : index
    %c144_92 = arith.constant 144 : index
    %122 = vector.load %arg9[%c1_90, %c0_91, %c144_92] : memref<2x64x512xbf16, #tpu.memory_space<vmem>>, vector<1x64x256xbf16>
    %123 = vector.shape_cast %122 : vector<1x64x256xbf16> to vector<64x256xbf16>
    %c1_93 = arith.constant 1 : index
    %c0_94 = arith.constant 0 : index
    %c143_95 = arith.constant 143 : index
    %124 = vector.load %arg9[%c1_93, %c0_94, %c143_95] : memref<2x64x512xbf16, #tpu.memory_space<vmem>>, vector<1x64x256xbf16>
    %125 = vector.shape_cast %124 : vector<1x64x256xbf16> to vector<64x256xbf16>
    %c1_96 = arith.constant 1 : index
    %c0_97 = arith.constant 0 : index
    %c145_98 = arith.constant 145 : index
    %126 = vector.load %arg9[%c1_96, %c0_97, %c145_98] : memref<2x64x512xbf16, #tpu.memory_space<vmem>>, vector<1x64x256xbf16>
    %127 = vector.shape_cast %126 : vector<1x64x256xbf16> to vector<64x256xbf16>
    %cst_99 = arith.constant 0.000000e+00 : bf16
    %128 = vector.broadcast %cst_99 : bf16 to vector<64x256xbf16>
    %129 = vector.shape_cast %22 : vector<1x256xi1> to vector<1x256xi1>
    %130 = vector.broadcast %129 : vector<1x256xi1> to vector<64x256xi1>
    %131 = arith.select %130, %125, %128 : vector<64x256xi1>, vector<64x256xbf16>
    %cst_100 = arith.constant 0.000000e+00 : bf16
    %132 = vector.broadcast %cst_100 : bf16 to vector<64x256xbf16>
    %133 = vector.shape_cast %24 : vector<1x256xi1> to vector<1x256xi1>
    %134 = vector.broadcast %133 : vector<1x256xi1> to vector<64x256xi1>
    %135 = arith.select %134, %127, %132 : vector<64x256xi1>, vector<64x256xbf16>
    %c384_101 = arith.constant 384 : index
    %c256_102 = arith.constant 256 : index
    %136 = vector.load %arg10[%c384_101, %c256_102] : memref<576x512xbf16, #tpu.memory_space<vmem>>, vector<64x256xbf16>
    tpu.vector_store %arg10[%c384_101, %c256_102], %131 {strides = array<i32>} : memref<576x512xbf16, #tpu.memory_space<vmem>>, vector<64x256xbf16>,
    %c448_103 = arith.constant 448 : index
    %c256_104 = arith.constant 256 : index
    %137 = vector.load %arg10[%c448_103, %c256_104] : memref<576x512xbf16, #tpu.memory_space<vmem>>, vector<64x256xbf16>
    tpu.vector_store %arg10[%c448_103, %c256_104], %123 {strides = array<i32>} : memref<576x512xbf16, #tpu.memory_space<vmem>>, vector<64x256xbf16>,
    %c512_105 = arith.constant 512 : index
    %c256_106 = arith.constant 256 : index
    %138 = vector.load %arg10[%c512_105, %c256_106] : memref<576x512xbf16, #tpu.memory_space<vmem>>, vector<64x256xbf16>
    tpu.vector_store %arg10[%c512_105, %c256_106], %135 {strides = array<i32>} : memref<576x512xbf16, #tpu.memory_space<vmem>>, vector<64x256xbf16>,
    %c0_107 = arith.constant 0 : index
    %c0_108 = arith.constant 0 : index
    %139 = vector.load %arg1[%c0_107, %c0_108] : memref<64x576xbf16, #tpu.memory_space<vmem>>, vector<64x576xbf16>
    %c0_109 = arith.constant 0 : index
    %c0_110 = arith.constant 0 : index
    %140 = vector.load %arg10[%c0_109, %c0_110] : memref<576x512xbf16, #tpu.memory_space<vmem>>, vector<576x512xbf16>
    %cst_111 = arith.constant dense<0.000000e+00> : vector<64x512xf32>
    %141 = tpu.matmul %139, %140, %cst_111 {dimension_numbers = #tpu.dot_dimension_numbers<[1], [0], [0], [1], [0, 0, 1, 1], [], []>} : vector<64x576xbf16>, vector<576x512xbf16>, vector<64x512xf32> -> vector<64x512xf32>
    %cst_112 = arith.constant dense<0.000000e+00> : vector<64xf32>
    %142 = vector.multi_reduction <add>, %141, %cst_112 [1] : vector<64x512xf32> to vector<64xf32>
    %143 = vector.shape_cast %142 : vector<64xf32> to vector<64x1xf32>
    %144 = arith.mulf %141, %141 : vector<64x512xf32>
    %cst_113 = arith.constant dense<0.000000e+00> : vector<64xf32>
    %145 = vector.multi_reduction <add>, %144, %cst_113 [1] : vector<64x512xf32> to vector<64xf32>
    %146 = vector.shape_cast %145 : vector<64xf32> to vector<64x1xf32>
    %cst_114 = arith.constant 0.001953125 : f32
    %147 = vector.broadcast %cst_114 : f32 to vector<64x1xf32>
    %148 = arith.mulf %143, %147 : vector<64x1xf32>
    %cst_115 = arith.constant 0.001953125 : f32
    %149 = vector.broadcast %cst_115 : f32 to vector<64x1xf32>
    %150 = arith.mulf %146, %149 : vector<64x1xf32>
    %151 = arith.mulf %148, %148 : vector<64x1xf32>
    %152 = arith.subf %150, %151 : vector<64x1xf32>
    %c0_116 = arith.constant 0 : index
    %c0_117 = arith.constant 0 : index
    %153 = vector.load %arg2[%c0_116, %c0_117] : memref<64x1xf32, #tpu.memory_space<vmem>>, vector<64x1xf32>
    %cst_118 = arith.constant 9.99999974E-6 : f32
    %154 = vector.broadcast %cst_118 : f32 to vector<64x1xf32>
    %155 = arith.addf %152, %154 : vector<64x1xf32>
    %156 = math.rsqrt %155 : vector<64x1xf32>
    %157 = arith.mulf %153, %156 : vector<64x1xf32>
    %c0_119 = arith.constant 0 : index
    %c0_120 = arith.constant 0 : index
    %158 = vector.load %arg3[%c0_119, %c0_120] : memref<64x1xf32, #tpu.memory_space<vmem>>, vector<64x1xf32>
    %159 = arith.mulf %148, %157 : vector<64x1xf32>
    %160 = arith.subf %158, %159 : vector<64x1xf32>
    %161 = vector.broadcast %157 : vector<64x1xf32> to vector<64x512xf32>
    %162 = arith.mulf %141, %161 : vector<64x512xf32>
    %163 = vector.broadcast %160 : vector<64x1xf32> to vector<64x512xf32>
    %164 = arith.addf %162, %163 : vector<64x512xf32>
    %cst_121 = arith.constant 0.000000e+00 : f32
    %165 = vector.broadcast %cst_121 : f32 to vector<64x512xf32>
    %166 = arith.cmpf oge, %164, %165 : vector<64x512xf32>
    %c0_122 = arith.constant 0 : index
    %c0_123 = arith.constant 0 : index
    %167 = vector.load %arg4[%c0_122, %c0_123] : memref<1x1xf32, #tpu.memory_space<vmem>>, vector<1x1xf32>
    %168 = vector.broadcast %167 : vector<1x1xf32> to vector<64x512xf32>
    %169 = arith.mulf %168, %164 : vector<64x512xf32>
    %170 = arith.select %166, %164, %169 : vector<64x512xi1>, vector<64x512xf32>
    %171 = vector.extract_strided_slice %170 {offsets = [0, 0], sizes = [64, 256], strides = [1, 1]} : vector<64x512xf32> to vector<64x256xf32>
    %172 = arith.truncf %171 : vector<64x256xf32> to vector<64x256xbf16>
    %c0_124 = arith.constant 0 : index
    %c0_125 = arith.constant 0 : index
    %c128_126 = arith.constant 128 : index
    %173 = vector.load %arg9[%c0_124, %c0_125, %c128_126] : memref<2x64x512xbf16, #tpu.memory_space<vmem>>, vector<1x64x256xbf16>
    %174 = vector.shape_cast %173 : vector<1x64x256xbf16> to vector<64x256xbf16>
    %175 = vector.shape_cast %172 : vector<64x256xbf16> to vector<1x64x256xbf16>
    tpu.vector_store %arg9[%c0_124, %c0_125, %c128_126], %175 {strides = array<i32>} : memref<2x64x512xbf16, #tpu.memory_space<vmem>>, vector<1x64x256xbf16>,
    %176 = vector.extract_strided_slice %170 {offsets = [0, 256], sizes = [64, 256], strides = [1, 1]} : vector<64x512xf32> to vector<64x256xf32>
    %177 = arith.truncf %176 : vector<64x256xf32> to vector<64x256xbf16>
    %c1_127 = arith.constant 1 : index
    %c0_128 = arith.constant 0 : index
    %c128_129 = arith.constant 128 : index
    %178 = vector.load %arg9[%c1_127, %c0_128, %c128_129] : memref<2x64x512xbf16, #tpu.memory_space<vmem>>, vector<1x64x256xbf16>
    %179 = vector.shape_cast %178 : vector<1x64x256xbf16> to vector<64x256xbf16>
    %180 = vector.shape_cast %177 : vector<64x256xbf16> to vector<1x64x256xbf16>
    tpu.vector_store %arg9[%c1_127, %c0_128, %c128_129], %180 {strides = array<i32>} : memref<2x64x512xbf16, #tpu.memory_space<vmem>>, vector<1x64x256xbf16>,
    %c0_130 = arith.constant 0 : index
    %c0_131 = arith.constant 0 : index
    %c112_132 = arith.constant 112 : index
    %181 = vector.load %arg9[%c0_130, %c0_131, %c112_132] : memref<2x64x512xbf16, #tpu.memory_space<vmem>>, vector<1x64x256xbf16>
    %182 = vector.shape_cast %181 : vector<1x64x256xbf16> to vector<64x256xbf16>
    %c0_133 = arith.constant 0 : index
    %c0_134 = arith.constant 0 : index
    %c111_135 = arith.constant 111 : index
    %183 = vector.load %arg9[%c0_133, %c0_134, %c111_135] : memref<2x64x512xbf16, #tpu.memory_space<vmem>>, vector<1x64x256xbf16>
    %184 = vector.shape_cast %183 : vector<1x64x256xbf16> to vector<64x256xbf16>
    %c0_136 = arith.constant 0 : index
    %c0_137 = arith.constant 0 : index
    %c113_138 = arith.constant 113 : index
    %185 = vector.load %arg9[%c0_136, %c0_137, %c113_138] : memref<2x64x512xbf16, #tpu.memory_space<vmem>>, vector<1x64x256xbf16>
    %186 = vector.shape_cast %185 : vector<1x64x256xbf16> to vector<64x256xbf16>
    %cst_139 = arith.constant 0.000000e+00 : bf16
    %187 = vector.broadcast %cst_139 : bf16 to vector<64x256xbf16>
    %188 = vector.shape_cast %22 : vector<1x256xi1> to vector<1x256xi1>
    %189 = vector.broadcast %188 : vector<1x256xi1> to vector<64x256xi1>
    %190 = arith.select %189, %184, %187 : vector<64x256xi1>, vector<64x256xbf16>
    %cst_140 = arith.constant 0.000000e+00 : bf16
    %191 = vector.broadcast %cst_140 : bf16 to vector<64x256xbf16>
    %192 = vector.shape_cast %24 : vector<1x256xi1> to vector<1x256xi1>
    %193 = vector.broadcast %192 : vector<1x256xi1> to vector<64x256xi1>
    %194 = arith.select %193, %186, %191 : vector<64x256xi1>, vector<64x256xbf16>
    %c0_141 = arith.constant 0 : index
    %c0_142 = arith.constant 0 : index
    %195 = vector.load %arg10[%c0_141, %c0_142] : memref<576x512xbf16, #tpu.memory_space<vmem>>, vector<64x256xbf16>
    tpu.vector_store %arg10[%c0_141, %c0_142], %190 {strides = array<i32>} : memref<576x512xbf16, #tpu.memory_space<vmem>>, vector<64x256xbf16>,
    %c64_143 = arith.constant 64 : index
    %c0_144 = arith.constant 0 : index
    %196 = vector.load %arg10[%c64_143, %c0_144] : memref<576x512xbf16, #tpu.memory_space<vmem>>, vector<64x256xbf16>
    tpu.vector_store %arg10[%c64_143, %c0_144], %182 {strides = array<i32>} : memref<576x512xbf16, #tpu.memory_space<vmem>>, vector<64x256xbf16>,
    %c128_145 = arith.constant 128 : index
    %c0_146 = arith.constant 0 : index
    %197 = vector.load %arg10[%c128_145, %c0_146] : memref<576x512xbf16, #tpu.memory_space<vmem>>, vector<64x256xbf16>
    tpu.vector_store %arg10[%c128_145, %c0_146], %194 {strides = array<i32>} : memref<576x512xbf16, #tpu.memory_space<vmem>>, vector<64x256xbf16>,
    %c0_147 = arith.constant 0 : index
    %c0_148 = arith.constant 0 : index
    %c128_149 = arith.constant 128 : index
    %198 = vector.load %arg9[%c0_147, %c0_148, %c128_149] : memref<2x64x512xbf16, #tpu.memory_space<vmem>>, vector<1x64x256xbf16>
    %199 = vector.shape_cast %198 : vector<1x64x256xbf16> to vector<64x256xbf16>
    %c0_150 = arith.constant 0 : index
    %c0_151 = arith.constant 0 : index
    %c127_152 = arith.constant 127 : index
    %200 = vector.load %arg9[%c0_150, %c0_151, %c127_152] : memref<2x64x512xbf16, #tpu.memory_space<vmem>>, vector<1x64x256xbf16>
    %201 = vector.shape_cast %200 : vector<1x64x256xbf16> to vector<64x256xbf16>
    %c0_153 = arith.constant 0 : index
    %c0_154 = arith.constant 0 : index
    %c129_155 = arith.constant 129 : index
    %202 = vector.load %arg9[%c0_153, %c0_154, %c129_155] : memref<2x64x512xbf16, #tpu.memory_space<vmem>>, vector<1x64x256xbf16>
    %203 = vector.shape_cast %202 : vector<1x64x256xbf16> to vector<64x256xbf16>
    %cst_156 = arith.constant 0.000000e+00 : bf16
    %204 = vector.broadcast %cst_156 : bf16 to vector<64x256xbf16>
    %205 = vector.shape_cast %22 : vector<1x256xi1> to vector<1x256xi1>
    %206 = vector.broadcast %205 : vector<1x256xi1> to vector<64x256xi1>
    %207 = arith.select %206, %201, %204 : vector<64x256xi1>, vector<64x256xbf16>
    %cst_157 = arith.constant 0.000000e+00 : bf16
    %208 = vector.broadcast %cst_157 : bf16 to vector<64x256xbf16>
    %209 = vector.shape_cast %24 : vector<1x256xi1> to vector<1x256xi1>
    %210 = vector.broadcast %209 : vector<1x256xi1> to vector<64x256xi1>
    %211 = arith.select %210, %203, %208 : vector<64x256xi1>, vector<64x256xbf16>
    %c192_158 = arith.constant 192 : index
    %c0_159 = arith.constant 0 : index
    %212 = vector.load %arg10[%c192_158, %c0_159] : memref<576x512xbf16, #tpu.memory_space<vmem>>, vector<64x256xbf16>
    tpu.vector_store %arg10[%c192_158, %c0_159], %207 {strides = array<i32>} : memref<576x512xbf16, #tpu.memory_space<vmem>>, vector<64x256xbf16>,
    %c256_160 = arith.constant 256 : index
    %c0_161 = arith.constant 0 : index
    %213 = vector.load %arg10[%c256_160, %c0_161] : memref<576x512xbf16, #tpu.memory_space<vmem>>, vector<64x256xbf16>
    tpu.vector_store %arg10[%c256_160, %c0_161], %199 {strides = array<i32>} : memref<576x512xbf16, #tpu.memory_space<vmem>>, vector<64x256xbf16>,
    %c320_162 = arith.constant 320 : index
    %c0_163 = arith.constant 0 : index
    %214 = vector.load %arg10[%c320_162, %c0_163] : memref<576x512xbf16, #tpu.memory_space<vmem>>, vector<64x256xbf16>
    tpu.vector_store %arg10[%c320_162, %c0_163], %211 {strides = array<i32>} : memref<576x512xbf16, #tpu.memory_space<vmem>>, vector<64x256xbf16>,
    %c0_164 = arith.constant 0 : index
    %c0_165 = arith.constant 0 : index
    %c144_166 = arith.constant 144 : index
    %215 = vector.load %arg9[%c0_164, %c0_165, %c144_166] : memref<2x64x512xbf16, #tpu.memory_space<vmem>>, vector<1x64x256xbf16>
    %216 = vector.shape_cast %215 : vector<1x64x256xbf16> to vector<64x256xbf16>
    %c0_167 = arith.constant 0 : index
    %c0_168 = arith.constant 0 : index
    %c143_169 = arith.constant 143 : index
    %217 = vector.load %arg9[%c0_167, %c0_168, %c143_169] : memref<2x64x512xbf16, #tpu.memory_space<vmem>>, vector<1x64x256xbf16>
    %218 = vector.shape_cast %217 : vector<1x64x256xbf16> to vector<64x256xbf16>
    %c0_170 = arith.constant 0 : index
    %c0_171 = arith.constant 0 : index
    %c145_172 = arith.constant 145 : index
    %219 = vector.load %arg9[%c0_170, %c0_171, %c145_172] : memref<2x64x512xbf16, #tpu.memory_space<vmem>>, vector<1x64x256xbf16>
    %220 = vector.shape_cast %219 : vector<1x64x256xbf16> to vector<64x256xbf16>
    %cst_173 = arith.constant 0.000000e+00 : bf16
    %221 = vector.broadcast %cst_173 : bf16 to vector<64x256xbf16>
    %222 = vector.shape_cast %22 : vector<1x256xi1> to vector<1x256xi1>
    %223 = vector.broadcast %222 : vector<1x256xi1> to vector<64x256xi1>
    %224 = arith.select %223, %218, %221 : vector<64x256xi1>, vector<64x256xbf16>
    %cst_174 = arith.constant 0.000000e+00 : bf16
    %225 = vector.broadcast %cst_174 : bf16 to vector<64x256xbf16>
    %226 = vector.shape_cast %24 : vector<1x256xi1> to vector<1x256xi1>
    %227 = vector.broadcast %226 : vector<1x256xi1> to vector<64x256xi1>
    %228 = arith.select %227, %220, %225 : vector<64x256xi1>, vector<64x256xbf16>
    %c384_175 = arith.constant 384 : index
    %c0_176 = arith.constant 0 : index
    %229 = vector.load %arg10[%c384_175, %c0_176] : memref<576x512xbf16, #tpu.memory_space<vmem>>, vector<64x256xbf16>
    tpu.vector_store %arg10[%c384_175, %c0_176], %224 {strides = array<i32>} : memref<576x512xbf16, #tpu.memory_space<vmem>>, vector<64x256xbf16>,
    %c448_177 = arith.constant 448 : index
    %c0_178 = arith.constant 0 : index
    %230 = vector.load %arg10[%c448_177, %c0_178] : memref<576x512xbf16, #tpu.memory_space<vmem>>, vector<64x256xbf16>
    tpu.vector_store %arg10[%c448_177, %c0_178], %216 {strides = array<i32>} : memref<576x512xbf16, #tpu.memory_space<vmem>>, vector<64x256xbf16>,
    %c512_179 = arith.constant 512 : index
    %c0_180 = arith.constant 0 : index
    %231 = vector.load %arg10[%c512_179, %c0_180] : memref<576x512xbf16, #tpu.memory_space<vmem>>, vector<64x256xbf16>
    tpu.vector_store %arg10[%c512_179, %c0_180], %228 {strides = array<i32>} : memref<576x512xbf16, #tpu.memory_space<vmem>>, vector<64x256xbf16>,
    %c1_181 = arith.constant 1 : index
    %c0_182 = arith.constant 0 : index
    %c112_183 = arith.constant 112 : index
    %232 = vector.load %arg9[%c1_181, %c0_182, %c112_183] : memref<2x64x512xbf16, #tpu.memory_space<vmem>>, vector<1x64x256xbf16>
    %233 = vector.shape_cast %232 : vector<1x64x256xbf16> to vector<64x256xbf16>
    %c1_184 = arith.constant 1 : index
    %c0_185 = arith.constant 0 : index
    %c111_186 = arith.constant 111 : index
    %234 = vector.load %arg9[%c1_184, %c0_185, %c111_186] : memref<2x64x512xbf16, #tpu.memory_space<vmem>>, vector<1x64x256xbf16>
    %235 = vector.shape_cast %234 : vector<1x64x256xbf16> to vector<64x256xbf16>
    %c1_187 = arith.constant 1 : index
    %c0_188 = arith.constant 0 : index
    %c113_189 = arith.constant 113 : index
    %236 = vector.load %arg9[%c1_187, %c0_188, %c113_189] : memref<2x64x512xbf16, #tpu.memory_space<vmem>>, vector<1x64x256xbf16>
    %237 = vector.shape_cast %236 : vector<1x64x256xbf16> to vector<64x256xbf16>
    %cst_190 = arith.constant 0.000000e+00 : bf16
    %238 = vector.broadcast %cst_190 : bf16 to vector<64x256xbf16>
    %239 = vector.shape_cast %22 : vector<1x256xi1> to vector<1x256xi1>
    %240 = vector.broadcast %239 : vector<1x256xi1> to vector<64x256xi1>
    %241 = arith.select %240, %235, %238 : vector<64x256xi1>, vector<64x256xbf16>
    %cst_191 = arith.constant 0.000000e+00 : bf16
    %242 = vector.broadcast %cst_191 : bf16 to vector<64x256xbf16>
    %243 = vector.shape_cast %24 : vector<1x256xi1> to vector<1x256xi1>
    %244 = vector.broadcast %243 : vector<1x256xi1> to vector<64x256xi1>
    %245 = arith.select %244, %237, %242 : vector<64x256xi1>, vector<64x256xbf16>
    %c0_192 = arith.constant 0 : index
    %c256_193 = arith.constant 256 : index
    %246 = vector.load %arg10[%c0_192, %c256_193] : memref<576x512xbf16, #tpu.memory_space<vmem>>, vector<64x256xbf16>
    tpu.vector_store %arg10[%c0_192, %c256_193], %241 {strides = array<i32>} : memref<576x512xbf16, #tpu.memory_space<vmem>>, vector<64x256xbf16>,
    %c64_194 = arith.constant 64 : index
    %c256_195 = arith.constant 256 : index
    %247 = vector.load %arg10[%c64_194, %c256_195] : memref<576x512xbf16, #tpu.memory_space<vmem>>, vector<64x256xbf16>
    tpu.vector_store %arg10[%c64_194, %c256_195], %233 {strides = array<i32>} : memref<576x512xbf16, #tpu.memory_space<vmem>>, vector<64x256xbf16>,
    %c128_196 = arith.constant 128 : index
    %c256_197 = arith.constant 256 : index
    %248 = vector.load %arg10[%c128_196, %c256_197] : memref<576x512xbf16, #tpu.memory_space<vmem>>, vector<64x256xbf16>
    tpu.vector_store %arg10[%c128_196, %c256_197], %245 {strides = array<i32>} : memref<576x512xbf16, #tpu.memory_space<vmem>>, vector<64x256xbf16>,
    %c1_198 = arith.constant 1 : index
    %c0_199 = arith.constant 0 : index
    %c128_200 = arith.constant 128 : index
    %249 = vector.load %arg9[%c1_198, %c0_199, %c128_200] : memref<2x64x512xbf16, #tpu.memory_space<vmem>>, vector<1x64x256xbf16>
    %250 = vector.shape_cast %249 : vector<1x64x256xbf16> to vector<64x256xbf16>
    %c1_201 = arith.constant 1 : index
    %c0_202 = arith.constant 0 : index
    %c127_203 = arith.constant 127 : index
    %251 = vector.load %arg9[%c1_201, %c0_202, %c127_203] : memref<2x64x512xbf16, #tpu.memory_space<vmem>>, vector<1x64x256xbf16>
    %252 = vector.shape_cast %251 : vector<1x64x256xbf16> to vector<64x256xbf16>
    %c1_204 = arith.constant 1 : index
    %c0_205 = arith.constant 0 : index
    %c129_206 = arith.constant 129 : index
    %253 = vector.load %arg9[%c1_204, %c0_205, %c129_206] : memref<2x64x512xbf16, #tpu.memory_space<vmem>>, vector<1x64x256xbf16>
    %254 = vector.shape_cast %253 : vector<1x64x256xbf16> to vector<64x256xbf16>
    %cst_207 = arith.constant 0.000000e+00 : bf16
    %255 = vector.broadcast %cst_207 : bf16 to vector<64x256xbf16>
    %256 = vector.shape_cast %22 : vector<1x256xi1> to vector<1x256xi1>
    %257 = vector.broadcast %256 : vector<1x256xi1> to vector<64x256xi1>
    %258 = arith.select %257, %252, %255 : vector<64x256xi1>, vector<64x256xbf16>
    %cst_208 = arith.constant 0.000000e+00 : bf16
    %259 = vector.broadcast %cst_208 : bf16 to vector<64x256xbf16>
    %260 = vector.shape_cast %24 : vector<1x256xi1> to vector<1x256xi1>
    %261 = vector.broadcast %260 : vector<1x256xi1> to vector<64x256xi1>
    %262 = arith.select %261, %254, %259 : vector<64x256xi1>, vector<64x256xbf16>
    %c192_209 = arith.constant 192 : index
    %c256_210 = arith.constant 256 : index
    %263 = vector.load %arg10[%c192_209, %c256_210] : memref<576x512xbf16, #tpu.memory_space<vmem>>, vector<64x256xbf16>
    tpu.vector_store %arg10[%c192_209, %c256_210], %258 {strides = array<i32>} : memref<576x512xbf16, #tpu.memory_space<vmem>>, vector<64x256xbf16>,
    %c256_211 = arith.constant 256 : index
    %c256_212 = arith.constant 256 : index
    %264 = vector.load %arg10[%c256_211, %c256_212] : memref<576x512xbf16, #tpu.memory_space<vmem>>, vector<64x256xbf16>
    tpu.vector_store %arg10[%c256_211, %c256_212], %250 {strides = array<i32>} : memref<576x512xbf16, #tpu.memory_space<vmem>>, vector<64x256xbf16>,
    %c320_213 = arith.constant 320 : index
    %c256_214 = arith.constant 256 : index
    %265 = vector.load %arg10[%c320_213, %c256_214] : memref<576x512xbf16, #tpu.memory_space<vmem>>, vector<64x256xbf16>
    tpu.vector_store %arg10[%c320_213, %c256_214], %262 {strides = array<i32>} : memref<576x512xbf16, #tpu.memory_space<vmem>>, vector<64x256xbf16>,
    %c1_215 = arith.constant 1 : index
    %c0_216 = arith.constant 0 : index
    %c144_217 = arith.constant 144 : index
    %266 = vector.load %arg9[%c1_215, %c0_216, %c144_217] : memref<2x64x512xbf16, #tpu.memory_space<vmem>>, vector<1x64x256xbf16>
    %267 = vector.shape_cast %266 : vector<1x64x256xbf16> to vector<64x256xbf16>
    %c1_218 = arith.constant 1 : index
    %c0_219 = arith.constant 0 : index
    %c143_220 = arith.constant 143 : index
    %268 = vector.load %arg9[%c1_218, %c0_219, %c143_220] : memref<2x64x512xbf16, #tpu.memory_space<vmem>>, vector<1x64x256xbf16>
    %269 = vector.shape_cast %268 : vector<1x64x256xbf16> to vector<64x256xbf16>
    %c1_221 = arith.constant 1 : index
    %c0_222 = arith.constant 0 : index
    %c145_223 = arith.constant 145 : index
    %270 = vector.load %arg9[%c1_221, %c0_222, %c145_223] : memref<2x64x512xbf16, #tpu.memory_space<vmem>>, vector<1x64x256xbf16>
    %271 = vector.shape_cast %270 : vector<1x64x256xbf16> to vector<64x256xbf16>
    %cst_224 = arith.constant 0.000000e+00 : bf16
    %272 = vector.broadcast %cst_224 : bf16 to vector<64x256xbf16>
    %273 = vector.shape_cast %22 : vector<1x256xi1> to vector<1x256xi1>
    %274 = vector.broadcast %273 : vector<1x256xi1> to vector<64x256xi1>
    %275 = arith.select %274, %269, %272 : vector<64x256xi1>, vector<64x256xbf16>
    %cst_225 = arith.constant 0.000000e+00 : bf16
    %276 = vector.broadcast %cst_225 : bf16 to vector<64x256xbf16>
    %277 = vector.shape_cast %24 : vector<1x256xi1> to vector<1x256xi1>
    %278 = vector.broadcast %277 : vector<1x256xi1> to vector<64x256xi1>
    %279 = arith.select %278, %271, %276 : vector<64x256xi1>, vector<64x256xbf16>
    %c384_226 = arith.constant 384 : index
    %c256_227 = arith.constant 256 : index
    %280 = vector.load %arg10[%c384_226, %c256_227] : memref<576x512xbf16, #tpu.memory_space<vmem>>, vector<64x256xbf16>
    tpu.vector_store %arg10[%c384_226, %c256_227], %275 {strides = array<i32>} : memref<576x512xbf16, #tpu.memory_space<vmem>>, vector<64x256xbf16>,
    %c448_228 = arith.constant 448 : index
    %c256_229 = arith.constant 256 : index
    %281 = vector.load %arg10[%c448_228, %c256_229] : memref<576x512xbf16, #tpu.memory_space<vmem>>, vector<64x256xbf16>
    tpu.vector_store %arg10[%c448_228, %c256_229], %267 {strides = array<i32>} : memref<576x512xbf16, #tpu.memory_space<vmem>>, vector<64x256xbf16>,
    %c512_230 = arith.constant 512 : index
    %c256_231 = arith.constant 256 : index
    %282 = vector.load %arg10[%c512_230, %c256_231] : memref<576x512xbf16, #tpu.memory_space<vmem>>, vector<64x256xbf16>
    tpu.vector_store %arg10[%c512_230, %c256_231], %279 {strides = array<i32>} : memref<576x512xbf16, #tpu.memory_space<vmem>>, vector<64x256xbf16>,
    %c0_232 = arith.constant 0 : index
    %c0_233 = arith.constant 0 : index
    %283 = vector.load %arg5[%c0_232, %c0_233] : memref<64x576xbf16, #tpu.memory_space<vmem>>, vector<64x576xbf16>
    %c0_234 = arith.constant 0 : index
    %c0_235 = arith.constant 0 : index
    %284 = vector.load %arg10[%c0_234, %c0_235] : memref<576x512xbf16, #tpu.memory_space<vmem>>, vector<576x512xbf16>
    %cst_236 = arith.constant dense<0.000000e+00> : vector<64x512xf32>
    %285 = tpu.matmul %283, %284, %cst_236 {dimension_numbers = #tpu.dot_dimension_numbers<[1], [0], [0], [1], [0, 0, 1, 1], [], []>} : vector<64x576xbf16>, vector<576x512xbf16>, vector<64x512xf32> -> vector<64x512xf32>
    %cst_237 = arith.constant dense<0.000000e+00> : vector<64xf32>
    %286 = vector.multi_reduction <add>, %285, %cst_237 [1] : vector<64x512xf32> to vector<64xf32>
    %287 = vector.shape_cast %286 : vector<64xf32> to vector<64x1xf32>
    %288 = arith.mulf %285, %285 : vector<64x512xf32>
    %cst_238 = arith.constant dense<0.000000e+00> : vector<64xf32>
    %289 = vector.multi_reduction <add>, %288, %cst_238 [1] : vector<64x512xf32> to vector<64xf32>
    %290 = vector.shape_cast %289 : vector<64xf32> to vector<64x1xf32>
    %cst_239 = arith.constant 0.001953125 : f32
    %291 = vector.broadcast %cst_239 : f32 to vector<64x1xf32>
    %292 = arith.mulf %287, %291 : vector<64x1xf32>
    %cst_240 = arith.constant 0.001953125 : f32
    %293 = vector.broadcast %cst_240 : f32 to vector<64x1xf32>
    %294 = arith.mulf %290, %293 : vector<64x1xf32>
    %295 = arith.mulf %292, %292 : vector<64x1xf32>
    %296 = arith.subf %294, %295 : vector<64x1xf32>
    %c0_241 = arith.constant 0 : index
    %c0_242 = arith.constant 0 : index
    %297 = vector.load %arg6[%c0_241, %c0_242] : memref<64x1xf32, #tpu.memory_space<vmem>>, vector<64x1xf32>
    %cst_243 = arith.constant 9.99999974E-6 : f32
    %298 = vector.broadcast %cst_243 : f32 to vector<64x1xf32>
    %299 = arith.addf %296, %298 : vector<64x1xf32>
    %300 = math.rsqrt %299 : vector<64x1xf32>
    %301 = arith.mulf %297, %300 : vector<64x1xf32>
    %c0_244 = arith.constant 0 : index
    %c0_245 = arith.constant 0 : index
    %302 = vector.load %arg7[%c0_244, %c0_245] : memref<64x1xf32, #tpu.memory_space<vmem>>, vector<64x1xf32>
    %303 = arith.mulf %292, %301 : vector<64x1xf32>
    %304 = arith.subf %302, %303 : vector<64x1xf32>
    %305 = vector.broadcast %301 : vector<64x1xf32> to vector<64x512xf32>
    %306 = arith.mulf %285, %305 : vector<64x512xf32>
    %307 = vector.broadcast %304 : vector<64x1xf32> to vector<64x512xf32>
    %308 = arith.addf %306, %307 : vector<64x512xf32>
    %309 = vector.extract_strided_slice %308 {offsets = [0, 0], sizes = [64, 256], strides = [1, 1]} : vector<64x512xf32> to vector<64x256xf32>
    %c0_246 = arith.constant 0 : index
    %c0_247 = arith.constant 0 : index
    %c0_248 = arith.constant 0 : index
    %310 = vector.load %arg0[%c0_246, %c0_247, %c0_248] : memref<2x64x256xf32, #tpu.memory_space<vmem>>, vector<1x64x256xf32>
    %311 = vector.shape_cast %310 : vector<1x64x256xf32> to vector<64x256xf32>
    %312 = arith.addf %309, %311 : vector<64x256xf32>
    %c0_249 = arith.constant 0 : index
    %c0_250 = arith.constant 0 : index
    %c0_251 = arith.constant 0 : index
    %313 = vector.load %arg8[%c0_249, %c0_250, %c0_251] : memref<2x64x256xf32, #tpu.memory_space<vmem>>, vector<1x64x256xf32>
    %314 = vector.shape_cast %313 : vector<1x64x256xf32> to vector<64x256xf32>
    %315 = vector.shape_cast %312 : vector<64x256xf32> to vector<1x64x256xf32>
    tpu.vector_store %arg8[%c0_249, %c0_250, %c0_251], %315 {strides = array<i32>} : memref<2x64x256xf32, #tpu.memory_space<vmem>>, vector<1x64x256xf32>,
    %316 = vector.extract_strided_slice %308 {offsets = [0, 256], sizes = [64, 256], strides = [1, 1]} : vector<64x512xf32> to vector<64x256xf32>
    %c1_252 = arith.constant 1 : index
    %c0_253 = arith.constant 0 : index
    %c0_254 = arith.constant 0 : index
    %317 = vector.load %arg0[%c1_252, %c0_253, %c0_254] : memref<2x64x256xf32, #tpu.memory_space<vmem>>, vector<1x64x256xf32>
    %318 = vector.shape_cast %317 : vector<1x64x256xf32> to vector<64x256xf32>
    %319 = arith.addf %316, %318 : vector<64x256xf32>
    %c1_255 = arith.constant 1 : index
    %c0_256 = arith.constant 0 : index
    %c0_257 = arith.constant 0 : index
    %320 = vector.load %arg8[%c1_255, %c0_256, %c0_257] : memref<2x64x256xf32, #tpu.memory_space<vmem>>, vector<1x64x256xf32>
    %321 = vector.shape_cast %320 : vector<1x64x256xf32> to vector<64x256xf32>
    %322 = vector.shape_cast %319 : vector<64x256xf32> to vector<1x64x256xf32>
    tpu.vector_store %arg8[%c1_255, %c0_256, %c0_257], %322 {strides = array<i32>} : memref<2x64x256xf32, #tpu.memory_space<vmem>>, vector<1x64x256xf32>,
    return
  }
}

</mosaic_0001>

<llo_original>
// kernel: tpu_custom_call.1
$region0: #{tpu_custom_call.1}
  #allocation0 [shape = 'u32[]', space=smem, size = 0x4, offset = 0x4, fixed_abs, tag = 'smem constant byte address 0x4 - core index']
  #allocation1 [shape = 'u32[144,128]{1,0:T(1,128)}', space=vmem, size = 0x12000, scoped, tag = 'internal scratch']
  #allocation2 [shape = 'bf16[2,64,512]{2,1,0:T(16,128)(2,1)}', space=vmem, size = 0x20000, scoped, tag = 'scratch operand']
  #allocation3 [shape = 'bf16[576,512]{1,0:T(16,128)(2,1)}', space=vmem, size = 0x90000, scoped, tag = 'scratch operand']
  #allocation4 [shape = 'f32[1,1]{1,0:T(1,128)S(1)}', space=vmem, size = 0x200, scoped, tag = 'scoped memory for tpu_custom_call.1']
  %s0 = inlined_call_operand.vmem [shape: f32[2,64,256], index: 0, kind: input, shape index: {}]
  %s1 = inlined_call_operand.hbm [shape: bf16[64,576], index: 1, kind: input, shape index: {}]
  %s2 = inlined_call_operand.vmem [shape: f32[64,1], index: 2, kind: input, shape index: {}]
  %s3 = inlined_call_operand.vmem [shape: f32[64,1], index: 3, kind: input, shape index: {}]
  %s4 = inlined_call_operand.<no memory space> [shape: f32[1,1], index: 4, kind: input, shape index: {}]
  %s5 = inlined_call_operand.hbm [shape: bf16[64,576], index: 5, kind: input, shape index: {}]
  %s6 = inlined_call_operand.vmem [shape: f32[64,1], index: 6, kind: input, shape index: {}]
  %s7 = inlined_call_operand.vmem [shape: f32[64,1], index: 7, kind: input, shape index: {}]
  %s8 = inlined_call_operand.hbm [shape: f32[2,64,256], index: 8, kind: output, shape index: {}]
  %s9 = sld [smem:[#allocation0]]
  $region50: #{tpu_custom_call.1} parent=0
    _
  %s11 = ssub.s32 1, %s9
  %s12 = scalar_select 0, %s11, %s9
  %v13 = vstv %s4
  %14 = vst [vmem:[#allocation4] sm:$0x1] %v13
  $region1: #{tpu_custom_call.1} parent=0
    #allocation5 [shape = 'u8[81920]{0}', space=vmem, size = 0x14000, scoped, tag = 'input window, operand 1, single buffered']
    #allocation6 [shape = 's32[1]{0}', space=sflag, size = 0x4, scoped, tag = 'scoped memory for tpu_custom_call.1']
    #allocation7 [shape = 's32[1]{0}', space=sflag, size = 0x4, scoped, tag = 'scoped memory for tpu_custom_call.1']
    #allocation8 [shape = 'u8[81920]{0}', space=vmem, size = 0x14000, scoped, tag = 'input window, operand 5, single buffered']
    #allocation9 [shape = 's32[1]{0}', space=sflag, size = 0x4, scoped, tag = 'scoped memory for tpu_custom_call.1']
    #allocation10 [shape = 'u8[131072]{0}', space=vmem, size = 0x20000, scoped, tag = 'output window, operand 0, single buffered']
    %15 = vsyncpa [#allocation6], 0
    %16 = vsyncpa [#allocation9], 0
    %17 = vsyncpa [#allocation7], 0
    // Predicated region
    $region2: #{tpu_custom_call.1} parent=1 // pred_check
      _
    $region3: #{tpu_custom_call.1} parent=1 // pred_check_branch
      %19 = sbr.rel (0) target = $region5
    $region4: #{tpu_custom_call.1} parent=1 // pred_region
      _
    $region5: #{tpu_custom_call.1} parent=1 // pred_fallthru
      _
    // Predicated region
    $region6: #{tpu_custom_call.1} parent=1 // pred_check
      _
    $region7: #{tpu_custom_call.1} parent=1 // pred_check_branch
      %21 = sbr.rel (0) target = $region9
    $region8: #{tpu_custom_call.1} parent=1 // pred_region
      %s23 = ssub.s32 2560, 2560
      %24 = vsyncadd [#allocation6], %s23
      %s25 = sshll.u32 [#allocation5], 4
      %s26 = int_to_ptr.vmem [resolvable:$true] %s25
      %31 = dma.hbm_to_vmem [thread:$0]  %s1, 2560, %s26, [#allocation6], 320, 320, 20
    $region9: #{tpu_custom_call.1} parent=1 // pred_fallthru
      _
    // Predicated region
    $region10: #{tpu_custom_call.1} parent=1 // pred_check
      _
    $region11: #{tpu_custom_call.1} parent=1 // pred_check_branch
      %33 = sbr.rel (0) target = $region13
    $region12: #{tpu_custom_call.1} parent=1 // pred_region
      _
    $region13: #{tpu_custom_call.1} parent=1 // pred_fallthru
      _
    // Predicated region
    $region14: #{tpu_custom_call.1} parent=1 // pred_check
      _
    $region15: #{tpu_custom_call.1} parent=1 // pred_check_branch
      %35 = sbr.rel (0) target = $region17
    $region16: #{tpu_custom_call.1} parent=1 // pred_region
      _
    $region17: #{tpu_custom_call.1} parent=1 // pred_fallthru
      _
    // Predicated region
    $region18: #{tpu_custom_call.1} parent=1 // pred_check
      _
    $region19: #{tpu_custom_call.1} parent=1 // pred_check_branch
      %37 = sbr.rel (0) target = $region21
    $region20: #{tpu_custom_call.1} parent=1 // pred_region
      _
    $region21: #{tpu_custom_call.1} parent=1 // pred_fallthru
      _
    // Predicated region
    $region22: #{tpu_custom_call.1} parent=1 // pred_check
      _
    $region23: #{tpu_custom_call.1} parent=1 // pred_check_branch
      %39 = sbr.rel (0) target = $region25
    $region24: #{tpu_custom_call.1} parent=1 // pred_region
      %s41 = ssub.s32 2560, 2560
      %42 = vsyncadd [#allocation9], %s41
      %s43 = sshll.u32 [#allocation8], 4
      %s44 = int_to_ptr.vmem [resolvable:$true] %s43
      %49 = dma.hbm_to_vmem [thread:$0]  %s5, 2560, %s44, [#allocation9], 320, 320, 20
    $region25: #{tpu_custom_call.1} parent=1 // pred_fallthru
      _
    // Predicated region
    $region26: #{tpu_custom_call.1} parent=1 // pred_check
      _
    $region27: #{tpu_custom_call.1} parent=1 // pred_check_branch
      %51 = sbr.rel (0) target = $region29
    $region28: #{tpu_custom_call.1} parent=1 // pred_region
      _
    $region29: #{tpu_custom_call.1} parent=1 // pred_fallthru
      _
    // Predicated region
    $region30: #{tpu_custom_call.1} parent=1 // pred_check
      _
    $region31: #{tpu_custom_call.1} parent=1 // pred_check_branch
      %53 = sbr.rel (0) target = $region33
    $region32: #{tpu_custom_call.1} parent=1 // pred_region
      _
    $region33: #{tpu_custom_call.1} parent=1 // pred_fallthru
      _
    // Predicated region
    $region34: #{tpu_custom_call.1} parent=1 // pred_check
      _
    $region35: #{tpu_custom_call.1} parent=1 // pred_check_branch
      %55 = sbr.rel (0) target = $region37
    $region36: #{tpu_custom_call.1} parent=1 // pred_region
      %56 = dma.done [#allocation6], 2560
    $region37: #{tpu_custom_call.1} parent=1 // pred_fallthru
      _
    // Predicated region
    $region38: #{tpu_custom_call.1} parent=1 // pred_check
      _
    $region39: #{tpu_custom_call.1} parent=1 // pred_check_branch
      %58 = sbr.rel (0) target = $region41
    $region40: #{tpu_custom_call.1} parent=1 // pred_region
      %59 = dma.done [#allocation9], 2560
    $region41: #{tpu_custom_call.1} parent=1 // pred_fallthru
      _
    %63 = vst [vmem:[#allocation2] sm:$0xff] 0
    %64 = vst [vmem:[#allocation2 + $0x20] sm:$0xff] 0
    %65 = vst [vmem:[#allocation2 + $0x40] sm:$0xff] 0
    %66 = vst [vmem:[#allocation2 + $0x60] sm:$0xff] 0
    %67 = vst [vmem:[#allocation2 + $0x80] sm:$0xff] 0
    %68 = vst [vmem:[#allocation2 + $0xa0] sm:$0xff] 0
    %69 = vst [vmem:[#allocation2 + $0xc0] sm:$0xff] 0
    %70 = vst [vmem:[#allocation2 + $0xe0] sm:$0xff] 0
    %71 = vst [vmem:[#allocation2 + $0x18] sm:$0xff] 0
    %72 = vst [vmem:[#allocation2 + $0x38] sm:$0xff] 0
    %73 = vst [vmem:[#allocation2 + $0x58] sm:$0xff] 0
    %74 = vst [vmem:[#allocation2 + $0x78] sm:$0xff] 0
    %75 = vst [vmem:[#allocation2 + $0x98] sm:$0xff] 0
    %76 = vst [vmem:[#allocation2 + $0xb8] sm:$0xff] 0
    %77 = vst [vmem:[#allocation2 + $0xd8] sm:$0xff] 0
    %78 = vst [vmem:[#allocation2 + $0xf8] sm:$0xff] 0
    %v79 = vlaneseq
    %v80 = vand.u32 %v79, 127
    %v81 = vadd.s32 %v80, 128
    %vm82 = vcmp.lt.s32.totalorder %v80, 0
    %v83 = vsub.s32 0, %v80
    %v84 = vsel %vm82, %v83, %v80
    %v85 = vshrl.u32 %v84, 4
    %v86 = vand.u32 %v84, 15
    %v87 = vsub.s32 0, %v86
    %v88 = vsel %vm82, %v87, %v86
    %vm89 = vcmp.lt.s32.totalorder %v81, 0
    %v90 = vsub.s32 0, %v81
    %v91 = vsel %vm89, %v90, %v81
    %v92 = vshrl.u32 %v91, 4
    %v93 = vand.u32 %v91, 15
    %v94 = vsub.s32 0, %v93
    %v95 = vsel %vm89, %v94, %v93
    %vm96 = vcmp.ne.s32.totalorder %v88, 0
    %vm97 = vcmp.ne.s32.totalorder %v95, 0
    %vm98 = vcmp.lt.s32.totalorder %v88, 0
    %vm99 = vcmp.lt.s32.totalorder %v95, 0
    %vm100 = vmand %vm98, %vm96
    %vm101 = vmand %vm99, %vm97
    %v102 = vadd.s32 %v88, 16
    %v103 = vadd.s32 %v95, 16
    %v104 = vsel %vm100, %v102, %v88
    %v105 = vsel %vm101, %v103, %v95
    %vm106 = vcmp.ne.s32.totalorder %v104, 0
    %vm107 = vcmp.ne.s32.totalorder %v105, 0
    %vm108 = vcmp.ne.s32.totalorder %v104, 15
    %vm109 = vcmp.ne.s32.totalorder %v105, 15
    %v110 = vld [vmem:[%s0] sm:$0xff]
    %v111 = vld [vmem:[%s0 + $0x8] sm:$0xff]
    %v112 = vld [vmem:[%s0 + $0x10] sm:$0xff]
    %v113 = vld [vmem:[%s0 + $0x18] sm:$0xff]
    %v114 = vld [vmem:[%s0 + $0x20] sm:$0xff]
    %v115 = vld [vmem:[%s0 + $0x28] sm:$0xff]
    %v116 = vld [vmem:[%s0 + $0x30] sm:$0xff]
    %v117 = vld [vmem:[%s0 + $0x38] sm:$0xff]
    %v118 = vld [vmem:[%s0 + $0x40] sm:$0xff]
    %v119 = vld [vmem:[%s0 + $0x48] sm:$0xff]
    %v120 = vld [vmem:[%s0 + $0x50] sm:$0xff]
    %v121 = vld [vmem:[%s0 + $0x58] sm:$0xff]
    %v122 = vld [vmem:[%s0 + $0x60] sm:$0xff]
    %v123 = vld [vmem:[%s0 + $0x68] sm:$0xff]
    %v124 = vld [vmem:[%s0 + $0x70] sm:$0xff]
    %v125 = vld [vmem:[%s0 + $0x78] sm:$0xff]
    %v126 = vpack.c.bf16 %v112, %v110
    %v127 = vpack.c.bf16 %v113, %v111
    %v128 = vpack.c.bf16 %v116, %v114
    %v129 = vpack.c.bf16 %v117, %v115
    %v130 = vpack.c.bf16 %v120, %v118
    %v131 = vpack.c.bf16 %v121, %v119
    %v132 = vpack.c.bf16 %v124, %v122
    %v133 = vpack.c.bf16 %v125, %v123
    %134 = vst [vmem:[#allocation2 + $0x8] sm:$0xff] %v126
    %135 = vst [vmem:[#allocation2 + $0x10] sm:$0xff] %v127
    %136 = vst [vmem:[#allocation2 + $0x28] sm:$0xff] %v128
    %137 = vst [vmem:[#allocation2 + $0x30] sm:$0xff] %v129
    %138 = vst [vmem:[#allocation2 + $0x48] sm:$0xff] %v130
    %139 = vst [vmem:[#allocation2 + $0x50] sm:$0xff] %v131
    %140 = vst [vmem:[#allocation2 + $0x68] sm:$0xff] %v132
    %141 = vst [vmem:[#allocation2 + $0x70] sm:$0xff] %v133
    %s142 = scalar_lea.vmem %s0, 128
    %v143 = vld [vmem:[%s142] sm:$0xff]
    %v144 = vld [vmem:[%s142 + $0x8] sm:$0xff]
    %v145 = vld [vmem:[%s142 + $0x10] sm:$0xff]
    %v146 = vld [vmem:[%s142 + $0x18] sm:$0xff]
    %v147 = vld [vmem:[%s142 + $0x20] sm:$0xff]
    %v148 = vld [vmem:[%s142 + $0x28] sm:$0xff]
    %v149 = vld [vmem:[%s142 + $0x30] sm:$0xff]
    %v150 = vld [vmem:[%s142 + $0x38] sm:$0xff]
    %v151 = vld [vmem:[%s142 + $0x40] sm:$0xff]
    %v152 = vld [vmem:[%s142 + $0x48] sm:$0xff]
    %v153 = vld [vmem:[%s142 + $0x50] sm:$0xff]
    %v154 = vld [vmem:[%s142 + $0x58] sm:$0xff]
    %v155 = vld [vmem:[%s142 + $0x60] sm:$0xff]
    %v156 = vld [vmem:[%s142 + $0x68] sm:$0xff]
    %v157 = vld [vmem:[%s142 + $0x70] sm:$0xff]
    %v158 = vld [vmem:[%s142 + $0x78] sm:$0xff]
    %v159 = vpack.c.bf16 %v145, %v143
    %v160 = vpack.c.bf16 %v146, %v144
    %v161 = vpack.c.bf16 %v149, %v147
    %v162 = vpack.c.bf16 %v150, %v148
    %v163 = vpack.c.bf16 %v153, %v151
    %v164 = vpack.c.bf16 %v154, %v152
    %v165 = vpack.c.bf16 %v157, %v155
    %v166 = vpack.c.bf16 %v158, %v156
    %s167 = scalar_lea.vmem [#allocation2], 128
    %168 = vst [vmem:[%s167 + $0x8] sm:$0xff] %v159
    %169 = vst [vmem:[%s167 + $0x10] sm:$0xff] %v160
    %170 = vst [vmem:[%s167 + $0x28] sm:$0xff] %v161
    %171 = vst [vmem:[%s167 + $0x30] sm:$0xff] %v162
    %172 = vst [vmem:[%s167 + $0x48] sm:$0xff] %v163
    %173 = vst [vmem:[%s167 + $0x50] sm:$0xff] %v164
    %174 = vst [vmem:[%s167 + $0x68] sm:$0xff] %v165
    %175 = vst [vmem:[%s167 + $0x70] sm:$0xff] %v166
    %v176 = vld [vmem:[#allocation2] sm:$0xff]
    %v177 = vld [vmem:[#allocation2 + $0x8] sm:$0xff]
    %v178 = vld [vmem:[#allocation2 + $0x10] sm:$0xff]
    %v179 = vld [vmem:[#allocation2 + $0x20] sm:$0xff]
    %v180 = vld [vmem:[#allocation2 + $0x28] sm:$0xff]
    %v181 = vld [vmem:[#allocation2 + $0x30] sm:$0xff]
    %v182 = vld [vmem:[#allocation2 + $0x40] sm:$0xff]
    %v183 = vld [vmem:[#allocation2 + $0x48] sm:$0xff]
    %v184 = vld [vmem:[#allocation2 + $0x50] sm:$0xff]
    %v185 = vld [vmem:[#allocation2 + $0x60] sm:$0xff]
    %v186 = vld [vmem:[#allocation2 + $0x68] sm:$0xff]
    %v187 = vld [vmem:[#allocation2 + $0x70] sm:$0xff]
    %v188 = vsel %vm106, 1, 0
    %v189 = vsel %vm107, 1, 0
    %vm190 = vcmp.eq.s32.totalorder %v188, 1
    %vm191 = vcmp.eq.s32.totalorder %v189, 1
    %vm192 = vmpackc.low %vm191, %vm190
    %v193 = vsel %vm192, 65537, 0
    %v194 = vlaneseq
    %v195 = vshrl.u32 %v194, 7
    %v196 = vsub.s32 0, %v195
    %v197 = vrot.slane %v193, %v196
    %v198 = vlaneseq
    %v199 = vshrl.u32 %v198, 7
    %v200 = vsub.s32 4, %v199
    %v201 = vrot.slane %v193, %v200
    %202 = vrot.lane.b32.xlu0 %v197, 111
    %v203 = vpop.permute.xlu0 %202
    %204 = vrot.lane.b32.xlu0 %v201, 111
    %v205 = vpop.permute.xlu0 %204
    %vm206 = vcmask 908288
    %v207 = vsel %vm206, %v203, %v205
    %vm208 = vcmp.ne.s16.totalorder %v203, 0
    %vm209 = vcmp.ne.s16.totalorder %v207, 0
    %vm210 = vcmp.ne.s16.totalorder %v205, 0
    %v211 = vsel %vm208, %v176, 0
    %v212 = vsel %vm209, %v177, 0
    %v213 = vsel %vm210, %v178, 0
    %v214 = vsel %vm208, %v179, 0
    %v215 = vsel %vm209, %v180, 0
    %v216 = vsel %vm210, %v181, 0
    %v217 = vsel %vm208, %v182, 0
    %v218 = vsel %vm209, %v183, 0
    %v219 = vsel %vm210, %v184, 0
    %v220 = vsel %vm208, %v185, 0
    %v221 = vsel %vm209, %v186, 0
    %v222 = vsel %vm210, %v187, 0
    %v223 = vsel %vm108, 1, 0
    %v224 = vsel %vm109, 1, 0
    %vm225 = vcmp.eq.s32.totalorder %v223, 1
    %vm226 = vcmp.eq.s32.totalorder %v224, 1
    %vm227 = vmpackc.low %vm226, %vm225
    %v228 = vsel %vm227, 65537, 0
    %v229 = vlaneseq
    %v230 = vshrl.u32 %v229, 7
    %v231 = vsub.s32 0, %v230
    %v232 = vrot.slane %v228, %v231
    %v233 = vlaneseq
    %v234 = vshrl.u32 %v233, 7
    %v235 = vsub.s32 4, %v234
    %v236 = vrot.slane %v228, %v235
    %237 = vrot.lane.b32.xlu0 %v232, 113
    %v238 = vpop.permute.xlu0 %237
    %239 = vrot.lane.b32.xlu0 %v236, 113
    %v240 = vpop.permute.xlu0 %239
    %vm241 = vcmask 924672
    %v242 = vsel %vm241, %v238, %v240
    %vm243 = vcmp.ne.s16.totalorder %v238, 0
    %vm244 = vcmp.ne.s16.totalorder %v242, 0
    %vm245 = vcmp.ne.s16.totalorder %v240, 0
    %v246 = vsel %vm243, %v176, 0
    %v247 = vsel %vm244, %v177, 0
    %v248 = vsel %vm245, %v178, 0
    %v249 = vsel %vm243, %v179, 0
    %v250 = vsel %vm244, %v180, 0
    %v251 = vsel %vm245, %v181, 0
    %v252 = vsel %vm243, %v182, 0
    %v253 = vsel %vm244, %v183, 0
    %v254 = vsel %vm245, %v184, 0
    %v255 = vsel %vm243, %v185, 0
    %v256 = vsel %vm244, %v186, 0
    %v257 = vsel %vm245, %v187, 0
    %270 = vrot.lane.b32.xlu0 %v211, 17
    %v271 = vpop.permute.xlu0 %270
    %272 = vrot.lane.b32.xlu0 %v212, 17
    %v273 = vpop.permute.xlu0 %272
    %274 = vrot.lane.b32.xlu0 %v213, 17
    %v275 = vpop.permute.xlu0 %274
    %276 = vrot.lane.b32.xlu0 %v214, 17
    %v277 = vpop.permute.xlu0 %276
    %278 = vrot.lane.b32.xlu0 %v215, 17
    %v279 = vpop.permute.xlu0 %278
    %280 = vrot.lane.b32.xlu0 %v216, 17
    %v281 = vpop.permute.xlu0 %280
    %282 = vrot.lane.b32.xlu0 %v217, 17
    %v283 = vpop.permute.xlu0 %282
    %284 = vrot.lane.b32.xlu0 %v218, 17
    %v285 = vpop.permute.xlu0 %284
    %286 = vrot.lane.b32.xlu0 %v219, 17
    %v287 = vpop.permute.xlu0 %286
    %288 = vrot.lane.b32.xlu0 %v220, 17
    %v289 = vpop.permute.xlu0 %288
    %290 = vrot.lane.b32.xlu0 %v221, 17
    %v291 = vpop.permute.xlu0 %290
    %292 = vrot.lane.b32.xlu0 %v222, 17
    %v293 = vpop.permute.xlu0 %292
    %vm294 = vcmask 138240
    %v295 = vsel %vm294, %v271, %v273
    %v296 = vsel %vm294, %v273, %v275
    %v297 = vsel %vm294, %v277, %v279
    %v298 = vsel %vm294, %v279, %v281
    %v299 = vsel %vm294, %v283, %v285
    %v300 = vsel %vm294, %v285, %v287
    %v301 = vsel %vm294, %v289, %v291
    %v302 = vsel %vm294, %v291, %v293
    %311 = vst [vmem:[#allocation3] sm:$0xff] %v295
    %312 = vst [vmem:[#allocation3 + $0x8] sm:$0xff] %v296
    %313 = vst [vmem:[#allocation3 + $0x20] sm:$0xff] %v297
    %314 = vst [vmem:[#allocation3 + $0x28] sm:$0xff] %v298
    %315 = vst [vmem:[#allocation3 + $0x40] sm:$0xff] %v299
    %316 = vst [vmem:[#allocation3 + $0x48] sm:$0xff] %v300
    %317 = vst [vmem:[#allocation3 + $0x60] sm:$0xff] %v301
    %318 = vst [vmem:[#allocation3 + $0x68] sm:$0xff] %v302
    %331 = vrot.lane.b32.xlu0 %v176, 16
    %v332 = vpop.permute.xlu0 %331
    %333 = vrot.lane.b32.xlu0 %v177, 16
    %v334 = vpop.permute.xlu0 %333
    %335 = vrot.lane.b32.xlu0 %v178, 16
    %v336 = vpop.permute.xlu0 %335
    %337 = vrot.lane.b32.xlu0 %v179, 16
    %v338 = vpop.permute.xlu0 %337
    %339 = vrot.lane.b32.xlu0 %v180, 16
    %v340 = vpop.permute.xlu0 %339
    %341 = vrot.lane.b32.xlu0 %v181, 16
    %v342 = vpop.permute.xlu0 %341
    %343 = vrot.lane.b32.xlu0 %v182, 16
    %v344 = vpop.permute.xlu0 %343
    %345 = vrot.lane.b32.xlu0 %v183, 16
    %v346 = vpop.permute.xlu0 %345
    %347 = vrot.lane.b32.xlu0 %v184, 16
    %v348 = vpop.permute.xlu0 %347
    %349 = vrot.lane.b32.xlu0 %v185, 16
    %v350 = vpop.permute.xlu0 %349
    %351 = vrot.lane.b32.xlu0 %v186, 16
    %v352 = vpop.permute.xlu0 %351
    %353 = vrot.lane.b32.xlu0 %v187, 16
    %v354 = vpop.permute.xlu0 %353
    %vm355 = vcmask 130048
    %v356 = vsel %vm355, %v332, %v334
    %v357 = vsel %vm355, %v334, %v336
    %v358 = vsel %vm355, %v338, %v340
    %v359 = vsel %vm355, %v340, %v342
    %v360 = vsel %vm355, %v344, %v346
    %v361 = vsel %vm355, %v346, %v348
    %v362 = vsel %vm355, %v350, %v352
    %v363 = vsel %vm355, %v352, %v354
    %372 = vst [vmem:[#allocation3 + $0x80] sm:$0xff] %v356
    %373 = vst [vmem:[#allocation3 + $0x88] sm:$0xff] %v357
    %374 = vst [vmem:[#allocation3 + $0xa0] sm:$0xff] %v358
    %375 = vst [vmem:[#allocation3 + $0xa8] sm:$0xff] %v359
    %376 = vst [vmem:[#allocation3 + $0xc0] sm:$0xff] %v360
    %377 = vst [vmem:[#allocation3 + $0xc8] sm:$0xff] %v361
    %378 = vst [vmem:[#allocation3 + $0xe0] sm:$0xff] %v362
    %379 = vst [vmem:[#allocation3 + $0xe8] sm:$0xff] %v363
    %392 = vrot.lane.b32.xlu0 %v246, 15
    %v393 = vpop.permute.xlu0 %392
    %394 = vrot.lane.b32.xlu0 %v247, 15
    %v395 = vpop.permute.xlu0 %394
    %396 = vrot.lane.b32.xlu0 %v248, 15
    %v397 = vpop.permute.xlu0 %396
    %398 = vrot.lane.b32.xlu0 %v249, 15
    %v399 = vpop.permute.xlu0 %398
    %400 = vrot.lane.b32.xlu0 %v250, 15
    %v401 = vpop.permute.xlu0 %400
    %402 = vrot.lane.b32.xlu0 %v251, 15
    %v403 = vpop.permute.xlu0 %402
    %404 = vrot.lane.b32.xlu0 %v252, 15
    %v405 = vpop.permute.xlu0 %404
    %406 = vrot.lane.b32.xlu0 %v253, 15
    %v407 = vpop.permute.xlu0 %406
    %408 = vrot.lane.b32.xlu0 %v254, 15
    %v409 = vpop.permute.xlu0 %408
    %410 = vrot.lane.b32.xlu0 %v255, 15
    %v411 = vpop.permute.xlu0 %410
    %412 = vrot.lane.b32.xlu0 %v256, 15
    %v413 = vpop.permute.xlu0 %412
    %414 = vrot.lane.b32.xlu0 %v257, 15
    %v415 = vpop.permute.xlu0 %414
    %vm416 = vcmask 121856
    %v417 = vsel %vm416, %v393, %v395
    %v418 = vsel %vm416, %v395, %v397
    %v419 = vsel %vm416, %v399, %v401
    %v420 = vsel %vm416, %v401, %v403
    %v421 = vsel %vm416, %v405, %v407
    %v422 = vsel %vm416, %v407, %v409
    %v423 = vsel %vm416, %v411, %v413
    %v424 = vsel %vm416, %v413, %v415
    %433 = vst [vmem:[#allocation3 + $0x100] sm:$0xff] %v417
    %434 = vst [vmem:[#allocation3 + $0x108] sm:$0xff] %v418
    %435 = vst [vmem:[#allocation3 + $0x120] sm:$0xff] %v419
    %436 = vst [vmem:[#allocation3 + $0x128] sm:$0xff] %v420
    %437 = vst [vmem:[#allocation3 + $0x140] sm:$0xff] %v421
    %438 = vst [vmem:[#allocation3 + $0x148] sm:$0xff] %v422
    %439 = vst [vmem:[#allocation3 + $0x160] sm:$0xff] %v423
    %440 = vst [vmem:[#allocation3 + $0x168] sm:$0xff] %v424
    %v441 = vld [vmem:[#allocation2 + $0x8] sm:$0xff]
    %v442 = vld [vmem:[#allocation2 + $0x10] sm:$0xff]
    %v443 = vld [vmem:[#allocation2 + $0x28] sm:$0xff]
    %v444 = vld [vmem:[#allocation2 + $0x30] sm:$0xff]
    %v445 = vld [vmem:[#allocation2 + $0x48] sm:$0xff]
    %v446 = vld [vmem:[#allocation2 + $0x50] sm:$0xff]
    %v447 = vld [vmem:[#allocation2 + $0x68] sm:$0xff]
    %v448 = vld [vmem:[#allocation2 + $0x70] sm:$0xff]
    %v449 = vld [vmem:[#allocation2] sm:$0xff]
    %v450 = vld [vmem:[#allocation2 + $0x20] sm:$0xff]
    %v451 = vld [vmem:[#allocation2 + $0x40] sm:$0xff]
    %v452 = vld [vmem:[#allocation2 + $0x60] sm:$0xff]
    %v453 = vld [vmem:[#allocation2 + $0x18] sm:$0xff]
    %v454 = vld [vmem:[#allocation2 + $0x38] sm:$0xff]
    %v455 = vld [vmem:[#allocation2 + $0x58] sm:$0xff]
    %v456 = vld [vmem:[#allocation2 + $0x78] sm:$0xff]
    %457 = vrot.lane.b32.xlu0 %v197, 127
    %v458 = vpop.permute.xlu0 %457
    %459 = vrot.lane.b32.xlu0 %v201, 127
    %v460 = vpop.permute.xlu0 %459
    %vm461 = vcmask 1039360
    %v462 = vsel %vm461, %v458, %v460
    %vm463 = vcmp.ne.s16.totalorder %v458, 0
    %vm464 = vcmp.ne.s16.totalorder %v462, 0
    %vm465 = vcmp.ne.s16.totalorder %v460, 0
    %v466 = vsel %vm463, %v449, 0
    %v467 = vsel %vm464, %v441, 0
    %v468 = vsel %vm465, %v442, 0
    %v469 = vsel %vm463, %v450, 0
    %v470 = vsel %vm464, %v443, 0
    %v471 = vsel %vm465, %v444, 0
    %v472 = vsel %vm463, %v451, 0
    %v473 = vsel %vm464, %v445, 0
    %v474 = vsel %vm465, %v446, 0
    %v475 = vsel %vm463, %v452, 0
    %v476 = vsel %vm464, %v447, 0
    %v477 = vsel %vm465, %v448, 0
    %478 = vrot.lane.b32.xlu0 %v232, 1
    %v479 = vpop.permute.xlu0 %478
    %480 = vrot.lane.b32.xlu0 %v236, 1
    %v481 = vpop.permute.xlu0 %480
    %vm482 = vcmask 7168
    %v483 = vsel %vm482, %v479, %v481
    %vm484 = vcmp.ne.s16.totalorder %v479, 0
    %vm485 = vcmp.ne.s16.totalorder %v483, 0
    %vm486 = vcmp.ne.s16.totalorder %v481, 0
    %v487 = vsel %vm484, %v441, 0
    %v488 = vsel %vm485, %v442, 0
    %v489 = vsel %vm486, %v453, 0
    %v490 = vsel %vm484, %v443, 0
    %v491 = vsel %vm485, %v444, 0
    %v492 = vsel %vm486, %v454, 0
    %v493 = vsel %vm484, %v445, 0
    %v494 = vsel %vm485, %v446, 0
    %v495 = vsel %vm486, %v455, 0
    %v496 = vsel %vm484, %v447, 0
    %v497 = vsel %vm485, %v448, 0
    %v498 = vsel %vm486, %v456, 0
    %511 = vrot.lane.b32.xlu0 %v466, 1
    %v512 = vpop.permute.xlu0 %511
    %513 = vrot.lane.b32.xlu0 %v467, 1
    %v514 = vpop.permute.xlu0 %513
    %515 = vrot.lane.b32.xlu0 %v468, 1
    %v516 = vpop.permute.xlu0 %515
    %517 = vrot.lane.b32.xlu0 %v469, 1
    %v518 = vpop.permute.xlu0 %517
    %519 = vrot.lane.b32.xlu0 %v470, 1
    %v520 = vpop.permute.xlu0 %519
    %521 = vrot.lane.b32.xlu0 %v471, 1
    %v522 = vpop.permute.xlu0 %521
    %523 = vrot.lane.b32.xlu0 %v472, 1
    %v524 = vpop.permute.xlu0 %523
    %525 = vrot.lane.b32.xlu0 %v473, 1
    %v526 = vpop.permute.xlu0 %525
    %527 = vrot.lane.b32.xlu0 %v474, 1
    %v528 = vpop.permute.xlu0 %527
    %529 = vrot.lane.b32.xlu0 %v475, 1
    %v530 = vpop.permute.xlu0 %529
    %531 = vrot.lane.b32.xlu0 %v476, 1
    %v532 = vpop.permute.xlu0 %531
    %533 = vrot.lane.b32.xlu0 %v477, 1
    %v534 = vpop.permute.xlu0 %533
    %v535 = vsel %vm482, %v512, %v514
    %v536 = vsel %vm482, %v514, %v516
    %v537 = vsel %vm482, %v518, %v520
    %v538 = vsel %vm482, %v520, %v522
    %v539 = vsel %vm482, %v524, %v526
    %v540 = vsel %vm482, %v526, %v528
    %v541 = vsel %vm482, %v530, %v532
    %v542 = vsel %vm482, %v532, %v534
    %551 = vst [vmem:[#allocation3 + $0x180] sm:$0xff] %v535
    %552 = vst [vmem:[#allocation3 + $0x188] sm:$0xff] %v536
    %553 = vst [vmem:[#allocation3 + $0x1a0] sm:$0xff] %v537
    %554 = vst [vmem:[#allocation3 + $0x1a8] sm:$0xff] %v538
    %555 = vst [vmem:[#allocation3 + $0x1c0] sm:$0xff] %v539
    %556 = vst [vmem:[#allocation3 + $0x1c8] sm:$0xff] %v540
    %557 = vst [vmem:[#allocation3 + $0x1e0] sm:$0xff] %v541
    %558 = vst [vmem:[#allocation3 + $0x1e8] sm:$0xff] %v542
    %559 = vst [vmem:[#allocation3 + $0x200] sm:$0xff] %v441
    %560 = vst [vmem:[#allocation3 + $0x208] sm:$0xff] %v442
    %561 = vst [vmem:[#allocation3 + $0x220] sm:$0xff] %v443
    %562 = vst [vmem:[#allocation3 + $0x228] sm:$0xff] %v444
    %563 = vst [vmem:[#allocation3 + $0x240] sm:$0xff] %v445
    %564 = vst [vmem:[#allocation3 + $0x248] sm:$0xff] %v446
    %565 = vst [vmem:[#allocation3 + $0x260] sm:$0xff] %v447
    %566 = vst [vmem:[#allocation3 + $0x268] sm:$0xff] %v448
    %579 = vrot.lane.b32.xlu0 %v487, 127
    %v580 = vpop.permute.xlu0 %579
    %581 = vrot.lane.b32.xlu0 %v488, 127
    %v582 = vpop.permute.xlu0 %581
    %583 = vrot.lane.b32.xlu0 %v489, 127
    %v584 = vpop.permute.xlu0 %583
    %585 = vrot.lane.b32.xlu0 %v490, 127
    %v586 = vpop.permute.xlu0 %585
    %587 = vrot.lane.b32.xlu0 %v491, 127
    %v588 = vpop.permute.xlu0 %587
    %589 = vrot.lane.b32.xlu0 %v492, 127
    %v590 = vpop.permute.xlu0 %589
    %591 = vrot.lane.b32.xlu0 %v493, 127
    %v592 = vpop.permute.xlu0 %591
    %593 = vrot.lane.b32.xlu0 %v494, 127
    %v594 = vpop.permute.xlu0 %593
    %595 = vrot.lane.b32.xlu0 %v495, 127
    %v596 = vpop.permute.xlu0 %595
    %597 = vrot.lane.b32.xlu0 %v496, 127
    %v598 = vpop.permute.xlu0 %597
    %599 = vrot.lane.b32.xlu0 %v497, 127
    %v600 = vpop.permute.xlu0 %599
    %601 = vrot.lane.b32.xlu0 %v498, 127
    %v602 = vpop.permute.xlu0 %601
    %v603 = vsel %vm461, %v580, %v582
    %v604 = vsel %vm461, %v582, %v584
    %v605 = vsel %vm461, %v586, %v588
    %v606 = vsel %vm461, %v588, %v590
    %v607 = vsel %vm461, %v592, %v594
    %v608 = vsel %vm461, %v594, %v596
    %v609 = vsel %vm461, %v598, %v600
    %v610 = vsel %vm461, %v600, %v602
    %619 = vst [vmem:[#allocation3 + $0x280] sm:$0xff] %v603
    %620 = vst [vmem:[#allocation3 + $0x288] sm:$0xff] %v604
    %621 = vst [vmem:[#allocation3 + $0x2a0] sm:$0xff] %v605
    %622 = vst [vmem:[#allocation3 + $0x2a8] sm:$0xff] %v606
    %623 = vst [vmem:[#allocation3 + $0x2c0] sm:$0xff] %v607
    %624 = vst [vmem:[#allocation3 + $0x2c8] sm:$0xff] %v608
    %625 = vst [vmem:[#allocation3 + $0x2e0] sm:$0xff] %v609
    %626 = vst [vmem:[#allocation3 + $0x2e8] sm:$0xff] %v610
    %v627 = vld [vmem:[#allocation2 + $0x8] sm:$0xff]
    %v628 = vld [vmem:[#allocation2 + $0x10] sm:$0xff]
    %v629 = vld [vmem:[#allocation2 + $0x18] sm:$0xff]
    %v630 = vld [vmem:[#allocation2 + $0x28] sm:$0xff]
    %v631 = vld [vmem:[#allocation2 + $0x30] sm:$0xff]
    %v632 = vld [vmem:[#allocation2 + $0x38] sm:$0xff]
    %v633 = vld [vmem:[#allocation2 + $0x48] sm:$0xff]
    %v634 = vld [vmem:[#allocation2 + $0x50] sm:$0xff]
    %v635 = vld [vmem:[#allocation2 + $0x58] sm:$0xff]
    %v636 = vld [vmem:[#allocation2 + $0x68] sm:$0xff]
    %v637 = vld [vmem:[#allocation2 + $0x70] sm:$0xff]
    %v638 = vld [vmem:[#allocation2 + $0x78] sm:$0xff]
    %639 = vrot.lane.b32.xlu0 %v197, 15
    %v640 = vpop.permute.xlu0 %639
    %641 = vrot.lane.b32.xlu0 %v201, 15
    %v642 = vpop.permute.xlu0 %641
    %v643 = vsel %vm416, %v640, %v642
    %vm644 = vcmp.ne.s16.totalorder %v640, 0
    %vm645 = vcmp.ne.s16.totalorder %v643, 0
    %vm646 = vcmp.ne.s16.totalorder %v642, 0
    %v647 = vsel %vm644, %v627, 0
    %v648 = vsel %vm645, %v628, 0
    %v649 = vsel %vm646, %v629, 0
    %v650 = vsel %vm644, %v630, 0
    %v651 = vsel %vm645, %v631, 0
    %v652 = vsel %vm646, %v632, 0
    %v653 = vsel %vm644, %v633, 0
    %v654 = vsel %vm645, %v634, 0
    %v655 = vsel %vm646, %v635, 0
    %v656 = vsel %vm644, %v636, 0
    %v657 = vsel %vm645, %v637, 0
    %v658 = vsel %vm646, %v638, 0
    %659 = vrot.lane.b32.xlu0 %v232, 17
    %v660 = vpop.permute.xlu0 %659
    %661 = vrot.lane.b32.xlu0 %v236, 17
    %v662 = vpop.permute.xlu0 %661
    %v663 = vsel %vm294, %v660, %v662
    %vm664 = vcmp.ne.s16.totalorder %v660, 0
    %vm665 = vcmp.ne.s16.totalorder %v663, 0
    %vm666 = vcmp.ne.s16.totalorder %v662, 0
    %v667 = vsel %vm664, %v627, 0
    %v668 = vsel %vm665, %v628, 0
    %v669 = vsel %vm666, %v629, 0
    %v670 = vsel %vm664, %v630, 0
    %v671 = vsel %vm665, %v631, 0
    %v672 = vsel %vm666, %v632, 0
    %v673 = vsel %vm664, %v633, 0
    %v674 = vsel %vm665, %v634, 0
    %v675 = vsel %vm666, %v635, 0
    %v676 = vsel %vm664, %v636, 0
    %v677 = vsel %vm665, %v637, 0
    %v678 = vsel %vm666, %v638, 0
    %691 = vrot.lane.b32.xlu0 %v647, 113
    %v692 = vpop.permute.xlu0 %691
    %693 = vrot.lane.b32.xlu0 %v648, 113
    %v694 = vpop.permute.xlu0 %693
    %695 = vrot.lane.b32.xlu0 %v649, 113
    %v696 = vpop.permute.xlu0 %695
    %697 = vrot.lane.b32.xlu0 %v650, 113
    %v698 = vpop.permute.xlu0 %697
    %699 = vrot.lane.b32.xlu0 %v651, 113
    %v700 = vpop.permute.xlu0 %699
    %701 = vrot.lane.b32.xlu0 %v652, 113
    %v702 = vpop.permute.xlu0 %701
    %703 = vrot.lane.b32.xlu0 %v653, 113
    %v704 = vpop.permute.xlu0 %703
    %705 = vrot.lane.b32.xlu0 %v654, 113
    %v706 = vpop.permute.xlu0 %705
    %707 = vrot.lane.b32.xlu0 %v655, 113
    %v708 = vpop.permute.xlu0 %707
    %709 = vrot.lane.b32.xlu0 %v656, 113
    %v710 = vpop.permute.xlu0 %709
    %711 = vrot.lane.b32.xlu0 %v657, 113
    %v712 = vpop.permute.xlu0 %711
    %713 = vrot.lane.b32.xlu0 %v658, 113
    %v714 = vpop.permute.xlu0 %713
    %v715 = vsel %vm241, %v692, %v694
    %v716 = vsel %vm241, %v694, %v696
    %v717 = vsel %vm241, %v698, %v700
    %v718 = vsel %vm241, %v700, %v702
    %v719 = vsel %vm241, %v704, %v706
    %v720 = vsel %vm241, %v706, %v708
    %v721 = vsel %vm241, %v710, %v712
    %v722 = vsel %vm241, %v712, %v714
    %731 = vst [vmem:[#allocation3 + $0x300] sm:$0xff] %v715
    %732 = vst [vmem:[#allocation3 + $0x308] sm:$0xff] %v716
    %733 = vst [vmem:[#allocation3 + $0x320] sm:$0xff] %v717
    %734 = vst [vmem:[#allocation3 + $0x328] sm:$0xff] %v718
    %735 = vst [vmem:[#allocation3 + $0x340] sm:$0xff] %v719
    %736 = vst [vmem:[#allocation3 + $0x348] sm:$0xff] %v720
    %737 = vst [vmem:[#allocation3 + $0x360] sm:$0xff] %v721
    %738 = vst [vmem:[#allocation3 + $0x368] sm:$0xff] %v722
    %751 = vrot.lane.b32.xlu0 %v627, 112
    %v752 = vpop.permute.xlu0 %751
    %753 = vrot.lane.b32.xlu0 %v628, 112
    %v754 = vpop.permute.xlu0 %753
    %755 = vrot.lane.b32.xlu0 %v629, 112
    %v756 = vpop.permute.xlu0 %755
    %757 = vrot.lane.b32.xlu0 %v630, 112
    %v758 = vpop.permute.xlu0 %757
    %759 = vrot.lane.b32.xlu0 %v631, 112
    %v760 = vpop.permute.xlu0 %759
    %761 = vrot.lane.b32.xlu0 %v632, 112
    %v762 = vpop.permute.xlu0 %761
    %763 = vrot.lane.b32.xlu0 %v633, 112
    %v764 = vpop.permute.xlu0 %763
    %765 = vrot.lane.b32.xlu0 %v634, 112
    %v766 = vpop.permute.xlu0 %765
    %767 = vrot.lane.b32.xlu0 %v635, 112
    %v768 = vpop.permute.xlu0 %767
    %769 = vrot.lane.b32.xlu0 %v636, 112
    %v770 = vpop.permute.xlu0 %769
    %771 = vrot.lane.b32.xlu0 %v637, 112
    %v772 = vpop.permute.xlu0 %771
    %773 = vrot.lane.b32.xlu0 %v638, 112
    %v774 = vpop.permute.xlu0 %773
    %vm775 = vcmask 916480
    %v776 = vsel %vm775, %v752, %v754
    %v777 = vsel %vm775, %v754, %v756
    %v778 = vsel %vm775, %v758, %v760
    %v779 = vsel %vm775, %v760, %v762
    %v780 = vsel %vm775, %v764, %v766
    %v781 = vsel %vm775, %v766, %v768
    %v782 = vsel %vm775, %v770, %v772
    %v783 = vsel %vm775, %v772, %v774
    %792 = vst [vmem:[#allocation3 + $0x380] sm:$0xff] %v776
    %793 = vst [vmem:[#allocation3 + $0x388] sm:$0xff] %v777
    %794 = vst [vmem:[#allocation3 + $0x3a0] sm:$0xff] %v778
    %795 = vst [vmem:[#allocation3 + $0x3a8] sm:$0xff] %v779
    %796 = vst [vmem:[#allocation3 + $0x3c0] sm:$0xff] %v780
    %797 = vst [vmem:[#allocation3 + $0x3c8] sm:$0xff] %v781
    %798 = vst [vmem:[#allocation3 + $0x3e0] sm:$0xff] %v782
    %799 = vst [vmem:[#allocation3 + $0x3e8] sm:$0xff] %v783
    %812 = vrot.lane.b32.xlu0 %v667, 111
    %v813 = vpop.permute.xlu0 %812
    %814 = vrot.lane.b32.xlu0 %v668, 111
    %v815 = vpop.permute.xlu0 %814
    %816 = vrot.lane.b32.xlu0 %v669, 111
    %v817 = vpop.permute.xlu0 %816
    %818 = vrot.lane.b32.xlu0 %v670, 111
    %v819 = vpop.permute.xlu0 %818
    %820 = vrot.lane.b32.xlu0 %v671, 111
    %v821 = vpop.permute.xlu0 %820
    %822 = vrot.lane.b32.xlu0 %v672, 111
    %v823 = vpop.permute.xlu0 %822
    %824 = vrot.lane.b32.xlu0 %v673, 111
    %v825 = vpop.permute.xlu0 %824
    %826 = vrot.lane.b32.xlu0 %v674, 111
    %v827 = vpop.permute.xlu0 %826
    %828 = vrot.lane.b32.xlu0 %v675, 111
    %v829 = vpop.permute.xlu0 %828
    %830 = vrot.lane.b32.xlu0 %v676, 111
    %v831 = vpop.permute.xlu0 %830
    %832 = vrot.lane.b32.xlu0 %v677, 111
    %v833 = vpop.permute.xlu0 %832
    %834 = vrot.lane.b32.xlu0 %v678, 111
    %v835 = vpop.permute.xlu0 %834
    %v836 = vsel %vm206, %v813, %v815
    %v837 = vsel %vm206, %v815, %v817
    %v838 = vsel %vm206, %v819, %v821
    %v839 = vsel %vm206, %v821, %v823
    %v840 = vsel %vm206, %v825, %v827
    %v841 = vsel %vm206, %v827, %v829
    %v842 = vsel %vm206, %v831, %v833
    %v843 = vsel %vm206, %v833, %v835
    %852 = vst [vmem:[#allocation3 + $0x400] sm:$0xff] %v836
    %853 = vst [vmem:[#allocation3 + $0x408] sm:$0xff] %v837
    %854 = vst [vmem:[#allocation3 + $0x420] sm:$0xff] %v838
    %855 = vst [vmem:[#allocation3 + $0x428] sm:$0xff] %v839
    %856 = vst [vmem:[#allocation3 + $0x440] sm:$0xff] %v840
    %857 = vst [vmem:[#allocation3 + $0x448] sm:$0xff] %v841
    %858 = vst [vmem:[#allocation3 + $0x460] sm:$0xff] %v842
    %859 = vst [vmem:[#allocation3 + $0x468] sm:$0xff] %v843
    %v860 = vld [vmem:[%s167] sm:$0xff]
    %v861 = vld [vmem:[%s167 + $0x8] sm:$0xff]
    %v862 = vld [vmem:[%s167 + $0x10] sm:$0xff]
    %v863 = vld [vmem:[%s167 + $0x20] sm:$0xff]
    %v864 = vld [vmem:[%s167 + $0x28] sm:$0xff]
    %v865 = vld [vmem:[%s167 + $0x30] sm:$0xff]
    %v866 = vld [vmem:[%s167 + $0x40] sm:$0xff]
    %v867 = vld [vmem:[%s167 + $0x48] sm:$0xff]
    %v868 = vld [vmem:[%s167 + $0x50] sm:$0xff]
    %v869 = vld [vmem:[%s167 + $0x60] sm:$0xff]
    %v870 = vld [vmem:[%s167 + $0x68] sm:$0xff]
    %v871 = vld [vmem:[%s167 + $0x70] sm:$0xff]
    %v872 = vsel %vm208, %v860, 0
    %v873 = vsel %vm209, %v861, 0
    %v874 = vsel %vm210, %v862, 0
    %v875 = vsel %vm208, %v863, 0
    %v876 = vsel %vm209, %v864, 0
    %v877 = vsel %vm210, %v865, 0
    %v878 = vsel %vm208, %v866, 0
    %v879 = vsel %vm209, %v867, 0
    %v880 = vsel %vm210, %v868, 0
    %v881 = vsel %vm208, %v869, 0
    %v882 = vsel %vm209, %v870, 0
    %v883 = vsel %vm210, %v871, 0
    %v884 = vsel %vm243, %v860, 0
    %v885 = vsel %vm244, %v861, 0
    %v886 = vsel %vm245, %v862, 0
    %v887 = vsel %vm243, %v863, 0
    %v888 = vsel %vm244, %v864, 0
    %v889 = vsel %vm245, %v865, 0
    %v890 = vsel %vm243, %v866, 0
    %v891 = vsel %vm244, %v867, 0
    %v892 = vsel %vm245, %v868, 0
    %v893 = vsel %vm243, %v869, 0
    %v894 = vsel %vm244, %v870, 0
    %v895 = vsel %vm245, %v871, 0
    %908 = vrot.lane.b32.xlu0 %v872, 17
    %v909 = vpop.permute.xlu0 %908
    %910 = vrot.lane.b32.xlu0 %v873, 17
    %v911 = vpop.permute.xlu0 %910
    %912 = vrot.lane.b32.xlu0 %v874, 17
    %v913 = vpop.permute.xlu0 %912
    %914 = vrot.lane.b32.xlu0 %v875, 17
    %v915 = vpop.permute.xlu0 %914
    %916 = vrot.lane.b32.xlu0 %v876, 17
    %v917 = vpop.permute.xlu0 %916
    %918 = vrot.lane.b32.xlu0 %v877, 17
    %v919 = vpop.permute.xlu0 %918
    %920 = vrot.lane.b32.xlu0 %v878, 17
    %v921 = vpop.permute.xlu0 %920
    %922 = vrot.lane.b32.xlu0 %v879, 17
    %v923 = vpop.permute.xlu0 %922
    %924 = vrot.lane.b32.xlu0 %v880, 17
    %v925 = vpop.permute.xlu0 %924
    %926 = vrot.lane.b32.xlu0 %v881, 17
    %v927 = vpop.permute.xlu0 %926
    %928 = vrot.lane.b32.xlu0 %v882, 17
    %v929 = vpop.permute.xlu0 %928
    %930 = vrot.lane.b32.xlu0 %v883, 17
    %v931 = vpop.permute.xlu0 %930
    %v932 = vsel %vm294, %v909, %v911
    %v933 = vsel %vm294, %v911, %v913
    %v934 = vsel %vm294, %v915, %v917
    %v935 = vsel %vm294, %v917, %v919
    %v936 = vsel %vm294, %v921, %v923
    %v937 = vsel %vm294, %v923, %v925
    %v938 = vsel %vm294, %v927, %v929
    %v939 = vsel %vm294, %v929, %v931
    %948 = vst [vmem:[#allocation3 + $0x10] sm:$0xff] %v932
    %949 = vst [vmem:[#allocation3 + $0x18] sm:$0xff] %v933
    %950 = vst [vmem:[#allocation3 + $0x30] sm:$0xff] %v934
    %951 = vst [vmem:[#allocation3 + $0x38] sm:$0xff] %v935
    %952 = vst [vmem:[#allocation3 + $0x50] sm:$0xff] %v936
    %953 = vst [vmem:[#allocation3 + $0x58] sm:$0xff] %v937
    %954 = vst [vmem:[#allocation3 + $0x70] sm:$0xff] %v938
    %955 = vst [vmem:[#allocation3 + $0x78] sm:$0xff] %v939
    %968 = vrot.lane.b32.xlu0 %v860, 16
    %v969 = vpop.permute.xlu0 %968
    %970 = vrot.lane.b32.xlu0 %v861, 16
    %v971 = vpop.permute.xlu0 %970
    %972 = vrot.lane.b32.xlu0 %v862, 16
    %v973 = vpop.permute.xlu0 %972
    %974 = vrot.lane.b32.xlu0 %v863, 16
    %v975 = vpop.permute.xlu0 %974
    %976 = vrot.lane.b32.xlu0 %v864, 16
    %v977 = vpop.permute.xlu0 %976
    %978 = vrot.lane.b32.xlu0 %v865, 16
    %v979 = vpop.permute.xlu0 %978
    %980 = vrot.lane.b32.xlu0 %v866, 16
    %v981 = vpop.permute.xlu0 %980
    %982 = vrot.lane.b32.xlu0 %v867, 16
    %v983 = vpop.permute.xlu0 %982
    %984 = vrot.lane.b32.xlu0 %v868, 16
    %v985 = vpop.permute.xlu0 %984
    %986 = vrot.lane.b32.xlu0 %v869, 16
    %v987 = vpop.permute.xlu0 %986
    %988 = vrot.lane.b32.xlu0 %v870, 16
    %v989 = vpop.permute.xlu0 %988
    %990 = vrot.lane.b32.xlu0 %v871, 16
    %v991 = vpop.permute.xlu0 %990
    %v992 = vsel %vm355, %v969, %v971
    %v993 = vsel %vm355, %v971, %v973
    %v994 = vsel %vm355, %v975, %v977
    %v995 = vsel %vm355, %v977, %v979
    %v996 = vsel %vm355, %v981, %v983
    %v997 = vsel %vm355, %v983, %v985
    %v998 = vsel %vm355, %v987, %v989
    %v999 = vsel %vm355, %v989, %v991
    %1008 = vst [vmem:[#allocation3 + $0x90] sm:$0xff] %v992
    %1009 = vst [vmem:[#allocation3 + $0x98] sm:$0xff] %v993
    %1010 = vst [vmem:[#allocation3 + $0xb0] sm:$0xff] %v994
    %1011 = vst [vmem:[#allocation3 + $0xb8] sm:$0xff] %v995
    %1012 = vst [vmem:[#allocation3 + $0xd0] sm:$0xff] %v996
    %1013 = vst [vmem:[#allocation3 + $0xd8] sm:$0xff] %v997
    %1014 = vst [vmem:[#allocation3 + $0xf0] sm:$0xff] %v998
    %1015 = vst [vmem:[#allocation3 + $0xf8] sm:$0xff] %v999
    %1028 = vrot.lane.b32.xlu0 %v884, 15
    %v1029 = vpop.permute.xlu0 %1028
    %1030 = vrot.lane.b32.xlu0 %v885, 15
    %v1031 = vpop.permute.xlu0 %1030
    %1032 = vrot.lane.b32.xlu0 %v886, 15
    %v1033 = vpop.permute.xlu0 %1032
    %1034 = vrot.lane.b32.xlu0 %v887, 15
    %v1035 = vpop.permute.xlu0 %1034
    %1036 = vrot.lane.b32.xlu0 %v888, 15
    %v1037 = vpop.permute.xlu0 %1036
    %1038 = vrot.lane.b32.xlu0 %v889, 15
    %v1039 = vpop.permute.xlu0 %1038
    %1040 = vrot.lane.b32.xlu0 %v890, 15
    %v1041 = vpop.permute.xlu0 %1040
    %1042 = vrot.lane.b32.xlu0 %v891, 15
    %v1043 = vpop.permute.xlu0 %1042
    %1044 = vrot.lane.b32.xlu0 %v892, 15
    %v1045 = vpop.permute.xlu0 %1044
    %1046 = vrot.lane.b32.xlu0 %v893, 15
    %v1047 = vpop.permute.xlu0 %1046
    %1048 = vrot.lane.b32.xlu0 %v894, 15
    %v1049 = vpop.permute.xlu0 %1048
    %1050 = vrot.lane.b32.xlu0 %v895, 15
    %v1051 = vpop.permute.xlu0 %1050
    %v1052 = vsel %vm416, %v1029, %v1031
    %v1053 = vsel %vm416, %v1031, %v1033
    %v1054 = vsel %vm416, %v1035, %v1037
    %v1055 = vsel %vm416, %v1037, %v1039
    %v1056 = vsel %vm416, %v1041, %v1043
    %v1057 = vsel %vm416, %v1043, %v1045
    %v1058 = vsel %vm416, %v1047, %v1049
    %v1059 = vsel %vm416, %v1049, %v1051
    %1068 = vst [vmem:[#allocation3 + $0x110] sm:$0xff] %v1052
    %1069 = vst [vmem:[#allocation3 + $0x118] sm:$0xff] %v1053
    %1070 = vst [vmem:[#allocation3 + $0x130] sm:$0xff] %v1054
    %1071 = vst [vmem:[#allocation3 + $0x138] sm:$0xff] %v1055
    %1072 = vst [vmem:[#allocation3 + $0x150] sm:$0xff] %v1056
    %1073 = vst [vmem:[#allocation3 + $0x158] sm:$0xff] %v1057
    %1074 = vst [vmem:[#allocation3 + $0x170] sm:$0xff] %v1058
    %1075 = vst [vmem:[#allocation3 + $0x178] sm:$0xff] %v1059
    %v1076 = vld [vmem:[%s167 + $0x8] sm:$0xff]
    %v1077 = vld [vmem:[%s167 + $0x10] sm:$0xff]
    %v1078 = vld [vmem:[%s167 + $0x28] sm:$0xff]
    %v1079 = vld [vmem:[%s167 + $0x30] sm:$0xff]
    %v1080 = vld [vmem:[%s167 + $0x48] sm:$0xff]
    %v1081 = vld [vmem:[%s167 + $0x50] sm:$0xff]
    %v1082 = vld [vmem:[%s167 + $0x68] sm:$0xff]
    %v1083 = vld [vmem:[%s167 + $0x70] sm:$0xff]
    %v1084 = vld [vmem:[%s167] sm:$0xff]
    %v1085 = vld [vmem:[%s167 + $0x20] sm:$0xff]
    %v1086 = vld [vmem:[%s167 + $0x40] sm:$0xff]
    %v1087 = vld [vmem:[%s167 + $0x60] sm:$0xff]
    %v1088 = vld [vmem:[%s167 + $0x18] sm:$0xff]
    %v1089 = vld [vmem:[%s167 + $0x38] sm:$0xff]
    %v1090 = vld [vmem:[%s167 + $0x58] sm:$0xff]
    %v1091 = vld [vmem:[%s167 + $0x78] sm:$0xff]
    %v1092 = vsel %vm463, %v1084, 0
    %v1093 = vsel %vm464, %v1076, 0
    %v1094 = vsel %vm465, %v1077, 0
    %v1095 = vsel %vm463, %v1085, 0
    %v1096 = vsel %vm464, %v1078, 0
    %v1097 = vsel %vm465, %v1079, 0
    %v1098 = vsel %vm463, %v1086, 0
    %v1099 = vsel %vm464, %v1080, 0
    %v1100 = vsel %vm465, %v1081, 0
    %v1101 = vsel %vm463, %v1087, 0
    %v1102 = vsel %vm464, %v1082, 0
    %v1103 = vsel %vm465, %v1083, 0
    %v1104 = vsel %vm484, %v1076, 0
    %v1105 = vsel %vm485, %v1077, 0
    %v1106 = vsel %vm486, %v1088, 0
    %v1107 = vsel %vm484, %v1078, 0
    %v1108 = vsel %vm485, %v1079, 0
    %v1109 = vsel %vm486, %v1089, 0
    %v1110 = vsel %vm484, %v1080, 0
    %v1111 = vsel %vm485, %v1081, 0
    %v1112 = vsel %vm486, %v1090, 0
    %v1113 = vsel %vm484, %v1082, 0
    %v1114 = vsel %vm485, %v1083, 0
    %v1115 = vsel %vm486, %v1091, 0
    %1128 = vrot.lane.b32.xlu0 %v1092, 1
    %v1129 = vpop.permute.xlu0 %1128
    %1130 = vrot.lane.b32.xlu0 %v1093, 1
    %v1131 = vpop.permute.xlu0 %1130
    %1132 = vrot.lane.b32.xlu0 %v1094, 1
    %v1133 = vpop.permute.xlu0 %1132
    %1134 = vrot.lane.b32.xlu0 %v1095, 1
    %v1135 = vpop.permute.xlu0 %1134
    %1136 = vrot.lane.b32.xlu0 %v1096, 1
    %v1137 = vpop.permute.xlu0 %1136
    %1138 = vrot.lane.b32.xlu0 %v1097, 1
    %v1139 = vpop.permute.xlu0 %1138
    %1140 = vrot.lane.b32.xlu0 %v1098, 1
    %v1141 = vpop.permute.xlu0 %1140
    %1142 = vrot.lane.b32.xlu0 %v1099, 1
    %v1143 = vpop.permute.xlu0 %1142
    %1144 = vrot.lane.b32.xlu0 %v1100, 1
    %v1145 = vpop.permute.xlu0 %1144
    %1146 = vrot.lane.b32.xlu0 %v1101, 1
    %v1147 = vpop.permute.xlu0 %1146
    %1148 = vrot.lane.b32.xlu0 %v1102, 1
    %v1149 = vpop.permute.xlu0 %1148
    %1150 = vrot.lane.b32.xlu0 %v1103, 1
    %v1151 = vpop.permute.xlu0 %1150
    %v1152 = vsel %vm482, %v1129, %v1131
    %v1153 = vsel %vm482, %v1131, %v1133
    %v1154 = vsel %vm482, %v1135, %v1137
    %v1155 = vsel %vm482, %v1137, %v1139
    %v1156 = vsel %vm482, %v1141, %v1143
    %v1157 = vsel %vm482, %v1143, %v1145
    %v1158 = vsel %vm482, %v1147, %v1149
    %v1159 = vsel %vm482, %v1149, %v1151
    %1168 = vst [vmem:[#allocation3 + $0x190] sm:$0xff] %v1152
    %1169 = vst [vmem:[#allocation3 + $0x198] sm:$0xff] %v1153
    %1170 = vst [vmem:[#allocation3 + $0x1b0] sm:$0xff] %v1154
    %1171 = vst [vmem:[#allocation3 + $0x1b8] sm:$0xff] %v1155
    %1172 = vst [vmem:[#allocation3 + $0x1d0] sm:$0xff] %v1156
    %1173 = vst [vmem:[#allocation3 + $0x1d8] sm:$0xff] %v1157
    %1174 = vst [vmem:[#allocation3 + $0x1f0] sm:$0xff] %v1158
    %1175 = vst [vmem:[#allocation3 + $0x1f8] sm:$0xff] %v1159
    %1176 = vst [vmem:[#allocation3 + $0x210] sm:$0xff] %v1076
    %1177 = vst [vmem:[#allocation3 + $0x218] sm:$0xff] %v1077
    %1178 = vst [vmem:[#allocation3 + $0x230] sm:$0xff] %v1078
    %1179 = vst [vmem:[#allocation3 + $0x238] sm:$0xff] %v1079
    %1180 = vst [vmem:[#allocation3 + $0x250] sm:$0xff] %v1080
    %1181 = vst [vmem:[#allocation3 + $0x258] sm:$0xff] %v1081
    %1182 = vst [vmem:[#allocation3 + $0x270] sm:$0xff] %v1082
    %1183 = vst [vmem:[#allocation3 + $0x278] sm:$0xff] %v1083
    %1196 = vrot.lane.b32.xlu0 %v1104, 127
    %v1197 = vpop.permute.xlu0 %1196
    %1198 = vrot.lane.b32.xlu0 %v1105, 127
    %v1199 = vpop.permute.xlu0 %1198
    %1200 = vrot.lane.b32.xlu0 %v1106, 127
    %v1201 = vpop.permute.xlu0 %1200
    %1202 = vrot.lane.b32.xlu0 %v1107, 127
    %v1203 = vpop.permute.xlu0 %1202
    %1204 = vrot.lane.b32.xlu0 %v1108, 127
    %v1205 = vpop.permute.xlu0 %1204
    %1206 = vrot.lane.b32.xlu0 %v1109, 127
    %v1207 = vpop.permute.xlu0 %1206
    %1208 = vrot.lane.b32.xlu0 %v1110, 127
    %v1209 = vpop.permute.xlu0 %1208
    %1210 = vrot.lane.b32.xlu0 %v1111, 127
    %v1211 = vpop.permute.xlu0 %1210
    %1212 = vrot.lane.b32.xlu0 %v1112, 127
    %v1213 = vpop.permute.xlu0 %1212
    %1214 = vrot.lane.b32.xlu0 %v1113, 127
    %v1215 = vpop.permute.xlu0 %1214
    %1216 = vrot.lane.b32.xlu0 %v1114, 127
    %v1217 = vpop.permute.xlu0 %1216
    %1218 = vrot.lane.b32.xlu0 %v1115, 127
    %v1219 = vpop.permute.xlu0 %1218
    %v1220 = vsel %vm461, %v1197, %v1199
    %v1221 = vsel %vm461, %v1199, %v1201
    %v1222 = vsel %vm461, %v1203, %v1205
    %v1223 = vsel %vm461, %v1205, %v1207
    %v1224 = vsel %vm461, %v1209, %v1211
    %v1225 = vsel %vm461, %v1211, %v1213
    %v1226 = vsel %vm461, %v1215, %v1217
    %v1227 = vsel %vm461, %v1217, %v1219
    %1236 = vst [vmem:[#allocation3 + $0x290] sm:$0xff] %v1220
    %1237 = vst [vmem:[#allocation3 + $0x298] sm:$0xff] %v1221
    %1238 = vst [vmem:[#allocation3 + $0x2b0] sm:$0xff] %v1222
    %1239 = vst [vmem:[#allocation3 + $0x2b8] sm:$0xff] %v1223
    %1240 = vst [vmem:[#allocation3 + $0x2d0] sm:$0xff] %v1224
    %1241 = vst [vmem:[#allocation3 + $0x2d8] sm:$0xff] %v1225
    %1242 = vst [vmem:[#allocation3 + $0x2f0] sm:$0xff] %v1226
    %1243 = vst [vmem:[#allocation3 + $0x2f8] sm:$0xff] %v1227
    %v1244 = vld [vmem:[%s167 + $0x8] sm:$0xff]
    %v1245 = vld [vmem:[%s167 + $0x10] sm:$0xff]
    %v1246 = vld [vmem:[%s167 + $0x18] sm:$0xff]
    %v1247 = vld [vmem:[%s167 + $0x28] sm:$0xff]
    %v1248 = vld [vmem:[%s167 + $0x30] sm:$0xff]
    %v1249 = vld [vmem:[%s167 + $0x38] sm:$0xff]
    %v1250 = vld [vmem:[%s167 + $0x48] sm:$0xff]
    %v1251 = vld [vmem:[%s167 + $0x50] sm:$0xff]
    %v1252 = vld [vmem:[%s167 + $0x58] sm:$0xff]
    %v1253 = vld [vmem:[%s167 + $0x68] sm:$0xff]
    %v1254 = vld [vmem:[%s167 + $0x70] sm:$0xff]
    %v1255 = vld [vmem:[%s167 + $0x78] sm:$0xff]
    %v1256 = vsel %vm644, %v1244, 0
    %v1257 = vsel %vm645, %v1245, 0
    %v1258 = vsel %vm646, %v1246, 0
    %v1259 = vsel %vm644, %v1247, 0
    %v1260 = vsel %vm645, %v1248, 0
    %v1261 = vsel %vm646, %v1249, 0
    %v1262 = vsel %vm644, %v1250, 0
    %v1263 = vsel %vm645, %v1251, 0
    %v1264 = vsel %vm646, %v1252, 0
    %v1265 = vsel %vm644, %v1253, 0
    %v1266 = vsel %vm645, %v1254, 0
    %v1267 = vsel %vm646, %v1255, 0
    %v1268 = vsel %vm664, %v1244, 0
    %v1269 = vsel %vm665, %v1245, 0
    %v1270 = vsel %vm666, %v1246, 0
    %v1271 = vsel %vm664, %v1247, 0
    %v1272 = vsel %vm665, %v1248, 0
    %v1273 = vsel %vm666, %v1249, 0
    %v1274 = vsel %vm664, %v1250, 0
    %v1275 = vsel %vm665, %v1251, 0
    %v1276 = vsel %vm666, %v1252, 0
    %v1277 = vsel %vm664, %v1253, 0
    %v1278 = vsel %vm665, %v1254, 0
    %v1279 = vsel %vm666, %v1255, 0
    %1292 = vrot.lane.b32.xlu0 %v1256, 113
    %v1293 = vpop.permute.xlu0 %1292
    %1294 = vrot.lane.b32.xlu0 %v1257, 113
    %v1295 = vpop.permute.xlu0 %1294
    %1296 = vrot.lane.b32.xlu0 %v1258, 113
    %v1297 = vpop.permute.xlu0 %1296
    %1298 = vrot.lane.b32.xlu0 %v1259, 113
    %v1299 = vpop.permute.xlu0 %1298
    %1300 = vrot.lane.b32.xlu0 %v1260, 113
    %v1301 = vpop.permute.xlu0 %1300
    %1302 = vrot.lane.b32.xlu0 %v1261, 113
    %v1303 = vpop.permute.xlu0 %1302
    %1304 = vrot.lane.b32.xlu0 %v1262, 113
    %v1305 = vpop.permute.xlu0 %1304
    %1306 = vrot.lane.b32.xlu0 %v1263, 113
    %v1307 = vpop.permute.xlu0 %1306
    %1308 = vrot.lane.b32.xlu0 %v1264, 113
    %v1309 = vpop.permute.xlu0 %1308
    %1310 = vrot.lane.b32.xlu0 %v1265, 113
    %v1311 = vpop.permute.xlu0 %1310
    %1312 = vrot.lane.b32.xlu0 %v1266, 113
    %v1313 = vpop.permute.xlu0 %1312
    %1314 = vrot.lane.b32.xlu0 %v1267, 113
    %v1315 = vpop.permute.xlu0 %1314
    %v1316 = vsel %vm241, %v1293, %v1295
    %v1317 = vsel %vm241, %v1295, %v1297
    %v1318 = vsel %vm241, %v1299, %v1301
    %v1319 = vsel %vm241, %v1301, %v1303
    %v1320 = vsel %vm241, %v1305, %v1307
    %v1321 = vsel %vm241, %v1307, %v1309
    %v1322 = vsel %vm241, %v1311, %v1313
    %v1323 = vsel %vm241, %v1313, %v1315
    %1332 = vst [vmem:[#allocation3 + $0x310] sm:$0xff] %v1316
    %1333 = vst [vmem:[#allocation3 + $0x318] sm:$0xff] %v1317
    %1334 = vst [vmem:[#allocation3 + $0x330] sm:$0xff] %v1318
    %1335 = vst [vmem:[#allocation3 + $0x338] sm:$0xff] %v1319
    %1336 = vst [vmem:[#allocation3 + $0x350] sm:$0xff] %v1320
    %1337 = vst [vmem:[#allocation3 + $0x358] sm:$0xff] %v1321
    %1338 = vst [vmem:[#allocation3 + $0x370] sm:$0xff] %v1322
    %1339 = vst [vmem:[#allocation3 + $0x378] sm:$0xff] %v1323
    %1352 = vrot.lane.b32.xlu0 %v1244, 112
    %v1353 = vpop.permute.xlu0 %1352
    %1354 = vrot.lane.b32.xlu0 %v1245, 112
    %v1355 = vpop.permute.xlu0 %1354
    %1356 = vrot.lane.b32.xlu0 %v1246, 112
    %v1357 = vpop.permute.xlu0 %1356
    %1358 = vrot.lane.b32.xlu0 %v1247, 112
    %v1359 = vpop.permute.xlu0 %1358
    %1360 = vrot.lane.b32.xlu0 %v1248, 112
    %v1361 = vpop.permute.xlu0 %1360
    %1362 = vrot.lane.b32.xlu0 %v1249, 112
    %v1363 = vpop.permute.xlu0 %1362
    %1364 = vrot.lane.b32.xlu0 %v1250, 112
    %v1365 = vpop.permute.xlu0 %1364
    %1366 = vrot.lane.b32.xlu0 %v1251, 112
    %v1367 = vpop.permute.xlu0 %1366
    %1368 = vrot.lane.b32.xlu0 %v1252, 112
    %v1369 = vpop.permute.xlu0 %1368
    %1370 = vrot.lane.b32.xlu0 %v1253, 112
    %v1371 = vpop.permute.xlu0 %1370
    %1372 = vrot.lane.b32.xlu0 %v1254, 112
    %v1373 = vpop.permute.xlu0 %1372
    %1374 = vrot.lane.b32.xlu0 %v1255, 112
    %v1375 = vpop.permute.xlu0 %1374
    %v1376 = vsel %vm775, %v1353, %v1355
    %v1377 = vsel %vm775, %v1355, %v1357
    %v1378 = vsel %vm775, %v1359, %v1361
    %v1379 = vsel %vm775, %v1361, %v1363
    %v1380 = vsel %vm775, %v1365, %v1367
    %v1381 = vsel %vm775, %v1367, %v1369
    %v1382 = vsel %vm775, %v1371, %v1373
    %v1383 = vsel %vm775, %v1373, %v1375
    %1392 = vst [vmem:[#allocation3 + $0x390] sm:$0xff] %v1376
    %1393 = vst [vmem:[#allocation3 + $0x398] sm:$0xff] %v1377
    %1394 = vst [vmem:[#allocation3 + $0x3b0] sm:$0xff] %v1378
    %1395 = vst [vmem:[#allocation3 + $0x3b8] sm:$0xff] %v1379
    %1396 = vst [vmem:[#allocation3 + $0x3d0] sm:$0xff] %v1380
    %1397 = vst [vmem:[#allocation3 + $0x3d8] sm:$0xff] %v1381
    %1398 = vst [vmem:[#allocation3 + $0x3f0] sm:$0xff] %v1382
    %1399 = vst [vmem:[#allocation3 + $0x3f8] sm:$0xff] %v1383
    %1412 = vrot.lane.b32.xlu0 %v1268, 111
    %v1413 = vpop.permute.xlu0 %1412
    %1414 = vrot.lane.b32.xlu0 %v1269, 111
    %v1415 = vpop.permute.xlu0 %1414
    %1416 = vrot.lane.b32.xlu0 %v1270, 111
    %v1417 = vpop.permute.xlu0 %1416
    %1418 = vrot.lane.b32.xlu0 %v1271, 111
    %v1419 = vpop.permute.xlu0 %1418
    %1420 = vrot.lane.b32.xlu0 %v1272, 111
    %v1421 = vpop.permute.xlu0 %1420
    %1422 = vrot.lane.b32.xlu0 %v1273, 111
    %v1423 = vpop.permute.xlu0 %1422
    %1424 = vrot.lane.b32.xlu0 %v1274, 111
    %v1425 = vpop.permute.xlu0 %1424
    %1426 = vrot.lane.b32.xlu0 %v1275, 111
    %v1427 = vpop.permute.xlu0 %1426
    %1428 = vrot.lane.b32.xlu0 %v1276, 111
    %v1429 = vpop.permute.xlu0 %1428
    %1430 = vrot.lane.b32.xlu0 %v1277, 111
    %v1431 = vpop.permute.xlu0 %1430
    %1432 = vrot.lane.b32.xlu0 %v1278, 111
    %v1433 = vpop.permute.xlu0 %1432
    %1434 = vrot.lane.b32.xlu0 %v1279, 111
    %v1435 = vpop.permute.xlu0 %1434
    %v1436 = vsel %vm206, %v1413, %v1415
    %v1437 = vsel %vm206, %v1415, %v1417
    %v1438 = vsel %vm206, %v1419, %v1421
    %v1439 = vsel %vm206, %v1421, %v1423
    %v1440 = vsel %vm206, %v1425, %v1427
    %v1441 = vsel %vm206, %v1427, %v1429
    %v1442 = vsel %vm206, %v1431, %v1433
    %v1443 = vsel %vm206, %v1433, %v1435
    %1452 = vst [vmem:[#allocation3 + $0x410] sm:$0xff] %v1436
    %1453 = vst [vmem:[#allocation3 + $0x418] sm:$0xff] %v1437
    %1454 = vst [vmem:[#allocation3 + $0x430] sm:$0xff] %v1438
    %1455 = vst [vmem:[#allocation3 + $0x438] sm:$0xff] %v1439
    %1456 = vst [vmem:[#allocation3 + $0x450] sm:$0xff] %v1440
    %1457 = vst [vmem:[#allocation3 + $0x458] sm:$0xff] %v1441
    %1458 = vst [vmem:[#allocation3 + $0x470] sm:$0xff] %v1442
    %1459 = vst [vmem:[#allocation3 + $0x478] sm:$0xff] %v1443
    %v1460 = vld [vmem:[#allocation5] sm:$0xff]
    %v1461 = vld [vmem:[#allocation5 + $0x8] sm:$0xff]
    %v1462 = vld [vmem:[#allocation5 + $0x10] sm:$0xf]
    %v1463 = vld [vmem:[#allocation5 + $0x14] sm:$0xff]
    %v1464 = vld [vmem:[#allocation5 + $0x1c] sm:$0xff]
    %v1465 = vld [vmem:[#allocation5 + $0x24] sm:$0xf]
    %v1466 = vld [vmem:[#allocation5 + $0x28] sm:$0xff]
    %v1467 = vld [vmem:[#allocation5 + $0x30] sm:$0xff]
    %v1468 = vld [vmem:[#allocation5 + $0x38] sm:$0xf]
    %v1469 = vld [vmem:[#allocation5 + $0x3c] sm:$0xff]
    %v1470 = vld [vmem:[#allocation5 + $0x44] sm:$0xff]
    %v1471 = vld [vmem:[#allocation5 + $0x4c] sm:$0xf]
    %v1472 = vld [vmem:[#allocation5 + $0x50] sm:$0xff]
    %v1473 = vld [vmem:[#allocation5 + $0x58] sm:$0xff]
    %v1474 = vld [vmem:[#allocation5 + $0x60] sm:$0xf]
    %v1475 = vld [vmem:[#allocation5 + $0x64] sm:$0xff]
    %v1476 = vld [vmem:[#allocation5 + $0x6c] sm:$0xff]
    %v1477 = vld [vmem:[#allocation5 + $0x74] sm:$0xf]
    %v1478 = vld [vmem:[#allocation5 + $0x78] sm:$0xff]
    %v1479 = vld [vmem:[#allocation5 + $0x80] sm:$0xff]
    %v1480 = vld [vmem:[#allocation5 + $0x88] sm:$0xf]
    %v1481 = vld [vmem:[#allocation5 + $0x8c] sm:$0xff]
    %v1482 = vld [vmem:[#allocation5 + $0x94] sm:$0xff]
    %v1483 = vld [vmem:[#allocation5 + $0x9c] sm:$0xf]
    %v1484 = vld [vmem:[#allocation3] sm:$0xff]
    %v1485 = vld [vmem:[#allocation3 + $0x8] sm:$0xff]
    %v1486 = vld [vmem:[#allocation3 + $0x10] sm:$0xff]
    %v1487 = vld [vmem:[#allocation3 + $0x18] sm:$0xff]
    %v1488 = vld [vmem:[#allocation3 + $0x20] sm:$0xff]
    %v1489 = vld [vmem:[#allocation3 + $0x28] sm:$0xff]
    %v1490 = vld [vmem:[#allocation3 + $0x30] sm:$0xff]
    %v1491 = vld [vmem:[#allocation3 + $0x38] sm:$0xff]
    %v1492 = vld [vmem:[#allocation3 + $0x40] sm:$0xff]
    %v1493 = vld [vmem:[#allocation3 + $0x48] sm:$0xff]
    %v1494 = vld [vmem:[#allocation3 + $0x50] sm:$0xff]
    %v1495 = vld [vmem:[#allocation3 + $0x58] sm:$0xff]
    %v1496 = vld [vmem:[#allocation3 + $0x60] sm:$0xff]
    %v1497 = vld [vmem:[#allocation3 + $0x68] sm:$0xff]
    %v1498 = vld [vmem:[#allocation3 + $0x70] sm:$0xff]
    %v1499 = vld [vmem:[#allocation3 + $0x78] sm:$0xff]
    %v1500 = vld [vmem:[#allocation3 + $0x80] sm:$0xff]
    %v1501 = vld [vmem:[#allocation3 + $0x88] sm:$0xff]
    %v1502 = vld [vmem:[#allocation3 + $0x90] sm:$0xff]
    %v1503 = vld [vmem:[#allocation3 + $0x98] sm:$0xff]
    %v1504 = vld [vmem:[#allocation3 + $0xa0] sm:$0xff]
    %v1505 = vld [vmem:[#allocation3 + $0xa8] sm:$0xff]
    %v1506 = vld [vmem:[#allocation3 + $0xb0] sm:$0xff]
    %v1507 = vld [vmem:[#allocation3 + $0xb8] sm:$0xff]
    %v1508 = vld [vmem:[#allocation3 + $0xc0] sm:$0xff]
    %v1509 = vld [vmem:[#allocation3 + $0xc8] sm:$0xff]
    %v1510 = vld [vmem:[#allocation3 + $0xd0] sm:$0xff]
    %v1511 = vld [vmem:[#allocation3 + $0xd8] sm:$0xff]
    %v1512 = vld [vmem:[#allocation3 + $0xe0] sm:$0xff]
    %v1513 = vld [vmem:[#allocation3 + $0xe8] sm:$0xff]
    %v1514 = vld [vmem:[#allocation3 + $0xf0] sm:$0xff]
    %v1515 = vld [vmem:[#allocation3 + $0xf8] sm:$0xff]
    %v1516 = vld [vmem:[#allocation3 + $0x100] sm:$0xff]
    %v1517 = vld [vmem:[#allocation3 + $0x108] sm:$0xff]
    %v1518 = vld [vmem:[#allocation3 + $0x110] sm:$0xff]
    %v1519 = vld [vmem:[#allocation3 + $0x118] sm:$0xff]
    %v1520 = vld [vmem:[#allocation3 + $0x120] sm:$0xff]
    %v1521 = vld [vmem:[#allocation3 + $0x128] sm:$0xff]
    %v1522 = vld [vmem:[#allocation3 + $0x130] sm:$0xff]
    %v1523 = vld [vmem:[#allocation3 + $0x138] sm:$0xff]
    %v1524 = vld [vmem:[#allocation3 + $0x140] sm:$0xff]
    %v1525 = vld [vmem:[#allocation3 + $0x148] sm:$0xff]
    %v1526 = vld [vmem:[#allocation3 + $0x150] sm:$0xff]
    %v1527 = vld [vmem:[#allocation3 + $0x158] sm:$0xff]
    %v1528 = vld [vmem:[#allocation3 + $0x160] sm:$0xff]
    %v1529 = vld [vmem:[#allocation3 + $0x168] sm:$0xff]
    %v1530 = vld [vmem:[#allocation3 + $0x170] sm:$0xff]
    %v1531 = vld [vmem:[#allocation3 + $0x178] sm:$0xff]
    %v1532 = vld [vmem:[#allocation3 + $0x180] sm:$0xff]
    %v1533 = vld [vmem:[#allocation3 + $0x188] sm:$0xff]
    %v1534 = vld [vmem:[#allocation3 + $0x190] sm:$0xff]
    %v1535 = vld [vmem:[#allocation3 + $0x198] sm:$0xff]
    %v1536 = vld [vmem:[#allocation3 + $0x1a0] sm:$0xff]
    %v1537 = vld [vmem:[#allocation3 + $0x1a8] sm:$0xff]
    %v1538 = vld [vmem:[#allocation3 + $0x1b0] sm:$0xff]
    %v1539 = vld [vmem:[#allocation3 + $0x1b8] sm:$0xff]
    %v1540 = vld [vmem:[#allocation3 + $0x1c0] sm:$0xff]
    %v1541 = vld [vmem:[#allocation3 + $0x1c8] sm:$0xff]
    %v1542 = vld [vmem:[#allocation3 + $0x1d0] sm:$0xff]
    %v1543 = vld [vmem:[#allocation3 + $0x1d8] sm:$0xff]
    %v1544 = vld [vmem:[#allocation3 + $0x1e0] sm:$0xff]
    %v1545 = vld [vmem:[#allocation3 + $0x1e8] sm:$0xff]
    %v1546 = vld [vmem:[#allocation3 + $0x1f0] sm:$0xff]
    %v1547 = vld [vmem:[#allocation3 + $0x1f8] sm:$0xff]
    %v1548 = vld [vmem:[#allocation3 + $0x200] sm:$0xff]
    %v1549 = vld [vmem:[#allocation3 + $0x208] sm:$0xff]
    %v1550 = vld [vmem:[#allocation3 + $0x210] sm:$0xff]
    %v1551 = vld [vmem:[#allocation3 + $0x218] sm:$0xff]
    %v1552 = vld [vmem:[#allocation3 + $0x220] sm:$0xff]
    %v1553 = vld [vmem:[#allocation3 + $0x228] sm:$0xff]
    %v1554 = vld [vmem:[#allocation3 + $0x230] sm:$0xff]
    %v1555 = vld [vmem:[#allocation3 + $0x238] sm:$0xff]
    %v1556 = vld [vmem:[#allocation3 + $0x240] sm:$0xff]
    %v1557 = vld [vmem:[#allocation3 + $0x248] sm:$0xff]
    %v1558 = vld [vmem:[#allocation3 + $0x250] sm:$0xff]
    %v1559 = vld [vmem:[#allocation3 + $0x258] sm:$0xff]
    %v1560 = vld [vmem:[#allocation3 + $0x260] sm:$0xff]
    %v1561 = vld [vmem:[#allocation3 + $0x268] sm:$0xff]
    %v1562 = vld [vmem:[#allocation3 + $0x270] sm:$0xff]
    %v1563 = vld [vmem:[#allocation3 + $0x278] sm:$0xff]
    %v1564 = vld [vmem:[#allocation3 + $0x280] sm:$0xff]
    %v1565 = vld [vmem:[#allocation3 + $0x288] sm:$0xff]
    %v1566 = vld [vmem:[#allocation3 + $0x290] sm:$0xff]
    %v1567 = vld [vmem:[#allocation3 + $0x298] sm:$0xff]
    %v1568 = vld [vmem:[#allocation3 + $0x2a0] sm:$0xff]
    %v1569 = vld [vmem:[#allocation3 + $0x2a8] sm:$0xff]
    %v1570 = vld [vmem:[#allocation3 + $0x2b0] sm:$0xff]
    %v1571 = vld [vmem:[#allocation3 + $0x2b8] sm:$0xff]
    %v1572 = vld [vmem:[#allocation3 + $0x2c0] sm:$0xff]
    %v1573 = vld [vmem:[#allocation3 + $0x2c8] sm:$0xff]
    %v1574 = vld [vmem:[#allocation3 + $0x2d0] sm:$0xff]
    %v1575 = vld [vmem:[#allocation3 + $0x2d8] sm:$0xff]
    %v1576 = vld [vmem:[#allocation3 + $0x2e0] sm:$0xff]
    %v1577 = vld [vmem:[#allocation3 + $0x2e8] sm:$0xff]
    %v1578 = vld [vmem:[#allocation3 + $0x2f0] sm:$0xff]
    %v1579 = vld [vmem:[#allocation3 + $0x2f8] sm:$0xff]
    %v1580 = vld [vmem:[#allocation3 + $0x300] sm:$0xff]
    %v1581 = vld [vmem:[#allocation3 + $0x308] sm:$0xff]
    %v1582 = vld [vmem:[#allocation3 + $0x310] sm:$0xff]
    %v1583 = vld [vmem:[#allocation3 + $0x318] sm:$0xff]
    %v1584 = vld [vmem:[#allocation3 + $0x320] sm:$0xff]
    %v1585 = vld [vmem:[#allocation3 + $0x328] sm:$0xff]
    %v1586 = vld [vmem:[#allocation3 + $0x330] sm:$0xff]
    %v1587 = vld [vmem:[#allocation3 + $0x338] sm:$0xff]
    %v1588 = vld [vmem:[#allocation3 + $0x340] sm:$0xff]
    %v1589 = vld [vmem:[#allocation3 + $0x348] sm:$0xff]
    %v1590 = vld [vmem:[#allocation3 + $0x350] sm:$0xff]
    %v1591 = vld [vmem:[#allocation3 + $0x358] sm:$0xff]
    %v1592 = vld [vmem:[#allocation3 + $0x360] sm:$0xff]
    %v1593 = vld [vmem:[#allocation3 + $0x368] sm:$0xff]
    %v1594 = vld [vmem:[#allocation3 + $0x370] sm:$0xff]
    %v1595 = vld [vmem:[#allocation3 + $0x378] sm:$0xff]
    %v1596 = vld [vmem:[#allocation3 + $0x380] sm:$0xff]
    %v1597 = vld [vmem:[#allocation3 + $0x388] sm:$0xff]
    %v1598 = vld [vmem:[#allocation3 + $0x390] sm:$0xff]
    %v1599 = vld [vmem:[#allocation3 + $0x398] sm:$0xff]
    %v1600 = vld [vmem:[#allocation3 + $0x3a0] sm:$0xff]
    %v1601 = vld [vmem:[#allocation3 + $0x3a8] sm:$0xff]
    %v1602 = vld [vmem:[#allocation3 + $0x3b0] sm:$0xff]
    %v1603 = vld [vmem:[#allocation3 + $0x3b8] sm:$0xff]
    %v1604 = vld [vmem:[#allocation3 + $0x3c0] sm:$0xff]
    %v1605 = vld [vmem:[#allocation3 + $0x3c8] sm:$0xff]
    %v1606 = vld [vmem:[#allocation3 + $0x3d0] sm:$0xff]
    %v1607 = vld [vmem:[#allocation3 + $0x3d8] sm:$0xff]
    %v1608 = vld [vmem:[#allocation3 + $0x3e0] sm:$0xff]
    %v1609 = vld [vmem:[#allocation3 + $0x3e8] sm:$0xff]
    %v1610 = vld [vmem:[#allocation3 + $0x3f0] sm:$0xff]
    %v1611 = vld [vmem:[#allocation3 + $0x3f8] sm:$0xff]
    %v1612 = vld [vmem:[#allocation3 + $0x400] sm:$0xff]
    %v1613 = vld [vmem:[#allocation3 + $0x408] sm:$0xff]
    %v1614 = vld [vmem:[#allocation3 + $0x410] sm:$0xff]
    %v1615 = vld [vmem:[#allocation3 + $0x418] sm:$0xff]
    %v1616 = vld [vmem:[#allocation3 + $0x420] sm:$0xff]
    %v1617 = vld [vmem:[#allocation3 + $0x428] sm:$0xff]
    %v1618 = vld [vmem:[#allocation3 + $0x430] sm:$0xff]
    %v1619 = vld [vmem:[#allocation3 + $0x438] sm:$0xff]
    %v1620 = vld [vmem:[#allocation3 + $0x440] sm:$0xff]
    %v1621 = vld [vmem:[#allocation3 + $0x448] sm:$0xff]
    %v1622 = vld [vmem:[#allocation3 + $0x450] sm:$0xff]
    %v1623 = vld [vmem:[#allocation3 + $0x458] sm:$0xff]
    %v1624 = vld [vmem:[#allocation3 + $0x460] sm:$0xff]
    %v1625 = vld [vmem:[#allocation3 + $0x468] sm:$0xff]
    %v1626 = vld [vmem:[#allocation3 + $0x470] sm:$0xff]
    %v1627 = vld [vmem:[#allocation3 + $0x478] sm:$0xff]
    %v1652 = vunpack.c.l.b16 %v1460
    %v1653 = vunpack.c.h.b16 %v1460
    %v1654 = vunpack.c.l.b16 %v1461
    %v1655 = vunpack.c.h.b16 %v1461
    %v1656 = vunpack.c.l.b16 %v1462
    %v1657 = vunpack.c.l.b16 %v1463
    %v1658 = vunpack.c.h.b16 %v1463
    %v1659 = vunpack.c.l.b16 %v1464
    %v1660 = vunpack.c.h.b16 %v1464
    %v1661 = vunpack.c.l.b16 %v1465
    %v1662 = vunpack.c.l.b16 %v1466
    %v1663 = vunpack.c.h.b16 %v1466
    %v1664 = vunpack.c.l.b16 %v1467
    %v1665 = vunpack.c.h.b16 %v1467
    %v1666 = vunpack.c.l.b16 %v1468
    %v1667 = vunpack.c.l.b16 %v1469
    %v1668 = vunpack.c.h.b16 %v1469
    %v1669 = vunpack.c.l.b16 %v1470
    %v1670 = vunpack.c.h.b16 %v1470
    %v1671 = vunpack.c.l.b16 %v1471
    %v1672 = vunpack.c.l.b16 %v1472
    %v1673 = vunpack.c.h.b16 %v1472
    %v1674 = vunpack.c.l.b16 %v1473
    %v1675 = vunpack.c.h.b16 %v1473
    %v1676 = vunpack.c.l.b16 %v1474
    %v1677 = vunpack.c.l.b16 %v1475
    %v1678 = vunpack.c.h.b16 %v1475
    %v1679 = vunpack.c.l.b16 %v1476
    %v1680 = vunpack.c.h.b16 %v1476
    %v1681 = vunpack.c.l.b16 %v1477
    %v1682 = vunpack.c.l.b16 %v1478
    %v1683 = vunpack.c.h.b16 %v1478
    %v1684 = vunpack.c.l.b16 %v1479
    %v1685 = vunpack.c.h.b16 %v1479
    %v1686 = vunpack.c.l.b16 %v1480
    %v1687 = vunpack.c.l.b16 %v1481
    %v1688 = vunpack.c.h.b16 %v1481
    %v1689 = vunpack.c.l.b16 %v1482
    %v1690 = vunpack.c.h.b16 %v1482
    %v1691 = vunpack.c.l.b16 %v1483
    %v1692 = vpack.c.b16 %v1657, %v1652
    %v1693 = vpack.c.b16 %v1658, %v1653
    %v1694 = vpack.c.b16 %v1659, %v1654
    %v1695 = vpack.c.b16 %v1660, %v1655
    %v1696 = vpack.c.b16 %v1661, %v1656
    %v1697 = vpack.c.b16 %v1667, %v1662
    %v1698 = vpack.c.b16 %v1668, %v1663
    %v1699 = vpack.c.b16 %v1669, %v1664
    %v1700 = vpack.c.b16 %v1670, %v1665
    %v1701 = vpack.c.b16 %v1671, %v1666
    %v1702 = vpack.c.b16 %v1677, %v1672
    %v1703 = vpack.c.b16 %v1678, %v1673
    %v1704 = vpack.c.b16 %v1679, %v1674
    %v1705 = vpack.c.b16 %v1680, %v1675
    %v1706 = vpack.c.b16 %v1681, %v1676
    %v1707 = vpack.c.b16 %v1687, %v1682
    %v1708 = vpack.c.b16 %v1688, %v1683
    %v1709 = vpack.c.b16 %v1689, %v1684
    %v1710 = vpack.c.b16 %v1690, %v1685
    %v1711 = vpack.c.b16 %v1691, %v1686
    %vm1728 = vcmask 523264
    %v1730 = vsel %vm1728, %v1696, 0
    %v1733 = vsel %vm1728, %v1701, 0
    %v1736 = vsel %vm1728, %v1706, 0
    %v1739 = vsel %vm1728, %v1711, 0
    %1741 = vmatprep.subr.bf16.mxu0 %v1485
    %1742 = vmatpush1.bf16.msra.mxu0 %v1484
    %1743 = vmatprep.subr.bf16.mxu0 %v1489
    %1744 = vmatpush1.bf16.msra.mxu0 %v1488
    %1745 = vmatprep.subr.bf16.mxu0 %v1493
    %1746 = vmatpush1.bf16.msra.mxu0 %v1492
    %1747 = vmatprep.subr.bf16.mxu0 %v1497
    %1748 = vmatpush1.bf16.msra.mxu0 %v1496
    %1749 = vmatprep.subr.bf16.mxu0 %v1501
    %1750 = vmatpush1.bf16.msra.mxu0 %v1500
    %1751 = vmatprep.subr.bf16.mxu0 %v1505
    %1752 = vmatpush1.bf16.msra.mxu0 %v1504
    %1753 = vmatprep.subr.bf16.mxu0 %v1509
    %1754 = vmatpush1.bf16.msra.mxu0 %v1508
    %1755 = vmatprep.subr.bf16.mxu0 %v1513
    %1756 = vmatpush1.bf16.msra.mxu0 %v1512
    %1757 = vmatprep.subr.bf16.mxu0 %v1517
    %1758 = vmatpush1.bf16.msra.mxu0 %v1516
    %1759 = vmatprep.subr.bf16.mxu0 %v1521
    %1760 = vmatpush1.bf16.msra.mxu0 %v1520
    %1761 = vmatprep.subr.bf16.mxu0 %v1525
    %1762 = vmatpush1.bf16.msra.mxu0 %v1524
    %1763 = vmatprep.subr.bf16.mxu0 %v1529
    %1764 = vmatpush1.bf16.msra.mxu0 %v1528
    %1765 = vmatprep.subr.bf16.mxu0 %v1533
    %1766 = vmatpush1.bf16.msra.mxu0 %v1532
    %1767 = vmatprep.subr.bf16.mxu0 %v1537
    %1768 = vmatpush1.bf16.msra.mxu0 %v1536
    %1769 = vmatprep.subr.bf16.mxu0 %v1541
    %1770 = vmatpush1.bf16.msra.mxu0 %v1540
    %1771 = vmatprep.subr.bf16.mxu0 %v1545
    %1772 = vmatpush1.bf16.msra.mxu0 %v1544
    %1773 = vmatprep.mubr.bf16.mxu0 %v1693
    %1774 = vmatmul.mubr.bf16.gmra.mrb[0].mxu0 %v1692
    %v1775 = vpop.f32.mrb[0].mxu0
    %v1776 = vadd.f32 0.0, %v1775
    %v1777 = vpop.f32.mrb[0].mxu0
    %v1778 = vadd.f32 0.0, %v1777
    %v1779 = vpop.f32.mrb[0].mxu0
    %v1780 = vadd.f32 0.0, %v1779
    %v1781 = vpop.f32.mrb[0].mxu0
    %v1782 = vadd.f32 0.0, %v1781
    %1783 = vmatprep.mubr.bf16.mxu0 %v1698
    %1784 = vmatmul.mubr.bf16.gmra.mrb[0].mxu0 %v1697
    %v1785 = vpop.f32.mrb[0].mxu0
    %v1786 = vadd.f32 0.0, %v1785
    %v1787 = vpop.f32.mrb[0].mxu0
    %v1788 = vadd.f32 0.0, %v1787
    %v1789 = vpop.f32.mrb[0].mxu0
    %v1790 = vadd.f32 0.0, %v1789
    %v1791 = vpop.f32.mrb[0].mxu0
    %v1792 = vadd.f32 0.0, %v1791
    %1793 = vmatprep.mubr.bf16.mxu0 %v1703
    %1794 = vmatmul.mubr.bf16.gmra.mrb[0].mxu0 %v1702
    %v1795 = vpop.f32.mrb[0].mxu0
    %v1796 = vadd.f32 0.0, %v1795
    %v1797 = vpop.f32.mrb[0].mxu0
    %v1798 = vadd.f32 0.0, %v1797
    %v1799 = vpop.f32.mrb[0].mxu0
    %v1800 = vadd.f32 0.0, %v1799
    %v1801 = vpop.f32.mrb[0].mxu0
    %v1802 = vadd.f32 0.0, %v1801
    %1803 = vmatprep.mubr.bf16.mxu0 %v1708
    %1804 = vmatmul.mubr.bf16.gmra.mrb[0].mxu0 %v1707
    %v1805 = vpop.f32.mrb[0].mxu0
    %v1806 = vadd.f32 0.0, %v1805
    %v1807 = vpop.f32.mrb[0].mxu0
    %v1808 = vadd.f32 0.0, %v1807
    %v1809 = vpop.f32.mrb[0].mxu0
    %v1810 = vadd.f32 0.0, %v1809
    %v1811 = vpop.f32.mrb[0].mxu0
    %v1812 = vadd.f32 0.0, %v1811
    %1813 = vdwg.mxu0
    %1814 = vmatprep.subr.bf16.mxu0 %v1549
    %1815 = vmatpush1.bf16.msra.mxu0 %v1548
    %1816 = vmatprep.subr.bf16.mxu0 %v1553
    %1817 = vmatpush1.bf16.msra.mxu0 %v1552
    %1818 = vmatprep.subr.bf16.mxu0 %v1557
    %1819 = vmatpush1.bf16.msra.mxu0 %v1556
    %1820 = vmatprep.subr.bf16.mxu0 %v1561
    %1821 = vmatpush1.bf16.msra.mxu0 %v1560
    %1822 = vmatprep.subr.bf16.mxu0 %v1565
    %1823 = vmatpush1.bf16.msra.mxu0 %v1564
    %1824 = vmatprep.subr.bf16.mxu0 %v1569
    %1825 = vmatpush1.bf16.msra.mxu0 %v1568
    %1826 = vmatprep.subr.bf16.mxu0 %v1573
    %1827 = vmatpush1.bf16.msra.mxu0 %v1572
    %1828 = vmatprep.subr.bf16.mxu0 %v1577
    %1829 = vmatpush1.bf16.msra.mxu0 %v1576
    %1830 = vmatprep.subr.bf16.mxu0 %v1581
    %1831 = vmatpush1.bf16.msra.mxu0 %v1580
    %1832 = vmatprep.subr.bf16.mxu0 %v1585
    %1833 = vmatpush1.bf16.msra.mxu0 %v1584
    %1834 = vmatprep.subr.bf16.mxu0 %v1589
    %1835 = vmatpush1.bf16.msra.mxu0 %v1588
    %1836 = vmatprep.subr.bf16.mxu0 %v1593
    %1837 = vmatpush1.bf16.msra.mxu0 %v1592
    %1838 = vmatprep.subr.bf16.mxu0 %v1597
    %1839 = vmatpush1.bf16.msra.mxu0 %v1596
    %1840 = vmatprep.subr.bf16.mxu0 %v1601
    %1841 = vmatpush1.bf16.msra.mxu0 %v1600
    %1842 = vmatprep.subr.bf16.mxu0 %v1605
    %1843 = vmatpush1.bf16.msra.mxu0 %v1604
    %1844 = vmatprep.subr.bf16.mxu0 %v1609
    %1845 = vmatpush1.bf16.msra.mxu0 %v1608
    %1846 = vmatprep.mubr.bf16.mxu0 %v1695
    %1847 = vmatmul.mubr.bf16.gmra.mrb[0].mxu0 %v1694
    %v1848 = vpop.f32.mrb[0].mxu0
    %v1849 = vadd.f32 %v1776, %v1848
    %v1850 = vpop.f32.mrb[0].mxu0
    %v1851 = vadd.f32 %v1778, %v1850
    %v1852 = vpop.f32.mrb[0].mxu0
    %v1853 = vadd.f32 %v1780, %v1852
    %v1854 = vpop.f32.mrb[0].mxu0
    %v1855 = vadd.f32 %v1782, %v1854
    %1856 = vmatprep.mubr.bf16.mxu0 %v1700
    %1857 = vmatmul.mubr.bf16.gmra.mrb[0].mxu0 %v1699
    %v1858 = vpop.f32.mrb[0].mxu0
    %v1859 = vadd.f32 %v1786, %v1858
    %v1860 = vpop.f32.mrb[0].mxu0
    %v1861 = vadd.f32 %v1788, %v1860
    %v1862 = vpop.f32.mrb[0].mxu0
    %v1863 = vadd.f32 %v1790, %v1862
    %v1864 = vpop.f32.mrb[0].mxu0
    %v1865 = vadd.f32 %v1792, %v1864
    %1866 = vmatprep.mubr.bf16.mxu0 %v1705
    %1867 = vmatmul.mubr.bf16.gmra.mrb[0].mxu0 %v1704
    %v1868 = vpop.f32.mrb[0].mxu0
    %v1869 = vadd.f32 %v1796, %v1868
    %v1870 = vpop.f32.mrb[0].mxu0
    %v1871 = vadd.f32 %v1798, %v1870
    %v1872 = vpop.f32.mrb[0].mxu0
    %v1873 = vadd.f32 %v1800, %v1872
    %v1874 = vpop.f32.mrb[0].mxu0
    %v1875 = vadd.f32 %v1802, %v1874
    %1876 = vmatprep.mubr.bf16.mxu0 %v1710
    %1877 = vmatmul.mubr.bf16.gmra.mrb[0].mxu0 %v1709
    %v1878 = vpop.f32.mrb[0].mxu0
    %v1879 = vadd.f32 %v1806, %v1878
    %v1880 = vpop.f32.mrb[0].mxu0
    %v1881 = vadd.f32 %v1808, %v1880
    %v1882 = vpop.f32.mrb[0].mxu0
    %v1883 = vadd.f32 %v1810, %v1882
    %v1884 = vpop.f32.mrb[0].mxu0
    %v1885 = vadd.f32 %v1812, %v1884
    %1886 = vdwg.mxu0
    %1887 = vmatprep.subr.bf16.mxu0 %v1613
    %1888 = vmatpush1.bf16.msra.mxu0 %v1612
    %1889 = vmatprep.subr.bf16.mxu0 %v1617
    %1890 = vmatpush1.bf16.msra.mxu0 %v1616
    %1891 = vmatprep.subr.bf16.mxu0 %v1621
    %1892 = vmatpush1.bf16.msra.mxu0 %v1620
    %1893 = vmatprep.subr.bf16.mxu0 %v1625
    %1894 = vmatpush1.bf16.msra.mxu0 %v1624
    %1895 = vmatprep.subr.bf16.mxu0 0
    %1896 = vmatpush1.bf16.msra.mxu0 0
    %1897 = vmatprep.subr.bf16.mxu0 0
    %1898 = vmatpush1.bf16.msra.mxu0 0
    %1899 = vmatprep.subr.bf16.mxu0 0
    %1900 = vmatpush1.bf16.msra.mxu0 0
    %1901 = vmatprep.subr.bf16.mxu0 0
    %1902 = vmatpush1.bf16.msra.mxu0 0
    %1903 = vmatprep.subr.bf16.mxu0 0
    %1904 = vmatpush1.bf16.msra.mxu0 0
    %1905 = vmatprep.subr.bf16.mxu0 0
    %1906 = vmatpush1.bf16.msra.mxu0 0
    %1907 = vmatprep.subr.bf16.mxu0 0
    %1908 = vmatpush1.bf16.msra.mxu0 0
    %1909 = vmatprep.subr.bf16.mxu0 0
    %1910 = vmatpush1.bf16.msra.mxu0 0
    %1911 = vmatprep.subr.bf16.mxu0 0
    %1912 = vmatpush1.bf16.msra.mxu0 0
    %1913 = vmatprep.subr.bf16.mxu0 0
    %1914 = vmatpush1.bf16.msra.mxu0 0
    %1915 = vmatprep.subr.bf16.mxu0 0
    %1916 = vmatpush1.bf16.msra.mxu0 0
    %1917 = vmatprep.subr.bf16.mxu0 0
    %1918 = vmatpush1.bf16.msra.mxu0 0
    %1919 = vmatprep.mubr.bf16.mxu0 0
    %1920 = vmatmul.mubr.bf16.gmra.mrb[0].mxu0 %v1730
    %v1921 = vpop.f32.mrb[0].mxu0
    %v1922 = vadd.f32 %v1849, %v1921
    %v1923 = vpop.f32.mrb[0].mxu0
    %v1924 = vadd.f32 %v1851, %v1923
    %v1925 = vpop.f32.mrb[0].mxu0
    %v1926 = vadd.f32 %v1853, %v1925
    %v1927 = vpop.f32.mrb[0].mxu0
    %v1928 = vadd.f32 %v1855, %v1927
    %1929 = vmatprep.mubr.bf16.mxu0 0
    %1930 = vmatmul.mubr.bf16.gmra.mrb[0].mxu0 %v1733
    %v1931 = vpop.f32.mrb[0].mxu0
    %v1932 = vadd.f32 %v1859, %v1931
    %v1933 = vpop.f32.mrb[0].mxu0
    %v1934 = vadd.f32 %v1861, %v1933
    %v1935 = vpop.f32.mrb[0].mxu0
    %v1936 = vadd.f32 %v1863, %v1935
    %v1937 = vpop.f32.mrb[0].mxu0
    %v1938 = vadd.f32 %v1865, %v1937
    %1939 = vmatprep.mubr.bf16.mxu0 0
    %1940 = vmatmul.mubr.bf16.gmra.mrb[0].mxu0 %v1736
    %v1941 = vpop.f32.mrb[0].mxu0
    %v1942 = vadd.f32 %v1869, %v1941
    %v1943 = vpop.f32.mrb[0].mxu0
    %v1944 = vadd.f32 %v1871, %v1943
    %v1945 = vpop.f32.mrb[0].mxu0
    %v1946 = vadd.f32 %v1873, %v1945
    %v1947 = vpop.f32.mrb[0].mxu0
    %v1948 = vadd.f32 %v1875, %v1947
    %1949 = vmatprep.mubr.bf16.mxu0 0
    %1950 = vmatmul.mubr.bf16.gmra.mrb[0].mxu0 %v1739
    %v1951 = vpop.f32.mrb[0].mxu0
    %v1952 = vadd.f32 %v1879, %v1951
    %v1953 = vpop.f32.mrb[0].mxu0
    %v1954 = vadd.f32 %v1881, %v1953
    %v1955 = vpop.f32.mrb[0].mxu0
    %v1956 = vadd.f32 %v1883, %v1955
    %v1957 = vpop.f32.mrb[0].mxu0
    %v1958 = vadd.f32 %v1885, %v1957
    %1959 = vdwg.mxu0
    %1960 = vmatprep.subr.bf16.mxu0 %v1487
    %1961 = vmatpush1.bf16.msra.mxu0 %v1486
    %1962 = vmatprep.subr.bf16.mxu0 %v1491
    %1963 = vmatpush1.bf16.msra.mxu0 %v1490
    %1964 = vmatprep.subr.bf16.mxu0 %v1495
    %1965 = vmatpush1.bf16.msra.mxu0 %v1494
    %1966 = vmatprep.subr.bf16.mxu0 %v1499
    %1967 = vmatpush1.bf16.msra.mxu0 %v1498
    %1968 = vmatprep.subr.bf16.mxu0 %v1503
    %1969 = vmatpush1.bf16.msra.mxu0 %v1502
    %1970 = vmatprep.subr.bf16.mxu0 %v1507
    %1971 = vmatpush1.bf16.msra.mxu0 %v1506
    %1972 = vmatprep.subr.bf16.mxu0 %v1511
    %1973 = vmatpush1.bf16.msra.mxu0 %v1510
    %1974 = vmatprep.subr.bf16.mxu0 %v1515
    %1975 = vmatpush1.bf16.msra.mxu0 %v1514
    %1976 = vmatprep.subr.bf16.mxu0 %v1519
    %1977 = vmatpush1.bf16.msra.mxu0 %v1518
    %1978 = vmatprep.subr.bf16.mxu0 %v1523
    %1979 = vmatpush1.bf16.msra.mxu0 %v1522
    %1980 = vmatprep.subr.bf16.mxu0 %v1527
    %1981 = vmatpush1.bf16.msra.mxu0 %v1526
    %1982 = vmatprep.subr.bf16.mxu0 %v1531
    %1983 = vmatpush1.bf16.msra.mxu0 %v1530
    %1984 = vmatprep.subr.bf16.mxu0 %v1535
    %1985 = vmatpush1.bf16.msra.mxu0 %v1534
    %1986 = vmatprep.subr.bf16.mxu0 %v1539
    %1987 = vmatpush1.bf16.msra.mxu0 %v1538
    %1988 = vmatprep.subr.bf16.mxu0 %v1543
    %1989 = vmatpush1.bf16.msra.mxu0 %v1542
    %1990 = vmatprep.subr.bf16.mxu0 %v1547
    %1991 = vmatpush1.bf16.msra.mxu0 %v1546
    %1992 = vmatprep.mubr.bf16.mxu0 %v1693
    %1993 = vmatmul.mubr.bf16.gmra.mrb[0].mxu0 %v1692
    %v1994 = vpop.f32.mrb[0].mxu0
    %v1995 = vadd.f32 0.0, %v1994
    %v1996 = vpop.f32.mrb[0].mxu0
    %v1997 = vadd.f32 0.0, %v1996
    %v1998 = vpop.f32.mrb[0].mxu0
    %v1999 = vadd.f32 0.0, %v1998
    %v2000 = vpop.f32.mrb[0].mxu0
    %v2001 = vadd.f32 0.0, %v2000
    %2002 = vmatprep.mubr.bf16.mxu0 %v1698
    %2003 = vmatmul.mubr.bf16.gmra.mrb[0].mxu0 %v1697
    %v2004 = vpop.f32.mrb[0].mxu0
    %v2005 = vadd.f32 0.0, %v2004
    %v2006 = vpop.f32.mrb[0].mxu0
    %v2007 = vadd.f32 0.0, %v2006
    %v2008 = vpop.f32.mrb[0].mxu0
    %v2009 = vadd.f32 0.0, %v2008
    %v2010 = vpop.f32.mrb[0].mxu0
    %v2011 = vadd.f32 0.0, %v2010
    %2012 = vmatprep.mubr.bf16.mxu0 %v1703
    %2013 = vmatmul.mubr.bf16.gmra.mrb[0].mxu0 %v1702
    %v2014 = vpop.f32.mrb[0].mxu0
    %v2015 = vadd.f32 0.0, %v2014
    %v2016 = vpop.f32.mrb[0].mxu0
    %v2017 = vadd.f32 0.0, %v2016
    %v2018 = vpop.f32.mrb[0].mxu0
    %v2019 = vadd.f32 0.0, %v2018
    %v2020 = vpop.f32.mrb[0].mxu0
    %v2021 = vadd.f32 0.0, %v2020
    %2022 = vmatprep.mubr.bf16.mxu0 %v1708
    %2023 = vmatmul.mubr.bf16.gmra.mrb[0].mxu0 %v1707
    %v2024 = vpop.f32.mrb[0].mxu0
    %v2025 = vadd.f32 0.0, %v2024
    %v2026 = vpop.f32.mrb[0].mxu0
    %v2027 = vadd.f32 0.0, %v2026
    %v2028 = vpop.f32.mrb[0].mxu0
    %v2029 = vadd.f32 0.0, %v2028
    %v2030 = vpop.f32.mrb[0].mxu0
    %v2031 = vadd.f32 0.0, %v2030
    %2032 = vdwg.mxu0
    %2033 = vmatprep.subr.bf16.mxu0 %v1551
    %2034 = vmatpush1.bf16.msra.mxu0 %v1550
    %2035 = vmatprep.subr.bf16.mxu0 %v1555
    %2036 = vmatpush1.bf16.msra.mxu0 %v1554
    %2037 = vmatprep.subr.bf16.mxu0 %v1559
    %2038 = vmatpush1.bf16.msra.mxu0 %v1558
    %2039 = vmatprep.subr.bf16.mxu0 %v1563
    %2040 = vmatpush1.bf16.msra.mxu0 %v1562
    %2041 = vmatprep.subr.bf16.mxu0 %v1567
    %2042 = vmatpush1.bf16.msra.mxu0 %v1566
    %2043 = vmatprep.subr.bf16.mxu0 %v1571
    %2044 = vmatpush1.bf16.msra.mxu0 %v1570
    %2045 = vmatprep.subr.bf16.mxu0 %v1575
    %2046 = vmatpush1.bf16.msra.mxu0 %v1574
    %2047 = vmatprep.subr.bf16.mxu0 %v1579
    %2048 = vmatpush1.bf16.msra.mxu0 %v1578
    %2049 = vmatprep.subr.bf16.mxu0 %v1583
    %2050 = vmatpush1.bf16.msra.mxu0 %v1582
    %2051 = vmatprep.subr.bf16.mxu0 %v1587
    %2052 = vmatpush1.bf16.msra.mxu0 %v1586
    %2053 = vmatprep.subr.bf16.mxu0 %v1591
    %2054 = vmatpush1.bf16.msra.mxu0 %v1590
    %2055 = vmatprep.subr.bf16.mxu0 %v1595
    %2056 = vmatpush1.bf16.msra.mxu0 %v1594
    %2057 = vmatprep.subr.bf16.mxu0 %v1599
    %2058 = vmatpush1.bf16.msra.mxu0 %v1598
    %2059 = vmatprep.subr.bf16.mxu0 %v1603
    %2060 = vmatpush1.bf16.msra.mxu0 %v1602
    %2061 = vmatprep.subr.bf16.mxu0 %v1607
    %2062 = vmatpush1.bf16.msra.mxu0 %v1606
    %2063 = vmatprep.subr.bf16.mxu0 %v1611
    %2064 = vmatpush1.bf16.msra.mxu0 %v1610
    %2065 = vmatprep.mubr.bf16.mxu0 %v1695
    %2066 = vmatmul.mubr.bf16.gmra.mrb[0].mxu0 %v1694
    %v2067 = vpop.f32.mrb[0].mxu0
    %v2068 = vadd.f32 %v1995, %v2067
    %v2069 = vpop.f32.mrb[0].mxu0
    %v2070 = vadd.f32 %v1997, %v2069
    %v2071 = vpop.f32.mrb[0].mxu0
    %v2072 = vadd.f32 %v1999, %v2071
    %v2073 = vpop.f32.mrb[0].mxu0
    %v2074 = vadd.f32 %v2001, %v2073
    %2075 = vmatprep.mubr.bf16.mxu0 %v1700
    %2076 = vmatmul.mubr.bf16.gmra.mrb[0].mxu0 %v1699
    %v2077 = vpop.f32.mrb[0].mxu0
    %v2078 = vadd.f32 %v2005, %v2077
    %v2079 = vpop.f32.mrb[0].mxu0
    %v2080 = vadd.f32 %v2007, %v2079
    %v2081 = vpop.f32.mrb[0].mxu0
    %v2082 = vadd.f32 %v2009, %v2081
    %v2083 = vpop.f32.mrb[0].mxu0
    %v2084 = vadd.f32 %v2011, %v2083
    %2085 = vmatprep.mubr.bf16.mxu0 %v1705
    %2086 = vmatmul.mubr.bf16.gmra.mrb[0].mxu0 %v1704
    %v2087 = vpop.f32.mrb[0].mxu0
    %v2088 = vadd.f32 %v2015, %v2087
    %v2089 = vpop.f32.mrb[0].mxu0
    %v2090 = vadd.f32 %v2017, %v2089
    %v2091 = vpop.f32.mrb[0].mxu0
    %v2092 = vadd.f32 %v2019, %v2091
    %v2093 = vpop.f32.mrb[0].mxu0
    %v2094 = vadd.f32 %v2021, %v2093
    %2095 = vmatprep.mubr.bf16.mxu0 %v1710
    %2096 = vmatmul.mubr.bf16.gmra.mrb[0].mxu0 %v1709
    %v2097 = vpop.f32.mrb[0].mxu0
    %v2098 = vadd.f32 %v2025, %v2097
    %v2099 = vpop.f32.mrb[0].mxu0
    %v2100 = vadd.f32 %v2027, %v2099
    %v2101 = vpop.f32.mrb[0].mxu0
    %v2102 = vadd.f32 %v2029, %v2101
    %v2103 = vpop.f32.mrb[0].mxu0
    %v2104 = vadd.f32 %v2031, %v2103
    %2105 = vdwg.mxu0
    %2106 = vmatprep.subr.bf16.mxu0 %v1615
    %2107 = vmatpush1.bf16.msra.mxu0 %v1614
    %2108 = vmatprep.subr.bf16.mxu0 %v1619
    %2109 = vmatpush1.bf16.msra.mxu0 %v1618
    %2110 = vmatprep.subr.bf16.mxu0 %v1623
    %2111 = vmatpush1.bf16.msra.mxu0 %v1622
    %2112 = vmatprep.subr.bf16.mxu0 %v1627
    %2113 = vmatpush1.bf16.msra.mxu0 %v1626
    %2114 = vmatprep.subr.bf16.mxu0 0
    %2115 = vmatpush1.bf16.msra.mxu0 0
    %2116 = vmatprep.subr.bf16.mxu0 0
    %2117 = vmatpush1.bf16.msra.mxu0 0
    %2118 = vmatprep.subr.bf16.mxu0 0
    %2119 = vmatpush1.bf16.msra.mxu0 0
    %2120 = vmatprep.subr.bf16.mxu0 0
    %2121 = vmatpush1.bf16.msra.mxu0 0
    %2122 = vmatprep.subr.bf16.mxu0 0
    %2123 = vmatpush1.bf16.msra.mxu0 0
    %2124 = vmatprep.subr.bf16.mxu0 0
    %2125 = vmatpush1.bf16.msra.mxu0 0
    %2126 = vmatprep.subr.bf16.mxu0 0
    %2127 = vmatpush1.bf16.msra.mxu0 0
    %2128 = vmatprep.subr.bf16.mxu0 0
    %2129 = vmatpush1.bf16.msra.mxu0 0
    %2130 = vmatprep.subr.bf16.mxu0 0
    %2131 = vmatpush1.bf16.msra.mxu0 0
    %2132 = vmatprep.subr.bf16.mxu0 0
    %2133 = vmatpush1.bf16.msra.mxu0 0
    %2134 = vmatprep.subr.bf16.mxu0 0
    %2135 = vmatpush1.bf16.msra.mxu0 0
    %2136 = vmatprep.subr.bf16.mxu0 0
    %2137 = vmatpush1.bf16.msra.mxu0 0
    %2138 = vmatprep.mubr.bf16.mxu0 0
    %2139 = vmatmul.mubr.bf16.gmra.mrb[0].mxu0 %v1730
    %v2140 = vpop.f32.mrb[0].mxu0
    %v2141 = vadd.f32 %v2068, %v2140
    %v2142 = vpop.f32.mrb[0].mxu0
    %v2143 = vadd.f32 %v2070, %v2142
    %v2144 = vpop.f32.mrb[0].mxu0
    %v2145 = vadd.f32 %v2072, %v2144
    %v2146 = vpop.f32.mrb[0].mxu0
    %v2147 = vadd.f32 %v2074, %v2146
    %2148 = vmatprep.mubr.bf16.mxu0 0
    %2149 = vmatmul.mubr.bf16.gmra.mrb[0].mxu0 %v1733
    %v2150 = vpop.f32.mrb[0].mxu0
    %v2151 = vadd.f32 %v2078, %v2150
    %v2152 = vpop.f32.mrb[0].mxu0
    %v2153 = vadd.f32 %v2080, %v2152
    %v2154 = vpop.f32.mrb[0].mxu0
    %v2155 = vadd.f32 %v2082, %v2154
    %v2156 = vpop.f32.mrb[0].mxu0
    %v2157 = vadd.f32 %v2084, %v2156
    %2158 = vmatprep.mubr.bf16.mxu0 0
    %2159 = vmatmul.mubr.bf16.gmra.mrb[0].mxu0 %v1736
    %v2160 = vpop.f32.mrb[0].mxu0
    %v2161 = vadd.f32 %v2088, %v2160
    %v2162 = vpop.f32.mrb[0].mxu0
    %v2163 = vadd.f32 %v2090, %v2162
    %v2164 = vpop.f32.mrb[0].mxu0
    %v2165 = vadd.f32 %v2092, %v2164
    %v2166 = vpop.f32.mrb[0].mxu0
    %v2167 = vadd.f32 %v2094, %v2166
    %2168 = vmatprep.mubr.bf16.mxu0 0
    %2169 = vmatmul.mubr.bf16.gmra.mrb[0].mxu0 %v1739
    %v2170 = vpop.f32.mrb[0].mxu0
    %v2171 = vadd.f32 %v2098, %v2170
    %v2172 = vpop.f32.mrb[0].mxu0
    %v2173 = vadd.f32 %v2100, %v2172
    %v2174 = vpop.f32.mrb[0].mxu0
    %v2175 = vadd.f32 %v2102, %v2174
    %v2176 = vpop.f32.mrb[0].mxu0
    %v2177 = vadd.f32 %v2104, %v2176
    %2178 = vdwg.mxu0
    %v2179 = vadd.f32 %v1922, %v1924
    %v2180 = vadd.f32 %v2179, %v2141
    %v2181 = vadd.f32 %v2180, %v2143
    %2182 = vadd.xlane.f32.xlu0 %v2181
    %v2183 = vpop.xlane.xlu0 %2182
    %v2184 = vadd.f32 %v1926, %v1928
    %v2185 = vadd.f32 %v2184, %v2145
    %v2186 = vadd.f32 %v2185, %v2147
    %2187 = vadd.xlane.f32.xlu0 %v2186
    %v2188 = vpop.xlane.xlu0 %2187
    %v2189 = vadd.f32 %v1932, %v1934
    %v2190 = vadd.f32 %v2189, %v2151
    %v2191 = vadd.f32 %v2190, %v2153
    %2192 = vadd.xlane.f32.xlu0 %v2191
    %v2193 = vpop.xlane.xlu0 %2192
    %v2194 = vadd.f32 %v1936, %v1938
    %v2195 = vadd.f32 %v2194, %v2155
    %v2196 = vadd.f32 %v2195, %v2157
    %2197 = vadd.xlane.f32.xlu0 %v2196
    %v2198 = vpop.xlane.xlu0 %2197
    %v2199 = vadd.f32 %v1942, %v1944
    %v2200 = vadd.f32 %v2199, %v2161
    %v2201 = vadd.f32 %v2200, %v2163
    %2202 = vadd.xlane.f32.xlu0 %v2201
    %v2203 = vpop.xlane.xlu0 %2202
    %v2204 = vadd.f32 %v1946, %v1948
    %v2205 = vadd.f32 %v2204, %v2165
    %v2206 = vadd.f32 %v2205, %v2167
    %2207 = vadd.xlane.f32.xlu0 %v2206
    %v2208 = vpop.xlane.xlu0 %2207
    %v2209 = vadd.f32 %v1952, %v1954
    %v2210 = vadd.f32 %v2209, %v2171
    %v2211 = vadd.f32 %v2210, %v2173
    %2212 = vadd.xlane.f32.xlu0 %v2211
    %v2213 = vpop.xlane.xlu0 %2212
    %v2214 = vadd.f32 %v1956, %v1958
    %v2215 = vadd.f32 %v2214, %v2175
    %v2216 = vadd.f32 %v2215, %v2177
    %2217 = vadd.xlane.f32.xlu0 %v2216
    %v2218 = vpop.xlane.xlu0 %2217
    %v2219 = vmul.f32 %v1922, %v1922
    %v2220 = vmul.f32 %v1924, %v1924
    %v2221 = vmul.f32 %v2141, %v2141
    %v2222 = vmul.f32 %v2143, %v2143
    %v2223 = vmul.f32 %v1926, %v1926
    %v2224 = vmul.f32 %v1928, %v1928
    %v2225 = vmul.f32 %v2145, %v2145
    %v2226 = vmul.f32 %v2147, %v2147
    %v2227 = vmul.f32 %v1932, %v1932
    %v2228 = vmul.f32 %v1934, %v1934
    %v2229 = vmul.f32 %v2151, %v2151
    %v2230 = vmul.f32 %v2153, %v2153
    %v2231 = vmul.f32 %v1936, %v1936
    %v2232 = vmul.f32 %v1938, %v1938
    %v2233 = vmul.f32 %v2155, %v2155
    %v2234 = vmul.f32 %v2157, %v2157
    %v2235 = vmul.f32 %v1942, %v1942
    %v2236 = vmul.f32 %v1944, %v1944
    %v2237 = vmul.f32 %v2161, %v2161
    %v2238 = vmul.f32 %v2163, %v2163
    %v2239 = vmul.f32 %v1946, %v1946
    %v2240 = vmul.f32 %v1948, %v1948
    %v2241 = vmul.f32 %v2165, %v2165
    %v2242 = vmul.f32 %v2167, %v2167
    %v2243 = vmul.f32 %v1952, %v1952
    %v2244 = vmul.f32 %v1954, %v1954
    %v2245 = vmul.f32 %v2171, %v2171
    %v2246 = vmul.f32 %v2173, %v2173
    %v2247 = vmul.f32 %v1956, %v1956
    %v2248 = vmul.f32 %v1958, %v1958
    %v2249 = vmul.f32 %v2175, %v2175
    %v2250 = vmul.f32 %v2177, %v2177
    %v2251 = vadd.f32 %v2219, %v2220
    %v2252 = vadd.f32 %v2251, %v2221
    %v2253 = vadd.f32 %v2252, %v2222
    %2254 = vadd.xlane.f32.xlu0 %v2253
    %v2255 = vpop.xlane.xlu0 %2254
    %v2256 = vadd.f32 %v2223, %v2224
    %v2257 = vadd.f32 %v2256, %v2225
    %v2258 = vadd.f32 %v2257, %v2226
    %2259 = vadd.xlane.f32.xlu0 %v2258
    %v2260 = vpop.xlane.xlu0 %2259
    %v2261 = vadd.f32 %v2227, %v2228
    %v2262 = vadd.f32 %v2261, %v2229
    %v2263 = vadd.f32 %v2262, %v2230
    %2264 = vadd.xlane.f32.xlu0 %v2263
    %v2265 = vpop.xlane.xlu0 %2264
    %v2266 = vadd.f32 %v2231, %v2232
    %v2267 = vadd.f32 %v2266, %v2233
    %v2268 = vadd.f32 %v2267, %v2234
    %2269 = vadd.xlane.f32.xlu0 %v2268
    %v2270 = vpop.xlane.xlu0 %2269
    %v2271 = vadd.f32 %v2235, %v2236
    %v2272 = vadd.f32 %v2271, %v2237
    %v2273 = vadd.f32 %v2272, %v2238
    %2274 = vadd.xlane.f32.xlu0 %v2273
    %v2275 = vpop.xlane.xlu0 %2274
    %v2276 = vadd.f32 %v2239, %v2240
    %v2277 = vadd.f32 %v2276, %v2241
    %v2278 = vadd.f32 %v2277, %v2242
    %2279 = vadd.xlane.f32.xlu0 %v2278
    %v2280 = vpop.xlane.xlu0 %2279
    %v2281 = vadd.f32 %v2243, %v2244
    %v2282 = vadd.f32 %v2281, %v2245
    %v2283 = vadd.f32 %v2282, %v2246
    %2284 = vadd.xlane.f32.xlu0 %v2283
    %v2285 = vpop.xlane.xlu0 %2284
    %v2286 = vadd.f32 %v2247, %v2248
    %v2287 = vadd.f32 %v2286, %v2249
    %v2288 = vadd.f32 %v2287, %v2250
    %2289 = vadd.xlane.f32.xlu0 %v2288
    %v2290 = vpop.xlane.xlu0 %2289
    %v2291 = vmul.f32 %v2183, 0.001953125
    %v2292 = vmul.f32 %v2188, 0.001953125
    %v2293 = vmul.f32 %v2193, 0.001953125
    %v2294 = vmul.f32 %v2198, 0.001953125
    %v2295 = vmul.f32 %v2203, 0.001953125
    %v2296 = vmul.f32 %v2208, 0.001953125
    %v2297 = vmul.f32 %v2213, 0.001953125
    %v2298 = vmul.f32 %v2218, 0.001953125
    %v2299 = vmul.f32 %v2255, 0.001953125
    %v2300 = vmul.f32 %v2260, 0.001953125
    %v2301 = vmul.f32 %v2265, 0.001953125
    %v2302 = vmul.f32 %v2270, 0.001953125
    %v2303 = vmul.f32 %v2275, 0.001953125
    %v2304 = vmul.f32 %v2280, 0.001953125
    %v2305 = vmul.f32 %v2285, 0.001953125
    %v2306 = vmul.f32 %v2290, 0.001953125
    %v2307 = vmul.f32 %v2291, %v2291
    %v2308 = vmul.f32 %v2292, %v2292
    %v2309 = vmul.f32 %v2293, %v2293
    %v2310 = vmul.f32 %v2294, %v2294
    %v2311 = vmul.f32 %v2295, %v2295
    %v2312 = vmul.f32 %v2296, %v2296
    %v2313 = vmul.f32 %v2297, %v2297
    %v2314 = vmul.f32 %v2298, %v2298
    %v2315 = vsub.f32 %v2299, %v2307
    %v2316 = vsub.f32 %v2300, %v2308
    %v2317 = vsub.f32 %v2301, %v2309
    %v2318 = vsub.f32 %v2302, %v2310
    %v2319 = vsub.f32 %v2303, %v2311
    %v2320 = vsub.f32 %v2304, %v2312
    %v2321 = vsub.f32 %v2305, %v2313
    %v2322 = vsub.f32 %v2306, %v2314
    %v2323 = vld [vmem:[%s2] sm:$0xff]
    %v2324 = vld [vmem:[%s2 + $0x8] sm:$0xff]
    %v2325 = vld [vmem:[%s2 + $0x10] sm:$0xff]
    %v2326 = vld [vmem:[%s2 + $0x18] sm:$0xff]
    %v2327 = vld [vmem:[%s2 + $0x20] sm:$0xff]
    %v2328 = vld [vmem:[%s2 + $0x28] sm:$0xff]
    %v2329 = vld [vmem:[%s2 + $0x30] sm:$0xff]
    %v2330 = vld [vmem:[%s2 + $0x38] sm:$0xff]
    %v2331 = vadd.f32 %v2315, 1e-05
    %v2332 = vadd.f32 %v2316, 1e-05
    %v2333 = vadd.f32 %v2317, 1e-05
    %v2334 = vadd.f32 %v2318, 1e-05
    %v2335 = vadd.f32 %v2319, 1e-05
    %v2336 = vadd.f32 %v2320, 1e-05
    %v2337 = vadd.f32 %v2321, 1e-05
    %v2338 = vadd.f32 %v2322, 1e-05
    %v2339 = vrsqrt.pop %v2331
    %v2340 = vrsqrt.pop %v2332
    %v2341 = vrsqrt.pop %v2333
    %v2342 = vrsqrt.pop %v2334
    %v2343 = vrsqrt.pop %v2335
    %v2344 = vrsqrt.pop %v2336
    %v2345 = vrsqrt.pop %v2337
    %v2346 = vrsqrt.pop %v2338
    %v2347 = vmul.f32 %v2323, %v2339
    %v2348 = vmul.f32 %v2324, %v2340
    %v2349 = vmul.f32 %v2325, %v2341
    %v2350 = vmul.f32 %v2326, %v2342
    %v2351 = vmul.f32 %v2327, %v2343
    %v2352 = vmul.f32 %v2328, %v2344
    %v2353 = vmul.f32 %v2329, %v2345
    %v2354 = vmul.f32 %v2330, %v2346
    %v2355 = vld [vmem:[%s3] sm:$0xff]
    %v2356 = vld [vmem:[%s3 + $0x8] sm:$0xff]
    %v2357 = vld [vmem:[%s3 + $0x10] sm:$0xff]
    %v2358 = vld [vmem:[%s3 + $0x18] sm:$0xff]
    %v2359 = vld [vmem:[%s3 + $0x20] sm:$0xff]
    %v2360 = vld [vmem:[%s3 + $0x28] sm:$0xff]
    %v2361 = vld [vmem:[%s3 + $0x30] sm:$0xff]
    %v2362 = vld [vmem:[%s3 + $0x38] sm:$0xff]
    %v2363 = vmul.f32 %v2291, %v2347
    %v2364 = vmul.f32 %v2292, %v2348
    %v2365 = vmul.f32 %v2293, %v2349
    %v2366 = vmul.f32 %v2294, %v2350
    %v2367 = vmul.f32 %v2295, %v2351
    %v2368 = vmul.f32 %v2296, %v2352
    %v2369 = vmul.f32 %v2297, %v2353
    %v2370 = vmul.f32 %v2298, %v2354
    %v2371 = vsub.f32 %v2355, %v2363
    %v2372 = vsub.f32 %v2356, %v2364
    %v2373 = vsub.f32 %v2357, %v2365
    %v2374 = vsub.f32 %v2358, %v2366
    %v2375 = vsub.f32 %v2359, %v2367
    %v2376 = vsub.f32 %v2360, %v2368
    %v2377 = vsub.f32 %v2361, %v2369
    %v2378 = vsub.f32 %v2362, %v2370
    %2380 = vset.pattern.permute.xlu0 0
    %2381 = vperm.xlu0 %2380, %v2347
    %v2382 = vpop.permute.xlu0 %2381
    %2385 = vset.pattern.permute.xlu0 0
    %2386 = vperm.xlu0 %2385, %v2348
    %v2387 = vpop.permute.xlu0 %2386
    %2390 = vset.pattern.permute.xlu0 0
    %2391 = vperm.xlu0 %2390, %v2349
    %v2392 = vpop.permute.xlu0 %2391
    %2395 = vset.pattern.permute.xlu0 0
    %2396 = vperm.xlu0 %2395, %v2350
    %v2397 = vpop.permute.xlu0 %2396
    %2400 = vset.pattern.permute.xlu0 0
    %2401 = vperm.xlu0 %2400, %v2351
    %v2402 = vpop.permute.xlu0 %2401
    %2405 = vset.pattern.permute.xlu0 0
    %2406 = vperm.xlu0 %2405, %v2352
    %v2407 = vpop.permute.xlu0 %2406
    %2410 = vset.pattern.permute.xlu0 0
    %2411 = vperm.xlu0 %2410, %v2353
    %v2412 = vpop.permute.xlu0 %2411
    %2415 = vset.pattern.permute.xlu0 0
    %2416 = vperm.xlu0 %2415, %v2354
    %v2417 = vpop.permute.xlu0 %2416
    %v2419 = vmul.f32 %v1922, %v2382
    %v2420 = vmul.f32 %v1924, %v2382
    %v2421 = vmul.f32 %v2141, %v2382
    %v2422 = vmul.f32 %v2143, %v2382
    %v2423 = vmul.f32 %v1926, %v2387
    %v2424 = vmul.f32 %v1928, %v2387
    %v2425 = vmul.f32 %v2145, %v2387
    %v2426 = vmul.f32 %v2147, %v2387
    %v2427 = vmul.f32 %v1932, %v2392
    %v2428 = vmul.f32 %v1934, %v2392
    %v2429 = vmul.f32 %v2151, %v2392
    %v2430 = vmul.f32 %v2153, %v2392
    %v2431 = vmul.f32 %v1936, %v2397
    %v2432 = vmul.f32 %v1938, %v2397
    %v2433 = vmul.f32 %v2155, %v2397
    %v2434 = vmul.f32 %v2157, %v2397
    %v2435 = vmul.f32 %v1942, %v2402
    %v2436 = vmul.f32 %v1944, %v2402
    %v2437 = vmul.f32 %v2161, %v2402
    %v2438 = vmul.f32 %v2163, %v2402
    %v2439 = vmul.f32 %v1946, %v2407
    %v2440 = vmul.f32 %v1948, %v2407
    %v2441 = vmul.f32 %v2165, %v2407
    %v2442 = vmul.f32 %v2167, %v2407
    %v2443 = vmul.f32 %v1952, %v2412
    %v2444 = vmul.f32 %v1954, %v2412
    %v2445 = vmul.f32 %v2171, %v2412
    %v2446 = vmul.f32 %v2173, %v2412
    %v2447 = vmul.f32 %v1956, %v2417
    %v2448 = vmul.f32 %v1958, %v2417
    %v2449 = vmul.f32 %v2175, %v2417
    %v2450 = vmul.f32 %v2177, %v2417
    %2452 = vset.pattern.permute.xlu0 0
    %2453 = vperm.xlu0 %2452, %v2371
    %v2454 = vpop.permute.xlu0 %2453
    %2457 = vset.pattern.permute.xlu0 0
    %2458 = vperm.xlu0 %2457, %v2372
    %v2459 = vpop.permute.xlu0 %2458
    %2462 = vset.pattern.permute.xlu0 0
    %2463 = vperm.xlu0 %2462, %v2373
    %v2464 = vpop.permute.xlu0 %2463
    %2467 = vset.pattern.permute.xlu0 0
    %2468 = vperm.xlu0 %2467, %v2374
    %v2469 = vpop.permute.xlu0 %2468
    %2472 = vset.pattern.permute.xlu0 0
    %2473 = vperm.xlu0 %2472, %v2375
    %v2474 = vpop.permute.xlu0 %2473
    %2477 = vset.pattern.permute.xlu0 0
    %2478 = vperm.xlu0 %2477, %v2376
    %v2479 = vpop.permute.xlu0 %2478
    %2482 = vset.pattern.permute.xlu0 0
    %2483 = vperm.xlu0 %2482, %v2377
    %v2484 = vpop.permute.xlu0 %2483
    %2487 = vset.pattern.permute.xlu0 0
    %2488 = vperm.xlu0 %2487, %v2378
    %v2489 = vpop.permute.xlu0 %2488
    %v2491 = vadd.f32 %v2419, %v2454
    %v2492 = vadd.f32 %v2420, %v2454
    %v2493 = vadd.f32 %v2421, %v2454
    %v2494 = vadd.f32 %v2422, %v2454
    %v2495 = vadd.f32 %v2423, %v2459
    %v2496 = vadd.f32 %v2424, %v2459
    %v2497 = vadd.f32 %v2425, %v2459
    %v2498 = vadd.f32 %v2426, %v2459
    %v2499 = vadd.f32 %v2427, %v2464
    %v2500 = vadd.f32 %v2428, %v2464
    %v2501 = vadd.f32 %v2429, %v2464
    %v2502 = vadd.f32 %v2430, %v2464
    %v2503 = vadd.f32 %v2431, %v2469
    %v2504 = vadd.f32 %v2432, %v2469
    %v2505 = vadd.f32 %v2433, %v2469
    %v2506 = vadd.f32 %v2434, %v2469
    %v2507 = vadd.f32 %v2435, %v2474
    %v2508 = vadd.f32 %v2436, %v2474
    %v2509 = vadd.f32 %v2437, %v2474
    %v2510 = vadd.f32 %v2438, %v2474
    %v2511 = vadd.f32 %v2439, %v2479
    %v2512 = vadd.f32 %v2440, %v2479
    %v2513 = vadd.f32 %v2441, %v2479
    %v2514 = vadd.f32 %v2442, %v2479
    %v2515 = vadd.f32 %v2443, %v2484
    %v2516 = vadd.f32 %v2444, %v2484
    %v2517 = vadd.f32 %v2445, %v2484
    %v2518 = vadd.f32 %v2446, %v2484
    %v2519 = vadd.f32 %v2447, %v2489
    %v2520 = vadd.f32 %v2448, %v2489
    %v2521 = vadd.f32 %v2449, %v2489
    %v2522 = vadd.f32 %v2450, %v2489
    %vm2523 = vcmp.ge.f32.partialorder %v2491, 0.0
    %vm2524 = vcmp.ge.f32.partialorder %v2492, 0.0
    %vm2525 = vcmp.ge.f32.partialorder %v2493, 0.0
    %vm2526 = vcmp.ge.f32.partialorder %v2494, 0.0
    %vm2527 = vcmp.ge.f32.partialorder %v2495, 0.0
    %vm2528 = vcmp.ge.f32.partialorder %v2496, 0.0
    %vm2529 = vcmp.ge.f32.partialorder %v2497, 0.0
    %vm2530 = vcmp.ge.f32.partialorder %v2498, 0.0
    %vm2531 = vcmp.ge.f32.partialorder %v2499, 0.0
    %vm2532 = vcmp.ge.f32.partialorder %v2500, 0.0
    %vm2533 = vcmp.ge.f32.partialorder %v2501, 0.0
    %vm2534 = vcmp.ge.f32.partialorder %v2502, 0.0
    %vm2535 = vcmp.ge.f32.partialorder %v2503, 0.0
    %vm2536 = vcmp.ge.f32.partialorder %v2504, 0.0
    %vm2537 = vcmp.ge.f32.partialorder %v2505, 0.0
    %vm2538 = vcmp.ge.f32.partialorder %v2506, 0.0
    %vm2539 = vcmp.ge.f32.partialorder %v2507, 0.0
    %vm2540 = vcmp.ge.f32.partialorder %v2508, 0.0
    %vm2541 = vcmp.ge.f32.partialorder %v2509, 0.0
    %vm2542 = vcmp.ge.f32.partialorder %v2510, 0.0
    %vm2543 = vcmp.ge.f32.partialorder %v2511, 0.0
    %vm2544 = vcmp.ge.f32.partialorder %v2512, 0.0
    %vm2545 = vcmp.ge.f32.partialorder %v2513, 0.0
    %vm2546 = vcmp.ge.f32.partialorder %v2514, 0.0
    %vm2547 = vcmp.ge.f32.partialorder %v2515, 0.0
    %vm2548 = vcmp.ge.f32.partialorder %v2516, 0.0
    %vm2549 = vcmp.ge.f32.partialorder %v2517, 0.0
    %vm2550 = vcmp.ge.f32.partialorder %v2518, 0.0
    %vm2551 = vcmp.ge.f32.partialorder %v2519, 0.0
    %vm2552 = vcmp.ge.f32.partialorder %v2520, 0.0
    %vm2553 = vcmp.ge.f32.partialorder %v2521, 0.0
    %vm2554 = vcmp.ge.f32.partialorder %v2522, 0.0
    %v2555 = vld [vmem:[#allocation4] sm:$0x1]
    %v2557 = vlaneseq
    %v2558 = vshrl.u32 %v2557, 7
    %v2559 = vsub.s32 0, %v2558
    %v2560 = vrot.slane %v2555, %v2559
    %2561 = vset.pattern.permute.xlu0 0
    %2562 = vperm.xlu0 %2561, %v2560
    %v2563 = vpop.permute.xlu0 %2562
    %v2565 = vmul.f32 %v2563, %v2491
    %v2566 = vmul.f32 %v2563, %v2492
    %v2567 = vmul.f32 %v2563, %v2493
    %v2568 = vmul.f32 %v2563, %v2494
    %v2569 = vmul.f32 %v2563, %v2495
    %v2570 = vmul.f32 %v2563, %v2496
    %v2571 = vmul.f32 %v2563, %v2497
    %v2572 = vmul.f32 %v2563, %v2498
    %v2573 = vmul.f32 %v2563, %v2499
    %v2574 = vmul.f32 %v2563, %v2500
    %v2575 = vmul.f32 %v2563, %v2501
    %v2576 = vmul.f32 %v2563, %v2502
    %v2577 = vmul.f32 %v2563, %v2503
    %v2578 = vmul.f32 %v2563, %v2504
    %v2579 = vmul.f32 %v2563, %v2505
    %v2580 = vmul.f32 %v2563, %v2506
    %v2581 = vmul.f32 %v2563, %v2507
    %v2582 = vmul.f32 %v2563, %v2508
    %v2583 = vmul.f32 %v2563, %v2509
    %v2584 = vmul.f32 %v2563, %v2510
    %v2585 = vmul.f32 %v2563, %v2511
    %v2586 = vmul.f32 %v2563, %v2512
    %v2587 = vmul.f32 %v2563, %v2513
    %v2588 = vmul.f32 %v2563, %v2514
    %v2589 = vmul.f32 %v2563, %v2515
    %v2590 = vmul.f32 %v2563, %v2516
    %v2591 = vmul.f32 %v2563, %v2517
    %v2592 = vmul.f32 %v2563, %v2518
    %v2593 = vmul.f32 %v2563, %v2519
    %v2594 = vmul.f32 %v2563, %v2520
    %v2595 = vmul.f32 %v2563, %v2521
    %v2596 = vmul.f32 %v2563, %v2522
    %v2597 = vsel %vm2523, %v2491, %v2565
    %v2598 = vsel %vm2524, %v2492, %v2566
    %v2599 = vsel %vm2525, %v2493, %v2567
    %v2600 = vsel %vm2526, %v2494, %v2568
    %v2601 = vsel %vm2527, %v2495, %v2569
    %v2602 = vsel %vm2528, %v2496, %v2570
    %v2603 = vsel %vm2529, %v2497, %v2571
    %v2604 = vsel %vm2530, %v2498, %v2572
    %v2605 = vsel %vm2531, %v2499, %v2573
    %v2606 = vsel %vm2532, %v2500, %v2574
    %v2607 = vsel %vm2533, %v2501, %v2575
    %v2608 = vsel %vm2534, %v2502, %v2576
    %v2609 = vsel %vm2535, %v2503, %v2577
    %v2610 = vsel %vm2536, %v2504, %v2578
    %v2611 = vsel %vm2537, %v2505, %v2579
    %v2612 = vsel %vm2538, %v2506, %v2580
    %v2613 = vsel %vm2539, %v2507, %v2581
    %v2614 = vsel %vm2540, %v2508, %v2582
    %v2615 = vsel %vm2541, %v2509, %v2583
    %v2616 = vsel %vm2542, %v2510, %v2584
    %v2617 = vsel %vm2543, %v2511, %v2585
    %v2618 = vsel %vm2544, %v2512, %v2586
    %v2619 = vsel %vm2545, %v2513, %v2587
    %v2620 = vsel %vm2546, %v2514, %v2588
    %v2621 = vsel %vm2547, %v2515, %v2589
    %v2622 = vsel %vm2548, %v2516, %v2590
    %v2623 = vsel %vm2549, %v2517, %v2591
    %v2624 = vsel %vm2550, %v2518, %v2592
    %v2625 = vsel %vm2551, %v2519, %v2593
    %v2626 = vsel %vm2552, %v2520, %v2594
    %v2627 = vsel %vm2553, %v2521, %v2595
    %v2628 = vsel %vm2554, %v2522, %v2596
    %v2629 = vpack.c.bf16 %v2601, %v2597
    %v2630 = vpack.c.bf16 %v2602, %v2598
    %v2631 = vpack.c.bf16 %v2609, %v2605
    %v2632 = vpack.c.bf16 %v2610, %v2606
    %v2633 = vpack.c.bf16 %v2617, %v2613
    %v2634 = vpack.c.bf16 %v2618, %v2614
    %v2635 = vpack.c.bf16 %v2625, %v2621
    %v2636 = vpack.c.bf16 %v2626, %v2622
    %2637 = vst [vmem:[#allocation2 + $0x8] sm:$0xff] %v2629
    %2638 = vst [vmem:[#allocation2 + $0x10] sm:$0xff] %v2630
    %2639 = vst [vmem:[#allocation2 + $0x28] sm:$0xff] %v2631
    %2640 = vst [vmem:[#allocation2 + $0x30] sm:$0xff] %v2632
    %2641 = vst [vmem:[#allocation2 + $0x48] sm:$0xff] %v2633
    %2642 = vst [vmem:[#allocation2 + $0x50] sm:$0xff] %v2634
    %2643 = vst [vmem:[#allocation2 + $0x68] sm:$0xff] %v2635
    %2644 = vst [vmem:[#allocation2 + $0x70] sm:$0xff] %v2636
    %v2645 = vpack.c.bf16 %v2603, %v2599
    %v2646 = vpack.c.bf16 %v2604, %v2600
    %v2647 = vpack.c.bf16 %v2611, %v2607
    %v2648 = vpack.c.bf16 %v2612, %v2608
    %v2649 = vpack.c.bf16 %v2619, %v2615
    %v2650 = vpack.c.bf16 %v2620, %v2616
    %v2651 = vpack.c.bf16 %v2627, %v2623
    %v2652 = vpack.c.bf16 %v2628, %v2624
    %2653 = vst [vmem:[%s167 + $0x8] sm:$0xff] %v2645
    %2654 = vst [vmem:[%s167 + $0x10] sm:$0xff] %v2646
    %2655 = vst [vmem:[%s167 + $0x28] sm:$0xff] %v2647
    %2656 = vst [vmem:[%s167 + $0x30] sm:$0xff] %v2648
    %2657 = vst [vmem:[%s167 + $0x48] sm:$0xff] %v2649
    %2658 = vst [vmem:[%s167 + $0x50] sm:$0xff] %v2650
    %2659 = vst [vmem:[%s167 + $0x68] sm:$0xff] %v2651
    %2660 = vst [vmem:[%s167 + $0x70] sm:$0xff] %v2652
    %v2661 = vld [vmem:[#allocation2] sm:$0xff]
    %v2662 = vld [vmem:[#allocation2 + $0x8] sm:$0xff]
    %v2663 = vld [vmem:[#allocation2 + $0x10] sm:$0xff]
    %v2664 = vld [vmem:[#allocation2 + $0x20] sm:$0xff]
    %v2665 = vld [vmem:[#allocation2 + $0x28] sm:$0xff]
    %v2666 = vld [vmem:[#allocation2 + $0x30] sm:$0xff]
    %v2667 = vld [vmem:[#allocation2 + $0x40] sm:$0xff]
    %v2668 = vld [vmem:[#allocation2 + $0x48] sm:$0xff]
    %v2669 = vld [vmem:[#allocation2 + $0x50] sm:$0xff]
    %v2670 = vld [vmem:[#allocation2 + $0x60] sm:$0xff]
    %v2671 = vld [vmem:[#allocation2 + $0x68] sm:$0xff]
    %v2672 = vld [vmem:[#allocation2 + $0x70] sm:$0xff]
    %v2673 = vsel %vm208, %v2661, 0
    %v2674 = vsel %vm209, %v2662, 0
    %v2675 = vsel %vm210, %v2663, 0
    %v2676 = vsel %vm208, %v2664, 0
    %v2677 = vsel %vm209, %v2665, 0
    %v2678 = vsel %vm210, %v2666, 0
    %v2679 = vsel %vm208, %v2667, 0
    %v2680 = vsel %vm209, %v2668, 0
    %v2681 = vsel %vm210, %v2669, 0
    %v2682 = vsel %vm208, %v2670, 0
    %v2683 = vsel %vm209, %v2671, 0
    %v2684 = vsel %vm210, %v2672, 0
    %v2685 = vsel %vm243, %v2661, 0
    %v2686 = vsel %vm244, %v2662, 0
    %v2687 = vsel %vm245, %v2663, 0
    %v2688 = vsel %vm243, %v2664, 0
    %v2689 = vsel %vm244, %v2665, 0
    %v2690 = vsel %vm245, %v2666, 0
    %v2691 = vsel %vm243, %v2667, 0
    %v2692 = vsel %vm244, %v2668, 0
    %v2693 = vsel %vm245, %v2669, 0
    %v2694 = vsel %vm243, %v2670, 0
    %v2695 = vsel %vm244, %v2671, 0
    %v2696 = vsel %vm245, %v2672, 0
    %2709 = vrot.lane.b32.xlu0 %v2673, 17
    %v2710 = vpop.permute.xlu0 %2709
    %2711 = vrot.lane.b32.xlu0 %v2674, 17
    %v2712 = vpop.permute.xlu0 %2711
    %2713 = vrot.lane.b32.xlu0 %v2675, 17
    %v2714 = vpop.permute.xlu0 %2713
    %2715 = vrot.lane.b32.xlu0 %v2676, 17
    %v2716 = vpop.permute.xlu0 %2715
    %2717 = vrot.lane.b32.xlu0 %v2677, 17
    %v2718 = vpop.permute.xlu0 %2717
    %2719 = vrot.lane.b32.xlu0 %v2678, 17
    %v2720 = vpop.permute.xlu0 %2719
    %2721 = vrot.lane.b32.xlu0 %v2679, 17
    %v2722 = vpop.permute.xlu0 %2721
    %2723 = vrot.lane.b32.xlu0 %v2680, 17
    %v2724 = vpop.permute.xlu0 %2723
    %2725 = vrot.lane.b32.xlu0 %v2681, 17
    %v2726 = vpop.permute.xlu0 %2725
    %2727 = vrot.lane.b32.xlu0 %v2682, 17
    %v2728 = vpop.permute.xlu0 %2727
    %2729 = vrot.lane.b32.xlu0 %v2683, 17
    %v2730 = vpop.permute.xlu0 %2729
    %2731 = vrot.lane.b32.xlu0 %v2684, 17
    %v2732 = vpop.permute.xlu0 %2731
    %v2733 = vsel %vm294, %v2710, %v2712
    %v2734 = vsel %vm294, %v2712, %v2714
    %v2735 = vsel %vm294, %v2716, %v2718
    %v2736 = vsel %vm294, %v2718, %v2720
    %v2737 = vsel %vm294, %v2722, %v2724
    %v2738 = vsel %vm294, %v2724, %v2726
    %v2739 = vsel %vm294, %v2728, %v2730
    %v2740 = vsel %vm294, %v2730, %v2732
    %2749 = vst [vmem:[#allocation3] sm:$0xff] %v2733
    %2750 = vst [vmem:[#allocation3 + $0x8] sm:$0xff] %v2734
    %2751 = vst [vmem:[#allocation3 + $0x20] sm:$0xff] %v2735
    %2752 = vst [vmem:[#allocation3 + $0x28] sm:$0xff] %v2736
    %2753 = vst [vmem:[#allocation3 + $0x40] sm:$0xff] %v2737
    %2754 = vst [vmem:[#allocation3 + $0x48] sm:$0xff] %v2738
    %2755 = vst [vmem:[#allocation3 + $0x60] sm:$0xff] %v2739
    %2756 = vst [vmem:[#allocation3 + $0x68] sm:$0xff] %v2740
    %2769 = vrot.lane.b32.xlu0 %v2661, 16
    %v2770 = vpop.permute.xlu0 %2769
    %2771 = vrot.lane.b32.xlu0 %v2662, 16
    %v2772 = vpop.permute.xlu0 %2771
    %2773 = vrot.lane.b32.xlu0 %v2663, 16
    %v2774 = vpop.permute.xlu0 %2773
    %2775 = vrot.lane.b32.xlu0 %v2664, 16
    %v2776 = vpop.permute.xlu0 %2775
    %2777 = vrot.lane.b32.xlu0 %v2665, 16
    %v2778 = vpop.permute.xlu0 %2777
    %2779 = vrot.lane.b32.xlu0 %v2666, 16
    %v2780 = vpop.permute.xlu0 %2779
    %2781 = vrot.lane.b32.xlu0 %v2667, 16
    %v2782 = vpop.permute.xlu0 %2781
    %2783 = vrot.lane.b32.xlu0 %v2668, 16
    %v2784 = vpop.permute.xlu0 %2783
    %2785 = vrot.lane.b32.xlu0 %v2669, 16
    %v2786 = vpop.permute.xlu0 %2785
    %2787 = vrot.lane.b32.xlu0 %v2670, 16
    %v2788 = vpop.permute.xlu0 %2787
    %2789 = vrot.lane.b32.xlu0 %v2671, 16
    %v2790 = vpop.permute.xlu0 %2789
    %2791 = vrot.lane.b32.xlu0 %v2672, 16
    %v2792 = vpop.permute.xlu0 %2791
    %v2793 = vsel %vm355, %v2770, %v2772
    %v2794 = vsel %vm355, %v2772, %v2774
    %v2795 = vsel %vm355, %v2776, %v2778
    %v2796 = vsel %vm355, %v2778, %v2780
    %v2797 = vsel %vm355, %v2782, %v2784
    %v2798 = vsel %vm355, %v2784, %v2786
    %v2799 = vsel %vm355, %v2788, %v2790
    %v2800 = vsel %vm355, %v2790, %v2792
    %2809 = vst [vmem:[#allocation3 + $0x80] sm:$0xff] %v2793
    %2810 = vst [vmem:[#allocation3 + $0x88] sm:$0xff] %v2794
    %2811 = vst [vmem:[#allocation3 + $0xa0] sm:$0xff] %v2795
    %2812 = vst [vmem:[#allocation3 + $0xa8] sm:$0xff] %v2796
    %2813 = vst [vmem:[#allocation3 + $0xc0] sm:$0xff] %v2797
    %2814 = vst [vmem:[#allocation3 + $0xc8] sm:$0xff] %v2798
    %2815 = vst [vmem:[#allocation3 + $0xe0] sm:$0xff] %v2799
    %2816 = vst [vmem:[#allocation3 + $0xe8] sm:$0xff] %v2800
    %2829 = vrot.lane.b32.xlu0 %v2685, 15
    %v2830 = vpop.permute.xlu0 %2829
    %2831 = vrot.lane.b32.xlu0 %v2686, 15
    %v2832 = vpop.permute.xlu0 %2831
    %2833 = vrot.lane.b32.xlu0 %v2687, 15
    %v2834 = vpop.permute.xlu0 %2833
    %2835 = vrot.lane.b32.xlu0 %v2688, 15
    %v2836 = vpop.permute.xlu0 %2835
    %2837 = vrot.lane.b32.xlu0 %v2689, 15
    %v2838 = vpop.permute.xlu0 %2837
    %2839 = vrot.lane.b32.xlu0 %v2690, 15
    %v2840 = vpop.permute.xlu0 %2839
    %2841 = vrot.lane.b32.xlu0 %v2691, 15
    %v2842 = vpop.permute.xlu0 %2841
    %2843 = vrot.lane.b32.xlu0 %v2692, 15
    %v2844 = vpop.permute.xlu0 %2843
    %2845 = vrot.lane.b32.xlu0 %v2693, 15
    %v2846 = vpop.permute.xlu0 %2845
    %2847 = vrot.lane.b32.xlu0 %v2694, 15
    %v2848 = vpop.permute.xlu0 %2847
    %2849 = vrot.lane.b32.xlu0 %v2695, 15
    %v2850 = vpop.permute.xlu0 %2849
    %2851 = vrot.lane.b32.xlu0 %v2696, 15
    %v2852 = vpop.permute.xlu0 %2851
    %v2853 = vsel %vm416, %v2830, %v2832
    %v2854 = vsel %vm416, %v2832, %v2834
    %v2855 = vsel %vm416, %v2836, %v2838
    %v2856 = vsel %vm416, %v2838, %v2840
    %v2857 = vsel %vm416, %v2842, %v2844
    %v2858 = vsel %vm416, %v2844, %v2846
    %v2859 = vsel %vm416, %v2848, %v2850
    %v2860 = vsel %vm416, %v2850, %v2852
    %2869 = vst [vmem:[#allocation3 + $0x100] sm:$0xff] %v2853
    %2870 = vst [vmem:[#allocation3 + $0x108] sm:$0xff] %v2854
    %2871 = vst [vmem:[#allocation3 + $0x120] sm:$0xff] %v2855
    %2872 = vst [vmem:[#allocation3 + $0x128] sm:$0xff] %v2856
    %2873 = vst [vmem:[#allocation3 + $0x140] sm:$0xff] %v2857
    %2874 = vst [vmem:[#allocation3 + $0x148] sm:$0xff] %v2858
    %2875 = vst [vmem:[#allocation3 + $0x160] sm:$0xff] %v2859
    %2876 = vst [vmem:[#allocation3 + $0x168] sm:$0xff] %v2860
    %v2877 = vld [vmem:[#allocation2 + $0x8] sm:$0xff]
    %v2878 = vld [vmem:[#allocation2 + $0x10] sm:$0xff]
    %v2879 = vld [vmem:[#allocation2 + $0x28] sm:$0xff]
    %v2880 = vld [vmem:[#allocation2 + $0x30] sm:$0xff]
    %v2881 = vld [vmem:[#allocation2 + $0x48] sm:$0xff]
    %v2882 = vld [vmem:[#allocation2 + $0x50] sm:$0xff]
    %v2883 = vld [vmem:[#allocation2 + $0x68] sm:$0xff]
    %v2884 = vld [vmem:[#allocation2 + $0x70] sm:$0xff]
    %v2885 = vld [vmem:[#allocation2] sm:$0xff]
    %v2886 = vld [vmem:[#allocation2 + $0x20] sm:$0xff]
    %v2887 = vld [vmem:[#allocation2 + $0x40] sm:$0xff]
    %v2888 = vld [vmem:[#allocation2 + $0x60] sm:$0xff]
    %v2889 = vld [vmem:[#allocation2 + $0x18] sm:$0xff]
    %v2890 = vld [vmem:[#allocation2 + $0x38] sm:$0xff]
    %v2891 = vld [vmem:[#allocation2 + $0x58] sm:$0xff]
    %v2892 = vld [vmem:[#allocation2 + $0x78] sm:$0xff]
    %v2893 = vsel %vm463, %v2885, 0
    %v2894 = vsel %vm464, %v2877, 0
    %v2895 = vsel %vm465, %v2878, 0
    %v2896 = vsel %vm463, %v2886, 0
    %v2897 = vsel %vm464, %v2879, 0
    %v2898 = vsel %vm465, %v2880, 0
    %v2899 = vsel %vm463, %v2887, 0
    %v2900 = vsel %vm464, %v2881, 0
    %v2901 = vsel %vm465, %v2882, 0
    %v2902 = vsel %vm463, %v2888, 0
    %v2903 = vsel %vm464, %v2883, 0
    %v2904 = vsel %vm465, %v2884, 0
    %v2905 = vsel %vm484, %v2877, 0
    %v2906 = vsel %vm485, %v2878, 0
    %v2907 = vsel %vm486, %v2889, 0
    %v2908 = vsel %vm484, %v2879, 0
    %v2909 = vsel %vm485, %v2880, 0
    %v2910 = vsel %vm486, %v2890, 0
    %v2911 = vsel %vm484, %v2881, 0
    %v2912 = vsel %vm485, %v2882, 0
    %v2913 = vsel %vm486, %v2891, 0
    %v2914 = vsel %vm484, %v2883, 0
    %v2915 = vsel %vm485, %v2884, 0
    %v2916 = vsel %vm486, %v2892, 0
    %2929 = vrot.lane.b32.xlu0 %v2893, 1
    %v2930 = vpop.permute.xlu0 %2929
    %2931 = vrot.lane.b32.xlu0 %v2894, 1
    %v2932 = vpop.permute.xlu0 %2931
    %2933 = vrot.lane.b32.xlu0 %v2895, 1
    %v2934 = vpop.permute.xlu0 %2933
    %2935 = vrot.lane.b32.xlu0 %v2896, 1
    %v2936 = vpop.permute.xlu0 %2935
    %2937 = vrot.lane.b32.xlu0 %v2897, 1
    %v2938 = vpop.permute.xlu0 %2937
    %2939 = vrot.lane.b32.xlu0 %v2898, 1
    %v2940 = vpop.permute.xlu0 %2939
    %2941 = vrot.lane.b32.xlu0 %v2899, 1
    %v2942 = vpop.permute.xlu0 %2941
    %2943 = vrot.lane.b32.xlu0 %v2900, 1
    %v2944 = vpop.permute.xlu0 %2943
    %2945 = vrot.lane.b32.xlu0 %v2901, 1
    %v2946 = vpop.permute.xlu0 %2945
    %2947 = vrot.lane.b32.xlu0 %v2902, 1
    %v2948 = vpop.permute.xlu0 %2947
    %2949 = vrot.lane.b32.xlu0 %v2903, 1
    %v2950 = vpop.permute.xlu0 %2949
    %2951 = vrot.lane.b32.xlu0 %v2904, 1
    %v2952 = vpop.permute.xlu0 %2951
    %v2953 = vsel %vm482, %v2930, %v2932
    %v2954 = vsel %vm482, %v2932, %v2934
    %v2955 = vsel %vm482, %v2936, %v2938
    %v2956 = vsel %vm482, %v2938, %v2940
    %v2957 = vsel %vm482, %v2942, %v2944
    %v2958 = vsel %vm482, %v2944, %v2946
    %v2959 = vsel %vm482, %v2948, %v2950
    %v2960 = vsel %vm482, %v2950, %v2952
    %2969 = vst [vmem:[#allocation3 + $0x180] sm:$0xff] %v2953
    %2970 = vst [vmem:[#allocation3 + $0x188] sm:$0xff] %v2954
    %2971 = vst [vmem:[#allocation3 + $0x1a0] sm:$0xff] %v2955
    %2972 = vst [vmem:[#allocation3 + $0x1a8] sm:$0xff] %v2956
    %2973 = vst [vmem:[#allocation3 + $0x1c0] sm:$0xff] %v2957
    %2974 = vst [vmem:[#allocation3 + $0x1c8] sm:$0xff] %v2958
    %2975 = vst [vmem:[#allocation3 + $0x1e0] sm:$0xff] %v2959
    %2976 = vst [vmem:[#allocation3 + $0x1e8] sm:$0xff] %v2960
    %2977 = vst [vmem:[#allocation3 + $0x200] sm:$0xff] %v2877
    %2978 = vst [vmem:[#allocation3 + $0x208] sm:$0xff] %v2878
    %2979 = vst [vmem:[#allocation3 + $0x220] sm:$0xff] %v2879
    %2980 = vst [vmem:[#allocation3 + $0x228] sm:$0xff] %v2880
    %2981 = vst [vmem:[#allocation3 + $0x240] sm:$0xff] %v2881
    %2982 = vst [vmem:[#allocation3 + $0x248] sm:$0xff] %v2882
    %2983 = vst [vmem:[#allocation3 + $0x260] sm:$0xff] %v2883
    %2984 = vst [vmem:[#allocation3 + $0x268] sm:$0xff] %v2884
    %2997 = vrot.lane.b32.xlu0 %v2905, 127
    %v2998 = vpop.permute.xlu0 %2997
    %2999 = vrot.lane.b32.xlu0 %v2906, 127
    %v3000 = vpop.permute.xlu0 %2999
    %3001 = vrot.lane.b32.xlu0 %v2907, 127
    %v3002 = vpop.permute.xlu0 %3001
    %3003 = vrot.lane.b32.xlu0 %v2908, 127
    %v3004 = vpop.permute.xlu0 %3003
    %3005 = vrot.lane.b32.xlu0 %v2909, 127
    %v3006 = vpop.permute.xlu0 %3005
    %3007 = vrot.lane.b32.xlu0 %v2910, 127
    %v3008 = vpop.permute.xlu0 %3007
    %3009 = vrot.lane.b32.xlu0 %v2911, 127
    %v3010 = vpop.permute.xlu0 %3009
    %3011 = vrot.lane.b32.xlu0 %v2912, 127
    %v3012 = vpop.permute.xlu0 %3011
    %3013 = vrot.lane.b32.xlu0 %v2913, 127
    %v3014 = vpop.permute.xlu0 %3013
    %3015 = vrot.lane.b32.xlu0 %v2914, 127
    %v3016 = vpop.permute.xlu0 %3015
    %3017 = vrot.lane.b32.xlu0 %v2915, 127
    %v3018 = vpop.permute.xlu0 %3017
    %3019 = vrot.lane.b32.xlu0 %v2916, 127
    %v3020 = vpop.permute.xlu0 %3019
    %v3021 = vsel %vm461, %v2998, %v3000
    %v3022 = vsel %vm461, %v3000, %v3002
    %v3023 = vsel %vm461, %v3004, %v3006
    %v3024 = vsel %vm461, %v3006, %v3008
    %v3025 = vsel %vm461, %v3010, %v3012
    %v3026 = vsel %vm461, %v3012, %v3014
    %v3027 = vsel %vm461, %v3016, %v3018
    %v3028 = vsel %vm461, %v3018, %v3020
    %3037 = vst [vmem:[#allocation3 + $0x280] sm:$0xff] %v3021
    %3038 = vst [vmem:[#allocation3 + $0x288] sm:$0xff] %v3022
    %3039 = vst [vmem:[#allocation3 + $0x2a0] sm:$0xff] %v3023
    %3040 = vst [vmem:[#allocation3 + $0x2a8] sm:$0xff] %v3024
    %3041 = vst [vmem:[#allocation3 + $0x2c0] sm:$0xff] %v3025
    %3042 = vst [vmem:[#allocation3 + $0x2c8] sm:$0xff] %v3026
    %3043 = vst [vmem:[#allocation3 + $0x2e0] sm:$0xff] %v3027
    %3044 = vst [vmem:[#allocation3 + $0x2e8] sm:$0xff] %v3028
    %v3045 = vld [vmem:[#allocation2 + $0x8] sm:$0xff]
    %v3046 = vld [vmem:[#allocation2 + $0x10] sm:$0xff]
    %v3047 = vld [vmem:[#allocation2 + $0x18] sm:$0xff]
    %v3048 = vld [vmem:[#allocation2 + $0x28] sm:$0xff]
    %v3049 = vld [vmem:[#allocation2 + $0x30] sm:$0xff]
    %v3050 = vld [vmem:[#allocation2 + $0x38] sm:$0xff]
    %v3051 = vld [vmem:[#allocation2 + $0x48] sm:$0xff]
    %v3052 = vld [vmem:[#allocation2 + $0x50] sm:$0xff]
    %v3053 = vld [vmem:[#allocation2 + $0x58] sm:$0xff]
    %v3054 = vld [vmem:[#allocation2 + $0x68] sm:$0xff]
    %v3055 = vld [vmem:[#allocation2 + $0x70] sm:$0xff]
    %v3056 = vld [vmem:[#allocation2 + $0x78] sm:$0xff]
    %v3057 = vsel %vm644, %v3045, 0
    %v3058 = vsel %vm645, %v3046, 0
    %v3059 = vsel %vm646, %v3047, 0
    %v3060 = vsel %vm644, %v3048, 0
    %v3061 = vsel %vm645, %v3049, 0
    %v3062 = vsel %vm646, %v3050, 0
    %v3063 = vsel %vm644, %v3051, 0
    %v3064 = vsel %vm645, %v3052, 0
    %v3065 = vsel %vm646, %v3053, 0
    %v3066 = vsel %vm644, %v3054, 0
    %v3067 = vsel %vm645, %v3055, 0
    %v3068 = vsel %vm646, %v3056, 0
    %v3069 = vsel %vm664, %v3045, 0
    %v3070 = vsel %vm665, %v3046, 0
    %v3071 = vsel %vm666, %v3047, 0
    %v3072 = vsel %vm664, %v3048, 0
    %v3073 = vsel %vm665, %v3049, 0
    %v3074 = vsel %vm666, %v3050, 0
    %v3075 = vsel %vm664, %v3051, 0
    %v3076 = vsel %vm665, %v3052, 0
    %v3077 = vsel %vm666, %v3053, 0
    %v3078 = vsel %vm664, %v3054, 0
    %v3079 = vsel %vm665, %v3055, 0
    %v3080 = vsel %vm666, %v3056, 0
    %3093 = vrot.lane.b32.xlu0 %v3057, 113
    %v3094 = vpop.permute.xlu0 %3093
    %3095 = vrot.lane.b32.xlu0 %v3058, 113
    %v3096 = vpop.permute.xlu0 %3095
    %3097 = vrot.lane.b32.xlu0 %v3059, 113
    %v3098 = vpop.permute.xlu0 %3097
    %3099 = vrot.lane.b32.xlu0 %v3060, 113
    %v3100 = vpop.permute.xlu0 %3099
    %3101 = vrot.lane.b32.xlu0 %v3061, 113
    %v3102 = vpop.permute.xlu0 %3101
    %3103 = vrot.lane.b32.xlu0 %v3062, 113
    %v3104 = vpop.permute.xlu0 %3103
    %3105 = vrot.lane.b32.xlu0 %v3063, 113
    %v3106 = vpop.permute.xlu0 %3105
    %3107 = vrot.lane.b32.xlu0 %v3064, 113
    %v3108 = vpop.permute.xlu0 %3107
    %3109 = vrot.lane.b32.xlu0 %v3065, 113
    %v3110 = vpop.permute.xlu0 %3109
    %3111 = vrot.lane.b32.xlu0 %v3066, 113
    %v3112 = vpop.permute.xlu0 %3111
    %3113 = vrot.lane.b32.xlu0 %v3067, 113
    %v3114 = vpop.permute.xlu0 %3113
    %3115 = vrot.lane.b32.xlu0 %v3068, 113
    %v3116 = vpop.permute.xlu0 %3115
    %v3117 = vsel %vm241, %v3094, %v3096
    %v3118 = vsel %vm241, %v3096, %v3098
    %v3119 = vsel %vm241, %v3100, %v3102
    %v3120 = vsel %vm241, %v3102, %v3104
    %v3121 = vsel %vm241, %v3106, %v3108
    %v3122 = vsel %vm241, %v3108, %v3110
    %v3123 = vsel %vm241, %v3112, %v3114
    %v3124 = vsel %vm241, %v3114, %v3116
    %3133 = vst [vmem:[#allocation3 + $0x300] sm:$0xff] %v3117
    %3134 = vst [vmem:[#allocation3 + $0x308] sm:$0xff] %v3118
    %3135 = vst [vmem:[#allocation3 + $0x320] sm:$0xff] %v3119
    %3136 = vst [vmem:[#allocation3 + $0x328] sm:$0xff] %v3120
    %3137 = vst [vmem:[#allocation3 + $0x340] sm:$0xff] %v3121
    %3138 = vst [vmem:[#allocation3 + $0x348] sm:$0xff] %v3122
    %3139 = vst [vmem:[#allocation3 + $0x360] sm:$0xff] %v3123
    %3140 = vst [vmem:[#allocation3 + $0x368] sm:$0xff] %v3124
    %3153 = vrot.lane.b32.xlu0 %v3045, 112
    %v3154 = vpop.permute.xlu0 %3153
    %3155 = vrot.lane.b32.xlu0 %v3046, 112
    %v3156 = vpop.permute.xlu0 %3155
    %3157 = vrot.lane.b32.xlu0 %v3047, 112
    %v3158 = vpop.permute.xlu0 %3157
    %3159 = vrot.lane.b32.xlu0 %v3048, 112
    %v3160 = vpop.permute.xlu0 %3159
    %3161 = vrot.lane.b32.xlu0 %v3049, 112
    %v3162 = vpop.permute.xlu0 %3161
    %3163 = vrot.lane.b32.xlu0 %v3050, 112
    %v3164 = vpop.permute.xlu0 %3163
    %3165 = vrot.lane.b32.xlu0 %v3051, 112
    %v3166 = vpop.permute.xlu0 %3165
    %3167 = vrot.lane.b32.xlu0 %v3052, 112
    %v3168 = vpop.permute.xlu0 %3167
    %3169 = vrot.lane.b32.xlu0 %v3053, 112
    %v3170 = vpop.permute.xlu0 %3169
    %3171 = vrot.lane.b32.xlu0 %v3054, 112
    %v3172 = vpop.permute.xlu0 %3171
    %3173 = vrot.lane.b32.xlu0 %v3055, 112
    %v3174 = vpop.permute.xlu0 %3173
    %3175 = vrot.lane.b32.xlu0 %v3056, 112
    %v3176 = vpop.permute.xlu0 %3175
    %v3177 = vsel %vm775, %v3154, %v3156
    %v3178 = vsel %vm775, %v3156, %v3158
    %v3179 = vsel %vm775, %v3160, %v3162
    %v3180 = vsel %vm775, %v3162, %v3164
    %v3181 = vsel %vm775, %v3166, %v3168
    %v3182 = vsel %vm775, %v3168, %v3170
    %v3183 = vsel %vm775, %v3172, %v3174
    %v3184 = vsel %vm775, %v3174, %v3176
    %3193 = vst [vmem:[#allocation3 + $0x380] sm:$0xff] %v3177
    %3194 = vst [vmem:[#allocation3 + $0x388] sm:$0xff] %v3178
    %3195 = vst [vmem:[#allocation3 + $0x3a0] sm:$0xff] %v3179
    %3196 = vst [vmem:[#allocation3 + $0x3a8] sm:$0xff] %v3180
    %3197 = vst [vmem:[#allocation3 + $0x3c0] sm:$0xff] %v3181
    %3198 = vst [vmem:[#allocation3 + $0x3c8] sm:$0xff] %v3182
    %3199 = vst [vmem:[#allocation3 + $0x3e0] sm:$0xff] %v3183
    %3200 = vst [vmem:[#allocation3 + $0x3e8] sm:$0xff] %v3184
    %3213 = vrot.lane.b32.xlu0 %v3069, 111
    %v3214 = vpop.permute.xlu0 %3213
    %3215 = vrot.lane.b32.xlu0 %v3070, 111
    %v3216 = vpop.permute.xlu0 %3215
    %3217 = vrot.lane.b32.xlu0 %v3071, 111
    %v3218 = vpop.permute.xlu0 %3217
    %3219 = vrot.lane.b32.xlu0 %v3072, 111
    %v3220 = vpop.permute.xlu0 %3219
    %3221 = vrot.lane.b32.xlu0 %v3073, 111
    %v3222 = vpop.permute.xlu0 %3221
    %3223 = vrot.lane.b32.xlu0 %v3074, 111
    %v3224 = vpop.permute.xlu0 %3223
    %3225 = vrot.lane.b32.xlu0 %v3075, 111
    %v3226 = vpop.permute.xlu0 %3225
    %3227 = vrot.lane.b32.xlu0 %v3076, 111
    %v3228 = vpop.permute.xlu0 %3227
    %3229 = vrot.lane.b32.xlu0 %v3077, 111
    %v3230 = vpop.permute.xlu0 %3229
    %3231 = vrot.lane.b32.xlu0 %v3078, 111
    %v3232 = vpop.permute.xlu0 %3231
    %3233 = vrot.lane.b32.xlu0 %v3079, 111
    %v3234 = vpop.permute.xlu0 %3233
    %3235 = vrot.lane.b32.xlu0 %v3080, 111
    %v3236 = vpop.permute.xlu0 %3235
    %v3237 = vsel %vm206, %v3214, %v3216
    %v3238 = vsel %vm206, %v3216, %v3218
    %v3239 = vsel %vm206, %v3220, %v3222
    %v3240 = vsel %vm206, %v3222, %v3224
    %v3241 = vsel %vm206, %v3226, %v3228
    %v3242 = vsel %vm206, %v3228, %v3230
    %v3243 = vsel %vm206, %v3232, %v3234
    %v3244 = vsel %vm206, %v3234, %v3236
    %3253 = vst [vmem:[#allocation3 + $0x400] sm:$0xff] %v3237
    %3254 = vst [vmem:[#allocation3 + $0x408] sm:$0xff] %v3238
    %3255 = vst [vmem:[#allocation3 + $0x420] sm:$0xff] %v3239
    %3256 = vst [vmem:[#allocation3 + $0x428] sm:$0xff] %v3240
    %3257 = vst [vmem:[#allocation3 + $0x440] sm:$0xff] %v3241
    %3258 = vst [vmem:[#allocation3 + $0x448] sm:$0xff] %v3242
    %3259 = vst [vmem:[#allocation3 + $0x460] sm:$0xff] %v3243
    %3260 = vst [vmem:[#allocation3 + $0x468] sm:$0xff] %v3244
    %v3261 = vld [vmem:[%s167] sm:$0xff]
    %v3262 = vld [vmem:[%s167 + $0x8] sm:$0xff]
    %v3263 = vld [vmem:[%s167 + $0x10] sm:$0xff]
    %v3264 = vld [vmem:[%s167 + $0x20] sm:$0xff]
    %v3265 = vld [vmem:[%s167 + $0x28] sm:$0xff]
    %v3266 = vld [vmem:[%s167 + $0x30] sm:$0xff]
    %v3267 = vld [vmem:[%s167 + $0x40] sm:$0xff]
    %v3268 = vld [vmem:[%s167 + $0x48] sm:$0xff]
    %v3269 = vld [vmem:[%s167 + $0x50] sm:$0xff]
    %v3270 = vld [vmem:[%s167 + $0x60] sm:$0xff]
    %v3271 = vld [vmem:[%s167 + $0x68] sm:$0xff]
    %v3272 = vld [vmem:[%s167 + $0x70] sm:$0xff]
    %v3273 = vsel %vm208, %v3261, 0
    %v3274 = vsel %vm209, %v3262, 0
    %v3275 = vsel %vm210, %v3263, 0
    %v3276 = vsel %vm208, %v3264, 0
    %v3277 = vsel %vm209, %v3265, 0
    %v3278 = vsel %vm210, %v3266, 0
    %v3279 = vsel %vm208, %v3267, 0
    %v3280 = vsel %vm209, %v3268, 0
    %v3281 = vsel %vm210, %v3269, 0
    %v3282 = vsel %vm208, %v3270, 0
    %v3283 = vsel %vm209, %v3271, 0
    %v3284 = vsel %vm210, %v3272, 0
    %v3285 = vsel %vm243, %v3261, 0
    %v3286 = vsel %vm244, %v3262, 0
    %v3287 = vsel %vm245, %v3263, 0
    %v3288 = vsel %vm243, %v3264, 0
    %v3289 = vsel %vm244, %v3265, 0
    %v3290 = vsel %vm245, %v3266, 0
    %v3291 = vsel %vm243, %v3267, 0
    %v3292 = vsel %vm244, %v3268, 0
    %v3293 = vsel %vm245, %v3269, 0
    %v3294 = vsel %vm243, %v3270, 0
    %v3295 = vsel %vm244, %v3271, 0
    %v3296 = vsel %vm245, %v3272, 0
    %3309 = vrot.lane.b32.xlu0 %v3273, 17
    %v3310 = vpop.permute.xlu0 %3309
    %3311 = vrot.lane.b32.xlu0 %v3274, 17
    %v3312 = vpop.permute.xlu0 %3311
    %3313 = vrot.lane.b32.xlu0 %v3275, 17
    %v3314 = vpop.permute.xlu0 %3313
    %3315 = vrot.lane.b32.xlu0 %v3276, 17
    %v3316 = vpop.permute.xlu0 %3315
    %3317 = vrot.lane.b32.xlu0 %v3277, 17
    %v3318 = vpop.permute.xlu0 %3317
    %3319 = vrot.lane.b32.xlu0 %v3278, 17
    %v3320 = vpop.permute.xlu0 %3319
    %3321 = vrot.lane.b32.xlu0 %v3279, 17
    %v3322 = vpop.permute.xlu0 %3321
    %3323 = vrot.lane.b32.xlu0 %v3280, 17
    %v3324 = vpop.permute.xlu0 %3323
    %3325 = vrot.lane.b32.xlu0 %v3281, 17
    %v3326 = vpop.permute.xlu0 %3325
    %3327 = vrot.lane.b32.xlu0 %v3282, 17
    %v3328 = vpop.permute.xlu0 %3327
    %3329 = vrot.lane.b32.xlu0 %v3283, 17
    %v3330 = vpop.permute.xlu0 %3329
    %3331 = vrot.lane.b32.xlu0 %v3284, 17
    %v3332 = vpop.permute.xlu0 %3331
    %v3333 = vsel %vm294, %v3310, %v3312
    %v3334 = vsel %vm294, %v3312, %v3314
    %v3335 = vsel %vm294, %v3316, %v3318
    %v3336 = vsel %vm294, %v3318, %v3320
    %v3337 = vsel %vm294, %v3322, %v3324
    %v3338 = vsel %vm294, %v3324, %v3326
    %v3339 = vsel %vm294, %v3328, %v3330
    %v3340 = vsel %vm294, %v3330, %v3332
    %3349 = vst [vmem:[#allocation3 + $0x10] sm:$0xff] %v3333
    %3350 = vst [vmem:[#allocation3 + $0x18] sm:$0xff] %v3334
    %3351 = vst [vmem:[#allocation3 + $0x30] sm:$0xff] %v3335
    %3352 = vst [vmem:[#allocation3 + $0x38] sm:$0xff] %v3336
    %3353 = vst [vmem:[#allocation3 + $0x50] sm:$0xff] %v3337
    %3354 = vst [vmem:[#allocation3 + $0x58] sm:$0xff] %v3338
    %3355 = vst [vmem:[#allocation3 + $0x70] sm:$0xff] %v3339
    %3356 = vst [vmem:[#allocation3 + $0x78] sm:$0xff] %v3340
    %3369 = vrot.lane.b32.xlu0 %v3261, 16
    %v3370 = vpop.permute.xlu0 %3369
    %3371 = vrot.lane.b32.xlu0 %v3262, 16
    %v3372 = vpop.permute.xlu0 %3371
    %3373 = vrot.lane.b32.xlu0 %v3263, 16
    %v3374 = vpop.permute.xlu0 %3373
    %3375 = vrot.lane.b32.xlu0 %v3264, 16
    %v3376 = vpop.permute.xlu0 %3375
    %3377 = vrot.lane.b32.xlu0 %v3265, 16
    %v3378 = vpop.permute.xlu0 %3377
    %3379 = vrot.lane.b32.xlu0 %v3266, 16
    %v3380 = vpop.permute.xlu0 %3379
    %3381 = vrot.lane.b32.xlu0 %v3267, 16
    %v3382 = vpop.permute.xlu0 %3381
    %3383 = vrot.lane.b32.xlu0 %v3268, 16
    %v3384 = vpop.permute.xlu0 %3383
    %3385 = vrot.lane.b32.xlu0 %v3269, 16
    %v3386 = vpop.permute.xlu0 %3385
    %3387 = vrot.lane.b32.xlu0 %v3270, 16
    %v3388 = vpop.permute.xlu0 %3387
    %3389 = vrot.lane.b32.xlu0 %v3271, 16
    %v3390 = vpop.permute.xlu0 %3389
    %3391 = vrot.lane.b32.xlu0 %v3272, 16
    %v3392 = vpop.permute.xlu0 %3391
    %v3393 = vsel %vm355, %v3370, %v3372
    %v3394 = vsel %vm355, %v3372, %v3374
    %v3395 = vsel %vm355, %v3376, %v3378
    %v3396 = vsel %vm355, %v3378, %v3380
    %v3397 = vsel %vm355, %v3382, %v3384
    %v3398 = vsel %vm355, %v3384, %v3386
    %v3399 = vsel %vm355, %v3388, %v3390
    %v3400 = vsel %vm355, %v3390, %v3392
    %3409 = vst [vmem:[#allocation3 + $0x90] sm:$0xff] %v3393
    %3410 = vst [vmem:[#allocation3 + $0x98] sm:$0xff] %v3394
    %3411 = vst [vmem:[#allocation3 + $0xb0] sm:$0xff] %v3395
    %3412 = vst [vmem:[#allocation3 + $0xb8] sm:$0xff] %v3396
    %3413 = vst [vmem:[#allocation3 + $0xd0] sm:$0xff] %v3397
    %3414 = vst [vmem:[#allocation3 + $0xd8] sm:$0xff] %v3398
    %3415 = vst [vmem:[#allocation3 + $0xf0] sm:$0xff] %v3399
    %3416 = vst [vmem:[#allocation3 + $0xf8] sm:$0xff] %v3400
    %3429 = vrot.lane.b32.xlu0 %v3285, 15
    %v3430 = vpop.permute.xlu0 %3429
    %3431 = vrot.lane.b32.xlu0 %v3286, 15
    %v3432 = vpop.permute.xlu0 %3431
    %3433 = vrot.lane.b32.xlu0 %v3287, 15
    %v3434 = vpop.permute.xlu0 %3433
    %3435 = vrot.lane.b32.xlu0 %v3288, 15
    %v3436 = vpop.permute.xlu0 %3435
    %3437 = vrot.lane.b32.xlu0 %v3289, 15
    %v3438 = vpop.permute.xlu0 %3437
    %3439 = vrot.lane.b32.xlu0 %v3290, 15
    %v3440 = vpop.permute.xlu0 %3439
    %3441 = vrot.lane.b32.xlu0 %v3291, 15
    %v3442 = vpop.permute.xlu0 %3441
    %3443 = vrot.lane.b32.xlu0 %v3292, 15
    %v3444 = vpop.permute.xlu0 %3443
    %3445 = vrot.lane.b32.xlu0 %v3293, 15
    %v3446 = vpop.permute.xlu0 %3445
    %3447 = vrot.lane.b32.xlu0 %v3294, 15
    %v3448 = vpop.permute.xlu0 %3447
    %3449 = vrot.lane.b32.xlu0 %v3295, 15
    %v3450 = vpop.permute.xlu0 %3449
    %3451 = vrot.lane.b32.xlu0 %v3296, 15
    %v3452 = vpop.permute.xlu0 %3451
    %v3453 = vsel %vm416, %v3430, %v3432
    %v3454 = vsel %vm416, %v3432, %v3434
    %v3455 = vsel %vm416, %v3436, %v3438
    %v3456 = vsel %vm416, %v3438, %v3440
    %v3457 = vsel %vm416, %v3442, %v3444
    %v3458 = vsel %vm416, %v3444, %v3446
    %v3459 = vsel %vm416, %v3448, %v3450
    %v3460 = vsel %vm416, %v3450, %v3452
    %3469 = vst [vmem:[#allocation3 + $0x110] sm:$0xff] %v3453
    %3470 = vst [vmem:[#allocation3 + $0x118] sm:$0xff] %v3454
    %3471 = vst [vmem:[#allocation3 + $0x130] sm:$0xff] %v3455
    %3472 = vst [vmem:[#allocation3 + $0x138] sm:$0xff] %v3456
    %3473 = vst [vmem:[#allocation3 + $0x150] sm:$0xff] %v3457
    %3474 = vst [vmem:[#allocation3 + $0x158] sm:$0xff] %v3458
    %3475 = vst [vmem:[#allocation3 + $0x170] sm:$0xff] %v3459
    %3476 = vst [vmem:[#allocation3 + $0x178] sm:$0xff] %v3460
    %v3477 = vld [vmem:[%s167 + $0x8] sm:$0xff]
    %v3478 = vld [vmem:[%s167 + $0x10] sm:$0xff]
    %v3479 = vld [vmem:[%s167 + $0x28] sm:$0xff]
    %v3480 = vld [vmem:[%s167 + $0x30] sm:$0xff]
    %v3481 = vld [vmem:[%s167 + $0x48] sm:$0xff]
    %v3482 = vld [vmem:[%s167 + $0x50] sm:$0xff]
    %v3483 = vld [vmem:[%s167 + $0x68] sm:$0xff]
    %v3484 = vld [vmem:[%s167 + $0x70] sm:$0xff]
    %v3485 = vld [vmem:[%s167] sm:$0xff]
    %v3486 = vld [vmem:[%s167 + $0x20] sm:$0xff]
    %v3487 = vld [vmem:[%s167 + $0x40] sm:$0xff]
    %v3488 = vld [vmem:[%s167 + $0x60] sm:$0xff]
    %v3489 = vld [vmem:[%s167 + $0x18] sm:$0xff]
    %v3490 = vld [vmem:[%s167 + $0x38] sm:$0xff]
    %v3491 = vld [vmem:[%s167 + $0x58] sm:$0xff]
    %v3492 = vld [vmem:[%s167 + $0x78] sm:$0xff]
    %v3493 = vsel %vm463, %v3485, 0
    %v3494 = vsel %vm464, %v3477, 0
    %v3495 = vsel %vm465, %v3478, 0
    %v3496 = vsel %vm463, %v3486, 0
    %v3497 = vsel %vm464, %v3479, 0
    %v3498 = vsel %vm465, %v3480, 0
    %v3499 = vsel %vm463, %v3487, 0
    %v3500 = vsel %vm464, %v3481, 0
    %v3501 = vsel %vm465, %v3482, 0
    %v3502 = vsel %vm463, %v3488, 0
    %v3503 = vsel %vm464, %v3483, 0
    %v3504 = vsel %vm465, %v3484, 0
    %v3505 = vsel %vm484, %v3477, 0
    %v3506 = vsel %vm485, %v3478, 0
    %v3507 = vsel %vm486, %v3489, 0
    %v3508 = vsel %vm484, %v3479, 0
    %v3509 = vsel %vm485, %v3480, 0
    %v3510 = vsel %vm486, %v3490, 0
    %v3511 = vsel %vm484, %v3481, 0
    %v3512 = vsel %vm485, %v3482, 0
    %v3513 = vsel %vm486, %v3491, 0
    %v3514 = vsel %vm484, %v3483, 0
    %v3515 = vsel %vm485, %v3484, 0
    %v3516 = vsel %vm486, %v3492, 0
    %3529 = vrot.lane.b32.xlu0 %v3493, 1
    %v3530 = vpop.permute.xlu0 %3529
    %3531 = vrot.lane.b32.xlu0 %v3494, 1
    %v3532 = vpop.permute.xlu0 %3531
    %3533 = vrot.lane.b32.xlu0 %v3495, 1
    %v3534 = vpop.permute.xlu0 %3533
    %3535 = vrot.lane.b32.xlu0 %v3496, 1
    %v3536 = vpop.permute.xlu0 %3535
    %3537 = vrot.lane.b32.xlu0 %v3497, 1
    %v3538 = vpop.permute.xlu0 %3537
    %3539 = vrot.lane.b32.xlu0 %v3498, 1
    %v3540 = vpop.permute.xlu0 %3539
    %3541 = vrot.lane.b32.xlu0 %v3499, 1
    %v3542 = vpop.permute.xlu0 %3541
    %3543 = vrot.lane.b32.xlu0 %v3500, 1
    %v3544 = vpop.permute.xlu0 %3543
    %3545 = vrot.lane.b32.xlu0 %v3501, 1
    %v3546 = vpop.permute.xlu0 %3545
    %3547 = vrot.lane.b32.xlu0 %v3502, 1
    %v3548 = vpop.permute.xlu0 %3547
    %3549 = vrot.lane.b32.xlu0 %v3503, 1
    %v3550 = vpop.permute.xlu0 %3549
    %3551 = vrot.lane.b32.xlu0 %v3504, 1
    %v3552 = vpop.permute.xlu0 %3551
    %v3553 = vsel %vm482, %v3530, %v3532
    %v3554 = vsel %vm482, %v3532, %v3534
    %v3555 = vsel %vm482, %v3536, %v3538
    %v3556 = vsel %vm482, %v3538, %v3540
    %v3557 = vsel %vm482, %v3542, %v3544
    %v3558 = vsel %vm482, %v3544, %v3546
    %v3559 = vsel %vm482, %v3548, %v3550
    %v3560 = vsel %vm482, %v3550, %v3552
    %3569 = vst [vmem:[#allocation3 + $0x190] sm:$0xff] %v3553
    %3570 = vst [vmem:[#allocation3 + $0x198] sm:$0xff] %v3554
    %3571 = vst [vmem:[#allocation3 + $0x1b0] sm:$0xff] %v3555
    %3572 = vst [vmem:[#allocation3 + $0x1b8] sm:$0xff] %v3556
    %3573 = vst [vmem:[#allocation3 + $0x1d0] sm:$0xff] %v3557
    %3574 = vst [vmem:[#allocation3 + $0x1d8] sm:$0xff] %v3558
    %3575 = vst [vmem:[#allocation3 + $0x1f0] sm:$0xff] %v3559
    %3576 = vst [vmem:[#allocation3 + $0x1f8] sm:$0xff] %v3560
    %3577 = vst [vmem:[#allocation3 + $0x210] sm:$0xff] %v3477
    %3578 = vst [vmem:[#allocation3 + $0x218] sm:$0xff] %v3478
    %3579 = vst [vmem:[#allocation3 + $0x230] sm:$0xff] %v3479
    %3580 = vst [vmem:[#allocation3 + $0x238] sm:$0xff] %v3480
    %3581 = vst [vmem:[#allocation3 + $0x250] sm:$0xff] %v3481
    %3582 = vst [vmem:[#allocation3 + $0x258] sm:$0xff] %v3482
    %3583 = vst [vmem:[#allocation3 + $0x270] sm:$0xff] %v3483
    %3584 = vst [vmem:[#allocation3 + $0x278] sm:$0xff] %v3484
    %3597 = vrot.lane.b32.xlu0 %v3505, 127
    %v3598 = vpop.permute.xlu0 %3597
    %3599 = vrot.lane.b32.xlu0 %v3506, 127
    %v3600 = vpop.permute.xlu0 %3599
    %3601 = vrot.lane.b32.xlu0 %v3507, 127
    %v3602 = vpop.permute.xlu0 %3601
    %3603 = vrot.lane.b32.xlu0 %v3508, 127
    %v3604 = vpop.permute.xlu0 %3603
    %3605 = vrot.lane.b32.xlu0 %v3509, 127
    %v3606 = vpop.permute.xlu0 %3605
    %3607 = vrot.lane.b32.xlu0 %v3510, 127
    %v3608 = vpop.permute.xlu0 %3607
    %3609 = vrot.lane.b32.xlu0 %v3511, 127
    %v3610 = vpop.permute.xlu0 %3609
    %3611 = vrot.lane.b32.xlu0 %v3512, 127
    %v3612 = vpop.permute.xlu0 %3611
    %3613 = vrot.lane.b32.xlu0 %v3513, 127
    %v3614 = vpop.permute.xlu0 %3613
    %3615 = vrot.lane.b32.xlu0 %v3514, 127
    %v3616 = vpop.permute.xlu0 %3615
    %3617 = vrot.lane.b32.xlu0 %v3515, 127
    %v3618 = vpop.permute.xlu0 %3617
    %3619 = vrot.lane.b32.xlu0 %v3516, 127
    %v3620 = vpop.permute.xlu0 %3619
    %v3621 = vsel %vm461, %v3598, %v3600
    %v3622 = vsel %vm461, %v3600, %v3602
    %v3623 = vsel %vm461, %v3604, %v3606
    %v3624 = vsel %vm461, %v3606, %v3608
    %v3625 = vsel %vm461, %v3610, %v3612
    %v3626 = vsel %vm461, %v3612, %v3614
    %v3627 = vsel %vm461, %v3616, %v3618
    %v3628 = vsel %vm461, %v3618, %v3620
    %3637 = vst [vmem:[#allocation3 + $0x290] sm:$0xff] %v3621
    %3638 = vst [vmem:[#allocation3 + $0x298] sm:$0xff] %v3622
    %3639 = vst [vmem:[#allocation3 + $0x2b0] sm:$0xff] %v3623
    %3640 = vst [vmem:[#allocation3 + $0x2b8] sm:$0xff] %v3624
    %3641 = vst [vmem:[#allocation3 + $0x2d0] sm:$0xff] %v3625
    %3642 = vst [vmem:[#allocation3 + $0x2d8] sm:$0xff] %v3626
    %3643 = vst [vmem:[#allocation3 + $0x2f0] sm:$0xff] %v3627
    %3644 = vst [vmem:[#allocation3 + $0x2f8] sm:$0xff] %v3628
    %v3645 = vld [vmem:[%s167 + $0x8] sm:$0xff]
    %v3646 = vld [vmem:[%s167 + $0x10] sm:$0xff]
    %v3647 = vld [vmem:[%s167 + $0x18] sm:$0xff]
    %v3648 = vld [vmem:[%s167 + $0x28] sm:$0xff]
    %v3649 = vld [vmem:[%s167 + $0x30] sm:$0xff]
    %v3650 = vld [vmem:[%s167 + $0x38] sm:$0xff]
    %v3651 = vld [vmem:[%s167 + $0x48] sm:$0xff]
    %v3652 = vld [vmem:[%s167 + $0x50] sm:$0xff]
    %v3653 = vld [vmem:[%s167 + $0x58] sm:$0xff]
    %v3654 = vld [vmem:[%s167 + $0x68] sm:$0xff]
    %v3655 = vld [vmem:[%s167 + $0x70] sm:$0xff]
    %v3656 = vld [vmem:[%s167 + $0x78] sm:$0xff]
    %v3657 = vsel %vm644, %v3645, 0
    %v3658 = vsel %vm645, %v3646, 0
    %v3659 = vsel %vm646, %v3647, 0
    %v3660 = vsel %vm644, %v3648, 0
    %v3661 = vsel %vm645, %v3649, 0
    %v3662 = vsel %vm646, %v3650, 0
    %v3663 = vsel %vm644, %v3651, 0
    %v3664 = vsel %vm645, %v3652, 0
    %v3665 = vsel %vm646, %v3653, 0
    %v3666 = vsel %vm644, %v3654, 0
    %v3667 = vsel %vm645, %v3655, 0
    %v3668 = vsel %vm646, %v3656, 0
    %v3669 = vsel %vm664, %v3645, 0
    %v3670 = vsel %vm665, %v3646, 0
    %v3671 = vsel %vm666, %v3647, 0
    %v3672 = vsel %vm664, %v3648, 0
    %v3673 = vsel %vm665, %v3649, 0
    %v3674 = vsel %vm666, %v3650, 0
    %v3675 = vsel %vm664, %v3651, 0
    %v3676 = vsel %vm665, %v3652, 0
    %v3677 = vsel %vm666, %v3653, 0
    %v3678 = vsel %vm664, %v3654, 0
    %v3679 = vsel %vm665, %v3655, 0
    %v3680 = vsel %vm666, %v3656, 0
    %3693 = vrot.lane.b32.xlu0 %v3657, 113
    %v3694 = vpop.permute.xlu0 %3693
    %3695 = vrot.lane.b32.xlu0 %v3658, 113
    %v3696 = vpop.permute.xlu0 %3695
    %3697 = vrot.lane.b32.xlu0 %v3659, 113
    %v3698 = vpop.permute.xlu0 %3697
    %3699 = vrot.lane.b32.xlu0 %v3660, 113
    %v3700 = vpop.permute.xlu0 %3699
    %3701 = vrot.lane.b32.xlu0 %v3661, 113
    %v3702 = vpop.permute.xlu0 %3701
    %3703 = vrot.lane.b32.xlu0 %v3662, 113
    %v3704 = vpop.permute.xlu0 %3703
    %3705 = vrot.lane.b32.xlu0 %v3663, 113
    %v3706 = vpop.permute.xlu0 %3705
    %3707 = vrot.lane.b32.xlu0 %v3664, 113
    %v3708 = vpop.permute.xlu0 %3707
    %3709 = vrot.lane.b32.xlu0 %v3665, 113
    %v3710 = vpop.permute.xlu0 %3709
    %3711 = vrot.lane.b32.xlu0 %v3666, 113
    %v3712 = vpop.permute.xlu0 %3711
    %3713 = vrot.lane.b32.xlu0 %v3667, 113
    %v3714 = vpop.permute.xlu0 %3713
    %3715 = vrot.lane.b32.xlu0 %v3668, 113
    %v3716 = vpop.permute.xlu0 %3715
    %v3717 = vsel %vm241, %v3694, %v3696
    %v3718 = vsel %vm241, %v3696, %v3698
    %v3719 = vsel %vm241, %v3700, %v3702
    %v3720 = vsel %vm241, %v3702, %v3704
    %v3721 = vsel %vm241, %v3706, %v3708
    %v3722 = vsel %vm241, %v3708, %v3710
    %v3723 = vsel %vm241, %v3712, %v3714
    %v3724 = vsel %vm241, %v3714, %v3716
    %3733 = vst [vmem:[#allocation3 + $0x310] sm:$0xff] %v3717
    %3734 = vst [vmem:[#allocation3 + $0x318] sm:$0xff] %v3718
    %3735 = vst [vmem:[#allocation3 + $0x330] sm:$0xff] %v3719
    %3736 = vst [vmem:[#allocation3 + $0x338] sm:$0xff] %v3720
    %3737 = vst [vmem:[#allocation3 + $0x350] sm:$0xff] %v3721
    %3738 = vst [vmem:[#allocation3 + $0x358] sm:$0xff] %v3722
    %3739 = vst [vmem:[#allocation3 + $0x370] sm:$0xff] %v3723
    %3740 = vst [vmem:[#allocation3 + $0x378] sm:$0xff] %v3724
    %3753 = vrot.lane.b32.xlu0 %v3645, 112
    %v3754 = vpop.permute.xlu0 %3753
    %3755 = vrot.lane.b32.xlu0 %v3646, 112
    %v3756 = vpop.permute.xlu0 %3755
    %3757 = vrot.lane.b32.xlu0 %v3647, 112
    %v3758 = vpop.permute.xlu0 %3757
    %3759 = vrot.lane.b32.xlu0 %v3648, 112
    %v3760 = vpop.permute.xlu0 %3759
    %3761 = vrot.lane.b32.xlu0 %v3649, 112
    %v3762 = vpop.permute.xlu0 %3761
    %3763 = vrot.lane.b32.xlu0 %v3650, 112
    %v3764 = vpop.permute.xlu0 %3763
    %3765 = vrot.lane.b32.xlu0 %v3651, 112
    %v3766 = vpop.permute.xlu0 %3765
    %3767 = vrot.lane.b32.xlu0 %v3652, 112
    %v3768 = vpop.permute.xlu0 %3767
    %3769 = vrot.lane.b32.xlu0 %v3653, 112
    %v3770 = vpop.permute.xlu0 %3769
    %3771 = vrot.lane.b32.xlu0 %v3654, 112
    %v3772 = vpop.permute.xlu0 %3771
    %3773 = vrot.lane.b32.xlu0 %v3655, 112
    %v3774 = vpop.permute.xlu0 %3773
    %3775 = vrot.lane.b32.xlu0 %v3656, 112
    %v3776 = vpop.permute.xlu0 %3775
    %v3777 = vsel %vm775, %v3754, %v3756
    %v3778 = vsel %vm775, %v3756, %v3758
    %v3779 = vsel %vm775, %v3760, %v3762
    %v3780 = vsel %vm775, %v3762, %v3764
    %v3781 = vsel %vm775, %v3766, %v3768
    %v3782 = vsel %vm775, %v3768, %v3770
    %v3783 = vsel %vm775, %v3772, %v3774
    %v3784 = vsel %vm775, %v3774, %v3776
    %3793 = vst [vmem:[#allocation3 + $0x390] sm:$0xff] %v3777
    %3794 = vst [vmem:[#allocation3 + $0x398] sm:$0xff] %v3778
    %3795 = vst [vmem:[#allocation3 + $0x3b0] sm:$0xff] %v3779
    %3796 = vst [vmem:[#allocation3 + $0x3b8] sm:$0xff] %v3780
    %3797 = vst [vmem:[#allocation3 + $0x3d0] sm:$0xff] %v3781
    %3798 = vst [vmem:[#allocation3 + $0x3d8] sm:$0xff] %v3782
    %3799 = vst [vmem:[#allocation3 + $0x3f0] sm:$0xff] %v3783
    %3800 = vst [vmem:[#allocation3 + $0x3f8] sm:$0xff] %v3784
    %3813 = vrot.lane.b32.xlu0 %v3669, 111
    %v3814 = vpop.permute.xlu0 %3813
    %3815 = vrot.lane.b32.xlu0 %v3670, 111
    %v3816 = vpop.permute.xlu0 %3815
    %3817 = vrot.lane.b32.xlu0 %v3671, 111
    %v3818 = vpop.permute.xlu0 %3817
    %3819 = vrot.lane.b32.xlu0 %v3672, 111
    %v3820 = vpop.permute.xlu0 %3819
    %3821 = vrot.lane.b32.xlu0 %v3673, 111
    %v3822 = vpop.permute.xlu0 %3821
    %3823 = vrot.lane.b32.xlu0 %v3674, 111
    %v3824 = vpop.permute.xlu0 %3823
    %3825 = vrot.lane.b32.xlu0 %v3675, 111
    %v3826 = vpop.permute.xlu0 %3825
    %3827 = vrot.lane.b32.xlu0 %v3676, 111
    %v3828 = vpop.permute.xlu0 %3827
    %3829 = vrot.lane.b32.xlu0 %v3677, 111
    %v3830 = vpop.permute.xlu0 %3829
    %3831 = vrot.lane.b32.xlu0 %v3678, 111
    %v3832 = vpop.permute.xlu0 %3831
    %3833 = vrot.lane.b32.xlu0 %v3679, 111
    %v3834 = vpop.permute.xlu0 %3833
    %3835 = vrot.lane.b32.xlu0 %v3680, 111
    %v3836 = vpop.permute.xlu0 %3835
    %v3837 = vsel %vm206, %v3814, %v3816
    %v3838 = vsel %vm206, %v3816, %v3818
    %v3839 = vsel %vm206, %v3820, %v3822
    %v3840 = vsel %vm206, %v3822, %v3824
    %v3841 = vsel %vm206, %v3826, %v3828
    %v3842 = vsel %vm206, %v3828, %v3830
    %v3843 = vsel %vm206, %v3832, %v3834
    %v3844 = vsel %vm206, %v3834, %v3836
    %3853 = vst [vmem:[#allocation3 + $0x410] sm:$0xff] %v3837
    %3854 = vst [vmem:[#allocation3 + $0x418] sm:$0xff] %v3838
    %3855 = vst [vmem:[#allocation3 + $0x430] sm:$0xff] %v3839
    %3856 = vst [vmem:[#allocation3 + $0x438] sm:$0xff] %v3840
    %3857 = vst [vmem:[#allocation3 + $0x450] sm:$0xff] %v3841
    %3858 = vst [vmem:[#allocation3 + $0x458] sm:$0xff] %v3842
    %3859 = vst [vmem:[#allocation3 + $0x470] sm:$0xff] %v3843
    %3860 = vst [vmem:[#allocation3 + $0x478] sm:$0xff] %v3844
    %v3861 = vld [vmem:[#allocation8] sm:$0xff]
    %v3862 = vld [vmem:[#allocation8 + $0x8] sm:$0xff]
    %v3863 = vld [vmem:[#allocation8 + $0x10] sm:$0xf]
    %v3864 = vld [vmem:[#allocation8 + $0x14] sm:$0xff]
    %v3865 = vld [vmem:[#allocation8 + $0x1c] sm:$0xff]
    %v3866 = vld [vmem:[#allocation8 + $0x24] sm:$0xf]
    %v3867 = vld [vmem:[#allocation8 + $0x28] sm:$0xff]
    %v3868 = vld [vmem:[#allocation8 + $0x30] sm:$0xff]
    %v3869 = vld [vmem:[#allocation8 + $0x38] sm:$0xf]
    %v3870 = vld [vmem:[#allocation8 + $0x3c] sm:$0xff]
    %v3871 = vld [vmem:[#allocation8 + $0x44] sm:$0xff]
    %v3872 = vld [vmem:[#allocation8 + $0x4c] sm:$0xf]
    %v3873 = vld [vmem:[#allocation8 + $0x50] sm:$0xff]
    %v3874 = vld [vmem:[#allocation8 + $0x58] sm:$0xff]
    %v3875 = vld [vmem:[#allocation8 + $0x60] sm:$0xf]
    %v3876 = vld [vmem:[#allocation8 + $0x64] sm:$0xff]
    %v3877 = vld [vmem:[#allocation8 + $0x6c] sm:$0xff]
    %v3878 = vld [vmem:[#allocation8 + $0x74] sm:$0xf]
    %v3879 = vld [vmem:[#allocation8 + $0x78] sm:$0xff]
    %v3880 = vld [vmem:[#allocation8 + $0x80] sm:$0xff]
    %v3881 = vld [vmem:[#allocation8 + $0x88] sm:$0xf]
    %v3882 = vld [vmem:[#allocation8 + $0x8c] sm:$0xff]
    %v3883 = vld [vmem:[#allocation8 + $0x94] sm:$0xff]
    %v3884 = vld [vmem:[#allocation8 + $0x9c] sm:$0xf]
    %v3885 = vld [vmem:[#allocation3] sm:$0xff]
    %v3886 = vld [vmem:[#allocation3 + $0x8] sm:$0xff]
    %v3887 = vld [vmem:[#allocation3 + $0x10] sm:$0xff]
    %v3888 = vld [vmem:[#allocation3 + $0x18] sm:$0xff]
    %v3889 = vld [vmem:[#allocation3 + $0x20] sm:$0xff]
    %v3890 = vld [vmem:[#allocation3 + $0x28] sm:$0xff]
    %v3891 = vld [vmem:[#allocation3 + $0x30] sm:$0xff]
    %v3892 = vld [vmem:[#allocation3 + $0x38] sm:$0xff]
    %v3893 = vld [vmem:[#allocation3 + $0x40] sm:$0xff]
    %v3894 = vld [vmem:[#allocation3 + $0x48] sm:$0xff]
    %v3895 = vld [vmem:[#allocation3 + $0x50] sm:$0xff]
    %v3896 = vld [vmem:[#allocation3 + $0x58] sm:$0xff]
    %v3897 = vld [vmem:[#allocation3 + $0x60] sm:$0xff]
    %v3898 = vld [vmem:[#allocation3 + $0x68] sm:$0xff]
    %v3899 = vld [vmem:[#allocation3 + $0x70] sm:$0xff]
    %v3900 = vld [vmem:[#allocation3 + $0x78] sm:$0xff]
    %v3901 = vld [vmem:[#allocation3 + $0x80] sm:$0xff]
    %v3902 = vld [vmem:[#allocation3 + $0x88] sm:$0xff]
    %v3903 = vld [vmem:[#allocation3 + $0x90] sm:$0xff]
    %v3904 = vld [vmem:[#allocation3 + $0x98] sm:$0xff]
    %v3905 = vld [vmem:[#allocation3 + $0xa0] sm:$0xff]
    %v3906 = vld [vmem:[#allocation3 + $0xa8] sm:$0xff]
    %v3907 = vld [vmem:[#allocation3 + $0xb0] sm:$0xff]
    %v3908 = vld [vmem:[#allocation3 + $0xb8] sm:$0xff]
    %v3909 = vld [vmem:[#allocation3 + $0xc0] sm:$0xff]
    %v3910 = vld [vmem:[#allocation3 + $0xc8] sm:$0xff]
    %v3911 = vld [vmem:[#allocation3 + $0xd0] sm:$0xff]
    %v3912 = vld [vmem:[#allocation3 + $0xd8] sm:$0xff]
    %v3913 = vld [vmem:[#allocation3 + $0xe0] sm:$0xff]
    %v3914 = vld [vmem:[#allocation3 + $0xe8] sm:$0xff]
    %v3915 = vld [vmem:[#allocation3 + $0xf0] sm:$0xff]
    %v3916 = vld [vmem:[#allocation3 + $0xf8] sm:$0xff]
    %v3917 = vld [vmem:[#allocation3 + $0x100] sm:$0xff]
    %v3918 = vld [vmem:[#allocation3 + $0x108] sm:$0xff]
    %v3919 = vld [vmem:[#allocation3 + $0x110] sm:$0xff]
    %v3920 = vld [vmem:[#allocation3 + $0x118] sm:$0xff]
    %v3921 = vld [vmem:[#allocation3 + $0x120] sm:$0xff]
    %v3922 = vld [vmem:[#allocation3 + $0x128] sm:$0xff]
    %v3923 = vld [vmem:[#allocation3 + $0x130] sm:$0xff]
    %v3924 = vld [vmem:[#allocation3 + $0x138] sm:$0xff]
    %v3925 = vld [vmem:[#allocation3 + $0x140] sm:$0xff]
    %v3926 = vld [vmem:[#allocation3 + $0x148] sm:$0xff]
    %v3927 = vld [vmem:[#allocation3 + $0x150] sm:$0xff]
    %v3928 = vld [vmem:[#allocation3 + $0x158] sm:$0xff]
    %v3929 = vld [vmem:[#allocation3 + $0x160] sm:$0xff]
    %v3930 = vld [vmem:[#allocation3 + $0x168] sm:$0xff]
    %v3931 = vld [vmem:[#allocation3 + $0x170] sm:$0xff]
    %v3932 = vld [vmem:[#allocation3 + $0x178] sm:$0xff]
    %v3933 = vld [vmem:[#allocation3 + $0x180] sm:$0xff]
    %v3934 = vld [vmem:[#allocation3 + $0x188] sm:$0xff]
    %v3935 = vld [vmem:[#allocation3 + $0x190] sm:$0xff]
    %v3936 = vld [vmem:[#allocation3 + $0x198] sm:$0xff]
    %v3937 = vld [vmem:[#allocation3 + $0x1a0] sm:$0xff]
    %v3938 = vld [vmem:[#allocation3 + $0x1a8] sm:$0xff]
    %v3939 = vld [vmem:[#allocation3 + $0x1b0] sm:$0xff]
    %v3940 = vld [vmem:[#allocation3 + $0x1b8] sm:$0xff]
    %v3941 = vld [vmem:[#allocation3 + $0x1c0] sm:$0xff]
    %v3942 = vld [vmem:[#allocation3 + $0x1c8] sm:$0xff]
    %v3943 = vld [vmem:[#allocation3 + $0x1d0] sm:$0xff]
    %v3944 = vld [vmem:[#allocation3 + $0x1d8] sm:$0xff]
    %v3945 = vld [vmem:[#allocation3 + $0x1e0] sm:$0xff]
    %v3946 = vld [vmem:[#allocation3 + $0x1e8] sm:$0xff]
    %v3947 = vld [vmem:[#allocation3 + $0x1f0] sm:$0xff]
    %v3948 = vld [vmem:[#allocation3 + $0x1f8] sm:$0xff]
    %v3949 = vld [vmem:[#allocation3 + $0x200] sm:$0xff]
    %v3950 = vld [vmem:[#allocation3 + $0x208] sm:$0xff]
    %v3951 = vld [vmem:[#allocation3 + $0x210] sm:$0xff]
    %v3952 = vld [vmem:[#allocation3 + $0x218] sm:$0xff]
    %v3953 = vld [vmem:[#allocation3 + $0x220] sm:$0xff]
    %v3954 = vld [vmem:[#allocation3 + $0x228] sm:$0xff]
    %v3955 = vld [vmem:[#allocation3 + $0x230] sm:$0xff]
    %v3956 = vld [vmem:[#allocation3 + $0x238] sm:$0xff]
    %v3957 = vld [vmem:[#allocation3 + $0x240] sm:$0xff]
    %v3958 = vld [vmem:[#allocation3 + $0x248] sm:$0xff]
    %v3959 = vld [vmem:[#allocation3 + $0x250] sm:$0xff]
    %v3960 = vld [vmem:[#allocation3 + $0x258] sm:$0xff]
    %v3961 = vld [vmem:[#allocation3 + $0x260] sm:$0xff]
    %v3962 = vld [vmem:[#allocation3 + $0x268] sm:$0xff]
    %v3963 = vld [vmem:[#allocation3 + $0x270] sm:$0xff]
    %v3964 = vld [vmem:[#allocation3 + $0x278] sm:$0xff]
    %v3965 = vld [vmem:[#allocation3 + $0x280] sm:$0xff]
    %v3966 = vld [vmem:[#allocation3 + $0x288] sm:$0xff]
    %v3967 = vld [vmem:[#allocation3 + $0x290] sm:$0xff]
    %v3968 = vld [vmem:[#allocation3 + $0x298] sm:$0xff]
    %v3969 = vld [vmem:[#allocation3 + $0x2a0] sm:$0xff]
    %v3970 = vld [vmem:[#allocation3 + $0x2a8] sm:$0xff]
    %v3971 = vld [vmem:[#allocation3 + $0x2b0] sm:$0xff]
    %v3972 = vld [vmem:[#allocation3 + $0x2b8] sm:$0xff]
    %v3973 = vld [vmem:[#allocation3 + $0x2c0] sm:$0xff]
    %v3974 = vld [vmem:[#allocation3 + $0x2c8] sm:$0xff]
    %v3975 = vld [vmem:[#allocation3 + $0x2d0] sm:$0xff]
    %v3976 = vld [vmem:[#allocation3 + $0x2d8] sm:$0xff]
    %v3977 = vld [vmem:[#allocation3 + $0x2e0] sm:$0xff]
    %v3978 = vld [vmem:[#allocation3 + $0x2e8] sm:$0xff]
    %v3979 = vld [vmem:[#allocation3 + $0x2f0] sm:$0xff]
    %v3980 = vld [vmem:[#allocation3 + $0x2f8] sm:$0xff]
    %v3981 = vld [vmem:[#allocation3 + $0x300] sm:$0xff]
    %v3982 = vld [vmem:[#allocation3 + $0x308] sm:$0xff]
    %v3983 = vld [vmem:[#allocation3 + $0x310] sm:$0xff]
    %v3984 = vld [vmem:[#allocation3 + $0x318] sm:$0xff]
    %v3985 = vld [vmem:[#allocation3 + $0x320] sm:$0xff]
    %v3986 = vld [vmem:[#allocation3 + $0x328] sm:$0xff]
    %v3987 = vld [vmem:[#allocation3 + $0x330] sm:$0xff]
    %v3988 = vld [vmem:[#allocation3 + $0x338] sm:$0xff]
    %v3989 = vld [vmem:[#allocation3 + $0x340] sm:$0xff]
    %v3990 = vld [vmem:[#allocation3 + $0x348] sm:$0xff]
    %v3991 = vld [vmem:[#allocation3 + $0x350] sm:$0xff]
    %v3992 = vld [vmem:[#allocation3 + $0x358] sm:$0xff]
    %v3993 = vld [vmem:[#allocation3 + $0x360] sm:$0xff]
    %v3994 = vld [vmem:[#allocation3 + $0x368] sm:$0xff]
    %v3995 = vld [vmem:[#allocation3 + $0x370] sm:$0xff]
    %v3996 = vld [vmem:[#allocation3 + $0x378] sm:$0xff]
    %v3997 = vld [vmem:[#allocation3 + $0x380] sm:$0xff]
    %v3998 = vld [vmem:[#allocation3 + $0x388] sm:$0xff]
    %v3999 = vld [vmem:[#allocation3 + $0x390] sm:$0xff]
    %v4000 = vld [vmem:[#allocation3 + $0x398] sm:$0xff]
    %v4001 = vld [vmem:[#allocation3 + $0x3a0] sm:$0xff]
    %v4002 = vld [vmem:[#allocation3 + $0x3a8] sm:$0xff]
    %v4003 = vld [vmem:[#allocation3 + $0x3b0] sm:$0xff]
    %v4004 = vld [vmem:[#allocation3 + $0x3b8] sm:$0xff]
    %v4005 = vld [vmem:[#allocation3 + $0x3c0] sm:$0xff]
    %v4006 = vld [vmem:[#allocation3 + $0x3c8] sm:$0xff]
    %v4007 = vld [vmem:[#allocation3 + $0x3d0] sm:$0xff]
    %v4008 = vld [vmem:[#allocation3 + $0x3d8] sm:$0xff]
    %v4009 = vld [vmem:[#allocation3 + $0x3e0] sm:$0xff]
    %v4010 = vld [vmem:[#allocation3 + $0x3e8] sm:$0xff]
    %v4011 = vld [vmem:[#allocation3 + $0x3f0] sm:$0xff]
    %v4012 = vld [vmem:[#allocation3 + $0x3f8] sm:$0xff]
    %v4013 = vld [vmem:[#allocation3 + $0x400] sm:$0xff]
    %v4014 = vld [vmem:[#allocation3 + $0x408] sm:$0xff]
    %v4015 = vld [vmem:[#allocation3 + $0x410] sm:$0xff]
    %v4016 = vld [vmem:[#allocation3 + $0x418] sm:$0xff]
    %v4017 = vld [vmem:[#allocation3 + $0x420] sm:$0xff]
    %v4018 = vld [vmem:[#allocation3 + $0x428] sm:$0xff]
    %v4019 = vld [vmem:[#allocation3 + $0x430] sm:$0xff]
    %v4020 = vld [vmem:[#allocation3 + $0x438] sm:$0xff]
    %v4021 = vld [vmem:[#allocation3 + $0x440] sm:$0xff]
    %v4022 = vld [vmem:[#allocation3 + $0x448] sm:$0xff]
    %v4023 = vld [vmem:[#allocation3 + $0x450] sm:$0xff]
    %v4024 = vld [vmem:[#allocation3 + $0x458] sm:$0xff]
    %v4025 = vld [vmem:[#allocation3 + $0x460] sm:$0xff]
    %v4026 = vld [vmem:[#allocation3 + $0x468] sm:$0xff]
    %v4027 = vld [vmem:[#allocation3 + $0x470] sm:$0xff]
    %v4028 = vld [vmem:[#allocation3 + $0x478] sm:$0xff]
    %v4053 = vunpack.c.l.b16 %v3861
    %v4054 = vunpack.c.h.b16 %v3861
    %v4055 = vunpack.c.l.b16 %v3862
    %v4056 = vunpack.c.h.b16 %v3862
    %v4057 = vunpack.c.l.b16 %v3863
    %v4058 = vunpack.c.l.b16 %v3864
    %v4059 = vunpack.c.h.b16 %v3864
    %v4060 = vunpack.c.l.b16 %v3865
    %v4061 = vunpack.c.h.b16 %v3865
    %v4062 = vunpack.c.l.b16 %v3866
    %v4063 = vunpack.c.l.b16 %v3867
    %v4064 = vunpack.c.h.b16 %v3867
    %v4065 = vunpack.c.l.b16 %v3868
    %v4066 = vunpack.c.h.b16 %v3868
    %v4067 = vunpack.c.l.b16 %v3869
    %v4068 = vunpack.c.l.b16 %v3870
    %v4069 = vunpack.c.h.b16 %v3870
    %v4070 = vunpack.c.l.b16 %v3871
    %v4071 = vunpack.c.h.b16 %v3871
    %v4072 = vunpack.c.l.b16 %v3872
    %v4073 = vunpack.c.l.b16 %v3873
    %v4074 = vunpack.c.h.b16 %v3873
    %v4075 = vunpack.c.l.b16 %v3874
    %v4076 = vunpack.c.h.b16 %v3874
    %v4077 = vunpack.c.l.b16 %v3875
    %v4078 = vunpack.c.l.b16 %v3876
    %v4079 = vunpack.c.h.b16 %v3876
    %v4080 = vunpack.c.l.b16 %v3877
    %v4081 = vunpack.c.h.b16 %v3877
    %v4082 = vunpack.c.l.b16 %v3878
    %v4083 = vunpack.c.l.b16 %v3879
    %v4084 = vunpack.c.h.b16 %v3879
    %v4085 = vunpack.c.l.b16 %v3880
    %v4086 = vunpack.c.h.b16 %v3880
    %v4087 = vunpack.c.l.b16 %v3881
    %v4088 = vunpack.c.l.b16 %v3882
    %v4089 = vunpack.c.h.b16 %v3882
    %v4090 = vunpack.c.l.b16 %v3883
    %v4091 = vunpack.c.h.b16 %v3883
    %v4092 = vunpack.c.l.b16 %v3884
    %v4093 = vpack.c.b16 %v4058, %v4053
    %v4094 = vpack.c.b16 %v4059, %v4054
    %v4095 = vpack.c.b16 %v4060, %v4055
    %v4096 = vpack.c.b16 %v4061, %v4056
    %v4097 = vpack.c.b16 %v4062, %v4057
    %v4098 = vpack.c.b16 %v4068, %v4063
    %v4099 = vpack.c.b16 %v4069, %v4064
    %v4100 = vpack.c.b16 %v4070, %v4065
    %v4101 = vpack.c.b16 %v4071, %v4066
    %v4102 = vpack.c.b16 %v4072, %v4067
    %v4103 = vpack.c.b16 %v4078, %v4073
    %v4104 = vpack.c.b16 %v4079, %v4074
    %v4105 = vpack.c.b16 %v4080, %v4075
    %v4106 = vpack.c.b16 %v4081, %v4076
    %v4107 = vpack.c.b16 %v4082, %v4077
    %v4108 = vpack.c.b16 %v4088, %v4083
    %v4109 = vpack.c.b16 %v4089, %v4084
    %v4110 = vpack.c.b16 %v4090, %v4085
    %v4111 = vpack.c.b16 %v4091, %v4086
    %v4112 = vpack.c.b16 %v4092, %v4087
    %v4130 = vsel %vm1728, %v4097, 0
    %v4133 = vsel %vm1728, %v4102, 0
    %v4136 = vsel %vm1728, %v4107, 0
    %v4139 = vsel %vm1728, %v4112, 0
    %4141 = vmatprep.subr.bf16.mxu0 %v3886
    %4142 = vmatpush1.bf16.msra.mxu0 %v3885
    %4143 = vmatprep.subr.bf16.mxu0 %v3890
    %4144 = vmatpush1.bf16.msra.mxu0 %v3889
    %4145 = vmatprep.subr.bf16.mxu0 %v3894
    %4146 = vmatpush1.bf16.msra.mxu0 %v3893
    %4147 = vmatprep.subr.bf16.mxu0 %v3898
    %4148 = vmatpush1.bf16.msra.mxu0 %v3897
    %4149 = vmatprep.subr.bf16.mxu0 %v3902
    %4150 = vmatpush1.bf16.msra.mxu0 %v3901
    %4151 = vmatprep.subr.bf16.mxu0 %v3906
    %4152 = vmatpush1.bf16.msra.mxu0 %v3905
    %4153 = vmatprep.subr.bf16.mxu0 %v3910
    %4154 = vmatpush1.bf16.msra.mxu0 %v3909
    %4155 = vmatprep.subr.bf16.mxu0 %v3914
    %4156 = vmatpush1.bf16.msra.mxu0 %v3913
    %4157 = vmatprep.subr.bf16.mxu0 %v3918
    %4158 = vmatpush1.bf16.msra.mxu0 %v3917
    %4159 = vmatprep.subr.bf16.mxu0 %v3922
    %4160 = vmatpush1.bf16.msra.mxu0 %v3921
    %4161 = vmatprep.subr.bf16.mxu0 %v3926
    %4162 = vmatpush1.bf16.msra.mxu0 %v3925
    %4163 = vmatprep.subr.bf16.mxu0 %v3930
    %4164 = vmatpush1.bf16.msra.mxu0 %v3929
    %4165 = vmatprep.subr.bf16.mxu0 %v3934
    %4166 = vmatpush1.bf16.msra.mxu0 %v3933
    %4167 = vmatprep.subr.bf16.mxu0 %v3938
    %4168 = vmatpush1.bf16.msra.mxu0 %v3937
    %4169 = vmatprep.subr.bf16.mxu0 %v3942
    %4170 = vmatpush1.bf16.msra.mxu0 %v3941
    %4171 = vmatprep.subr.bf16.mxu0 %v3946
    %4172 = vmatpush1.bf16.msra.mxu0 %v3945
    %4173 = vmatprep.mubr.bf16.mxu0 %v4094
    %4174 = vmatmul.mubr.bf16.gmra.mrb[0].mxu0 %v4093
    %v4175 = vpop.f32.mrb[0].mxu0
    %v4176 = vadd.f32 0.0, %v4175
    %v4177 = vpop.f32.mrb[0].mxu0
    %v4178 = vadd.f32 0.0, %v4177
    %v4179 = vpop.f32.mrb[0].mxu0
    %v4180 = vadd.f32 0.0, %v4179
    %v4181 = vpop.f32.mrb[0].mxu0
    %v4182 = vadd.f32 0.0, %v4181
    %4183 = vmatprep.mubr.bf16.mxu0 %v4099
    %4184 = vmatmul.mubr.bf16.gmra.mrb[0].mxu0 %v4098
    %v4185 = vpop.f32.mrb[0].mxu0
    %v4186 = vadd.f32 0.0, %v4185
    %v4187 = vpop.f32.mrb[0].mxu0
    %v4188 = vadd.f32 0.0, %v4187
    %v4189 = vpop.f32.mrb[0].mxu0
    %v4190 = vadd.f32 0.0, %v4189
    %v4191 = vpop.f32.mrb[0].mxu0
    %v4192 = vadd.f32 0.0, %v4191
    %4193 = vmatprep.mubr.bf16.mxu0 %v4104
    %4194 = vmatmul.mubr.bf16.gmra.mrb[0].mxu0 %v4103
    %v4195 = vpop.f32.mrb[0].mxu0
    %v4196 = vadd.f32 0.0, %v4195
    %v4197 = vpop.f32.mrb[0].mxu0
    %v4198 = vadd.f32 0.0, %v4197
    %v4199 = vpop.f32.mrb[0].mxu0
    %v4200 = vadd.f32 0.0, %v4199
    %v4201 = vpop.f32.mrb[0].mxu0
    %v4202 = vadd.f32 0.0, %v4201
    %4203 = vmatprep.mubr.bf16.mxu0 %v4109
    %4204 = vmatmul.mubr.bf16.gmra.mrb[0].mxu0 %v4108
    %v4205 = vpop.f32.mrb[0].mxu0
    %v4206 = vadd.f32 0.0, %v4205
    %v4207 = vpop.f32.mrb[0].mxu0
    %v4208 = vadd.f32 0.0, %v4207
    %v4209 = vpop.f32.mrb[0].mxu0
    %v4210 = vadd.f32 0.0, %v4209
    %v4211 = vpop.f32.mrb[0].mxu0
    %v4212 = vadd.f32 0.0, %v4211
    %4213 = vdwg.mxu0
    %4214 = vmatprep.subr.bf16.mxu0 %v3950
    %4215 = vmatpush1.bf16.msra.mxu0 %v3949
    %4216 = vmatprep.subr.bf16.mxu0 %v3954
    %4217 = vmatpush1.bf16.msra.mxu0 %v3953
    %4218 = vmatprep.subr.bf16.mxu0 %v3958
    %4219 = vmatpush1.bf16.msra.mxu0 %v3957
    %4220 = vmatprep.subr.bf16.mxu0 %v3962
    %4221 = vmatpush1.bf16.msra.mxu0 %v3961
    %4222 = vmatprep.subr.bf16.mxu0 %v3966
    %4223 = vmatpush1.bf16.msra.mxu0 %v3965
    %4224 = vmatprep.subr.bf16.mxu0 %v3970
    %4225 = vmatpush1.bf16.msra.mxu0 %v3969
    %4226 = vmatprep.subr.bf16.mxu0 %v3974
    %4227 = vmatpush1.bf16.msra.mxu0 %v3973
    %4228 = vmatprep.subr.bf16.mxu0 %v3978
    %4229 = vmatpush1.bf16.msra.mxu0 %v3977
    %4230 = vmatprep.subr.bf16.mxu0 %v3982
    %4231 = vmatpush1.bf16.msra.mxu0 %v3981
    %4232 = vmatprep.subr.bf16.mxu0 %v3986
    %4233 = vmatpush1.bf16.msra.mxu0 %v3985
    %4234 = vmatprep.subr.bf16.mxu0 %v3990
    %4235 = vmatpush1.bf16.msra.mxu0 %v3989
    %4236 = vmatprep.subr.bf16.mxu0 %v3994
    %4237 = vmatpush1.bf16.msra.mxu0 %v3993
    %4238 = vmatprep.subr.bf16.mxu0 %v3998
    %4239 = vmatpush1.bf16.msra.mxu0 %v3997
    %4240 = vmatprep.subr.bf16.mxu0 %v4002
    %4241 = vmatpush1.bf16.msra.mxu0 %v4001
    %4242 = vmatprep.subr.bf16.mxu0 %v4006
    %4243 = vmatpush1.bf16.msra.mxu0 %v4005
    %4244 = vmatprep.subr.bf16.mxu0 %v4010
    %4245 = vmatpush1.bf16.msra.mxu0 %v4009
    %4246 = vmatprep.mubr.bf16.mxu0 %v4096
    %4247 = vmatmul.mubr.bf16.gmra.mrb[0].mxu0 %v4095
    %v4248 = vpop.f32.mrb[0].mxu0
    %v4249 = vadd.f32 %v4176, %v4248
    %v4250 = vpop.f32.mrb[0].mxu0
    %v4251 = vadd.f32 %v4178, %v4250
    %v4252 = vpop.f32.mrb[0].mxu0
    %v4253 = vadd.f32 %v4180, %v4252
    %v4254 = vpop.f32.mrb[0].mxu0
    %v4255 = vadd.f32 %v4182, %v4254
    %4256 = vmatprep.mubr.bf16.mxu0 %v4101
    %4257 = vmatmul.mubr.bf16.gmra.mrb[0].mxu0 %v4100
    %v4258 = vpop.f32.mrb[0].mxu0
    %v4259 = vadd.f32 %v4186, %v4258
    %v4260 = vpop.f32.mrb[0].mxu0
    %v4261 = vadd.f32 %v4188, %v4260
    %v4262 = vpop.f32.mrb[0].mxu0
    %v4263 = vadd.f32 %v4190, %v4262
    %v4264 = vpop.f32.mrb[0].mxu0
    %v4265 = vadd.f32 %v4192, %v4264
    %4266 = vmatprep.mubr.bf16.mxu0 %v4106
    %4267 = vmatmul.mubr.bf16.gmra.mrb[0].mxu0 %v4105
    %v4268 = vpop.f32.mrb[0].mxu0
    %v4269 = vadd.f32 %v4196, %v4268
    %v4270 = vpop.f32.mrb[0].mxu0
    %v4271 = vadd.f32 %v4198, %v4270
    %v4272 = vpop.f32.mrb[0].mxu0
    %v4273 = vadd.f32 %v4200, %v4272
    %v4274 = vpop.f32.mrb[0].mxu0
    %v4275 = vadd.f32 %v4202, %v4274
    %4276 = vmatprep.mubr.bf16.mxu0 %v4111
    %4277 = vmatmul.mubr.bf16.gmra.mrb[0].mxu0 %v4110
    %v4278 = vpop.f32.mrb[0].mxu0
    %v4279 = vadd.f32 %v4206, %v4278
    %v4280 = vpop.f32.mrb[0].mxu0
    %v4281 = vadd.f32 %v4208, %v4280
    %v4282 = vpop.f32.mrb[0].mxu0
    %v4283 = vadd.f32 %v4210, %v4282
    %v4284 = vpop.f32.mrb[0].mxu0
    %v4285 = vadd.f32 %v4212, %v4284
    %4286 = vdwg.mxu0
    %4287 = vmatprep.subr.bf16.mxu0 %v4014
    %4288 = vmatpush1.bf16.msra.mxu0 %v4013
    %4289 = vmatprep.subr.bf16.mxu0 %v4018
    %4290 = vmatpush1.bf16.msra.mxu0 %v4017
    %4291 = vmatprep.subr.bf16.mxu0 %v4022
    %4292 = vmatpush1.bf16.msra.mxu0 %v4021
    %4293 = vmatprep.subr.bf16.mxu0 %v4026
    %4294 = vmatpush1.bf16.msra.mxu0 %v4025
    %4295 = vmatprep.subr.bf16.mxu0 0
    %4296 = vmatpush1.bf16.msra.mxu0 0
    %4297 = vmatprep.subr.bf16.mxu0 0
    %4298 = vmatpush1.bf16.msra.mxu0 0
    %4299 = vmatprep.subr.bf16.mxu0 0
    %4300 = vmatpush1.bf16.msra.mxu0 0
    %4301 = vmatprep.subr.bf16.mxu0 0
    %4302 = vmatpush1.bf16.msra.mxu0 0
    %4303 = vmatprep.subr.bf16.mxu0 0
    %4304 = vmatpush1.bf16.msra.mxu0 0
    %4305 = vmatprep.subr.bf16.mxu0 0
    %4306 = vmatpush1.bf16.msra.mxu0 0
    %4307 = vmatprep.subr.bf16.mxu0 0
    %4308 = vmatpush1.bf16.msra.mxu0 0
    %4309 = vmatprep.subr.bf16.mxu0 0
    %4310 = vmatpush1.bf16.msra.mxu0 0
    %4311 = vmatprep.subr.bf16.mxu0 0
    %4312 = vmatpush1.bf16.msra.mxu0 0
    %4313 = vmatprep.subr.bf16.mxu0 0
    %4314 = vmatpush1.bf16.msra.mxu0 0
    %4315 = vmatprep.subr.bf16.mxu0 0
    %4316 = vmatpush1.bf16.msra.mxu0 0
    %4317 = vmatprep.subr.bf16.mxu0 0
    %4318 = vmatpush1.bf16.msra.mxu0 0
    %4319 = vmatprep.mubr.bf16.mxu0 0
    %4320 = vmatmul.mubr.bf16.gmra.mrb[0].mxu0 %v4130
    %v4321 = vpop.f32.mrb[0].mxu0
    %v4322 = vadd.f32 %v4249, %v4321
    %v4323 = vpop.f32.mrb[0].mxu0
    %v4324 = vadd.f32 %v4251, %v4323
    %v4325 = vpop.f32.mrb[0].mxu0
    %v4326 = vadd.f32 %v4253, %v4325
    %v4327 = vpop.f32.mrb[0].mxu0
    %v4328 = vadd.f32 %v4255, %v4327
    %4329 = vmatprep.mubr.bf16.mxu0 0
    %4330 = vmatmul.mubr.bf16.gmra.mrb[0].mxu0 %v4133
    %v4331 = vpop.f32.mrb[0].mxu0
    %v4332 = vadd.f32 %v4259, %v4331
    %v4333 = vpop.f32.mrb[0].mxu0
    %v4334 = vadd.f32 %v4261, %v4333
    %v4335 = vpop.f32.mrb[0].mxu0
    %v4336 = vadd.f32 %v4263, %v4335
    %v4337 = vpop.f32.mrb[0].mxu0
    %v4338 = vadd.f32 %v4265, %v4337
    %4339 = vmatprep.mubr.bf16.mxu0 0
    %4340 = vmatmul.mubr.bf16.gmra.mrb[0].mxu0 %v4136
    %v4341 = vpop.f32.mrb[0].mxu0
    %v4342 = vadd.f32 %v4269, %v4341
    %v4343 = vpop.f32.mrb[0].mxu0
    %v4344 = vadd.f32 %v4271, %v4343
    %v4345 = vpop.f32.mrb[0].mxu0
    %v4346 = vadd.f32 %v4273, %v4345
    %v4347 = vpop.f32.mrb[0].mxu0
    %v4348 = vadd.f32 %v4275, %v4347
    %4349 = vmatprep.mubr.bf16.mxu0 0
    %4350 = vmatmul.mubr.bf16.gmra.mrb[0].mxu0 %v4139
    %v4351 = vpop.f32.mrb[0].mxu0
    %v4352 = vadd.f32 %v4279, %v4351
    %v4353 = vpop.f32.mrb[0].mxu0
    %v4354 = vadd.f32 %v4281, %v4353
    %v4355 = vpop.f32.mrb[0].mxu0
    %v4356 = vadd.f32 %v4283, %v4355
    %v4357 = vpop.f32.mrb[0].mxu0
    %v4358 = vadd.f32 %v4285, %v4357
    %4359 = vdwg.mxu0
    %4360 = vmatprep.subr.bf16.mxu0 %v3888
    %4361 = vmatpush1.bf16.msra.mxu0 %v3887
    %4362 = vmatprep.subr.bf16.mxu0 %v3892
    %4363 = vmatpush1.bf16.msra.mxu0 %v3891
    %4364 = vmatprep.subr.bf16.mxu0 %v3896
    %4365 = vmatpush1.bf16.msra.mxu0 %v3895
    %4366 = vmatprep.subr.bf16.mxu0 %v3900
    %4367 = vmatpush1.bf16.msra.mxu0 %v3899
    %4368 = vmatprep.subr.bf16.mxu0 %v3904
    %4369 = vmatpush1.bf16.msra.mxu0 %v3903
    %4370 = vmatprep.subr.bf16.mxu0 %v3908
    %4371 = vmatpush1.bf16.msra.mxu0 %v3907
    %4372 = vmatprep.subr.bf16.mxu0 %v3912
    %4373 = vmatpush1.bf16.msra.mxu0 %v3911
    %4374 = vmatprep.subr.bf16.mxu0 %v3916
    %4375 = vmatpush1.bf16.msra.mxu0 %v3915
    %4376 = vmatprep.subr.bf16.mxu0 %v3920
    %4377 = vmatpush1.bf16.msra.mxu0 %v3919
    %4378 = vmatprep.subr.bf16.mxu0 %v3924
    %4379 = vmatpush1.bf16.msra.mxu0 %v3923
    %4380 = vmatprep.subr.bf16.mxu0 %v3928
    %4381 = vmatpush1.bf16.msra.mxu0 %v3927
    %4382 = vmatprep.subr.bf16.mxu0 %v3932
    %4383 = vmatpush1.bf16.msra.mxu0 %v3931
    %4384 = vmatprep.subr.bf16.mxu0 %v3936
    %4385 = vmatpush1.bf16.msra.mxu0 %v3935
    %4386 = vmatprep.subr.bf16.mxu0 %v3940
    %4387 = vmatpush1.bf16.msra.mxu0 %v3939
    %4388 = vmatprep.subr.bf16.mxu0 %v3944
    %4389 = vmatpush1.bf16.msra.mxu0 %v3943
    %4390 = vmatprep.subr.bf16.mxu0 %v3948
    %4391 = vmatpush1.bf16.msra.mxu0 %v3947
    %4392 = vmatprep.mubr.bf16.mxu0 %v4094
    %4393 = vmatmul.mubr.bf16.gmra.mrb[0].mxu0 %v4093
    %v4394 = vpop.f32.mrb[0].mxu0
    %v4395 = vadd.f32 0.0, %v4394
    %v4396 = vpop.f32.mrb[0].mxu0
    %v4397 = vadd.f32 0.0, %v4396
    %v4398 = vpop.f32.mrb[0].mxu0
    %v4399 = vadd.f32 0.0, %v4398
    %v4400 = vpop.f32.mrb[0].mxu0
    %v4401 = vadd.f32 0.0, %v4400
    %4402 = vmatprep.mubr.bf16.mxu0 %v4099
    %4403 = vmatmul.mubr.bf16.gmra.mrb[0].mxu0 %v4098
    %v4404 = vpop.f32.mrb[0].mxu0
    %v4405 = vadd.f32 0.0, %v4404
    %v4406 = vpop.f32.mrb[0].mxu0
    %v4407 = vadd.f32 0.0, %v4406
    %v4408 = vpop.f32.mrb[0].mxu0
    %v4409 = vadd.f32 0.0, %v4408
    %v4410 = vpop.f32.mrb[0].mxu0
    %v4411 = vadd.f32 0.0, %v4410
    %4412 = vmatprep.mubr.bf16.mxu0 %v4104
    %4413 = vmatmul.mubr.bf16.gmra.mrb[0].mxu0 %v4103
    %v4414 = vpop.f32.mrb[0].mxu0
    %v4415 = vadd.f32 0.0, %v4414
    %v4416 = vpop.f32.mrb[0].mxu0
    %v4417 = vadd.f32 0.0, %v4416
    %v4418 = vpop.f32.mrb[0].mxu0
    %v4419 = vadd.f32 0.0, %v4418
    %v4420 = vpop.f32.mrb[0].mxu0
    %v4421 = vadd.f32 0.0, %v4420
    %4422 = vmatprep.mubr.bf16.mxu0 %v4109
    %4423 = vmatmul.mubr.bf16.gmra.mrb[0].mxu0 %v4108
    %v4424 = vpop.f32.mrb[0].mxu0
    %v4425 = vadd.f32 0.0, %v4424
    %v4426 = vpop.f32.mrb[0].mxu0
    %v4427 = vadd.f32 0.0, %v4426
    %v4428 = vpop.f32.mrb[0].mxu0
    %v4429 = vadd.f32 0.0, %v4428
    %v4430 = vpop.f32.mrb[0].mxu0
    %v4431 = vadd.f32 0.0, %v4430
    %4432 = vdwg.mxu0
    %4433 = vmatprep.subr.bf16.mxu0 %v3952
    %4434 = vmatpush1.bf16.msra.mxu0 %v3951
    %4435 = vmatprep.subr.bf16.mxu0 %v3956
    %4436 = vmatpush1.bf16.msra.mxu0 %v3955
    %4437 = vmatprep.subr.bf16.mxu0 %v3960
    %4438 = vmatpush1.bf16.msra.mxu0 %v3959
    %4439 = vmatprep.subr.bf16.mxu0 %v3964
    %4440 = vmatpush1.bf16.msra.mxu0 %v3963
    %4441 = vmatprep.subr.bf16.mxu0 %v3968
    %4442 = vmatpush1.bf16.msra.mxu0 %v3967
    %4443 = vmatprep.subr.bf16.mxu0 %v3972
    %4444 = vmatpush1.bf16.msra.mxu0 %v3971
    %4445 = vmatprep.subr.bf16.mxu0 %v3976
    %4446 = vmatpush1.bf16.msra.mxu0 %v3975
    %4447 = vmatprep.subr.bf16.mxu0 %v3980
    %4448 = vmatpush1.bf16.msra.mxu0 %v3979
    %4449 = vmatprep.subr.bf16.mxu0 %v3984
    %4450 = vmatpush1.bf16.msra.mxu0 %v3983
    %4451 = vmatprep.subr.bf16.mxu0 %v3988
    %4452 = vmatpush1.bf16.msra.mxu0 %v3987
    %4453 = vmatprep.subr.bf16.mxu0 %v3992
    %4454 = vmatpush1.bf16.msra.mxu0 %v3991
    %4455 = vmatprep.subr.bf16.mxu0 %v3996
    %4456 = vmatpush1.bf16.msra.mxu0 %v3995
    %4457 = vmatprep.subr.bf16.mxu0 %v4000
    %4458 = vmatpush1.bf16.msra.mxu0 %v3999
    %4459 = vmatprep.subr.bf16.mxu0 %v4004
    %4460 = vmatpush1.bf16.msra.mxu0 %v4003
    %4461 = vmatprep.subr.bf16.mxu0 %v4008
    %4462 = vmatpush1.bf16.msra.mxu0 %v4007
    %4463 = vmatprep.subr.bf16.mxu0 %v4012
    %4464 = vmatpush1.bf16.msra.mxu0 %v4011
    %4465 = vmatprep.mubr.bf16.mxu0 %v4096
    %4466 = vmatmul.mubr.bf16.gmra.mrb[0].mxu0 %v4095
    %v4467 = vpop.f32.mrb[0].mxu0
    %v4468 = vadd.f32 %v4395, %v4467
    %v4469 = vpop.f32.mrb[0].mxu0
    %v4470 = vadd.f32 %v4397, %v4469
    %v4471 = vpop.f32.mrb[0].mxu0
    %v4472 = vadd.f32 %v4399, %v4471
    %v4473 = vpop.f32.mrb[0].mxu0
    %v4474 = vadd.f32 %v4401, %v4473
    %4475 = vmatprep.mubr.bf16.mxu0 %v4101
    %4476 = vmatmul.mubr.bf16.gmra.mrb[0].mxu0 %v4100
    %v4477 = vpop.f32.mrb[0].mxu0
    %v4478 = vadd.f32 %v4405, %v4477
    %v4479 = vpop.f32.mrb[0].mxu0
    %v4480 = vadd.f32 %v4407, %v4479
    %v4481 = vpop.f32.mrb[0].mxu0
    %v4482 = vadd.f32 %v4409, %v4481
    %v4483 = vpop.f32.mrb[0].mxu0
    %v4484 = vadd.f32 %v4411, %v4483
    %4485 = vmatprep.mubr.bf16.mxu0 %v4106
    %4486 = vmatmul.mubr.bf16.gmra.mrb[0].mxu0 %v4105
    %v4487 = vpop.f32.mrb[0].mxu0
    %v4488 = vadd.f32 %v4415, %v4487
    %v4489 = vpop.f32.mrb[0].mxu0
    %v4490 = vadd.f32 %v4417, %v4489
    %v4491 = vpop.f32.mrb[0].mxu0
    %v4492 = vadd.f32 %v4419, %v4491
    %v4493 = vpop.f32.mrb[0].mxu0
    %v4494 = vadd.f32 %v4421, %v4493
    %4495 = vmatprep.mubr.bf16.mxu0 %v4111
    %4496 = vmatmul.mubr.bf16.gmra.mrb[0].mxu0 %v4110
    %v4497 = vpop.f32.mrb[0].mxu0
    %v4498 = vadd.f32 %v4425, %v4497
    %v4499 = vpop.f32.mrb[0].mxu0
    %v4500 = vadd.f32 %v4427, %v4499
    %v4501 = vpop.f32.mrb[0].mxu0
    %v4502 = vadd.f32 %v4429, %v4501
    %v4503 = vpop.f32.mrb[0].mxu0
    %v4504 = vadd.f32 %v4431, %v4503
    %4505 = vdwg.mxu0
    %4506 = vmatprep.subr.bf16.mxu0 %v4016
    %4507 = vmatpush1.bf16.msra.mxu0 %v4015
    %4508 = vmatprep.subr.bf16.mxu0 %v4020
    %4509 = vmatpush1.bf16.msra.mxu0 %v4019
    %4510 = vmatprep.subr.bf16.mxu0 %v4024
    %4511 = vmatpush1.bf16.msra.mxu0 %v4023
    %4512 = vmatprep.subr.bf16.mxu0 %v4028
    %4513 = vmatpush1.bf16.msra.mxu0 %v4027
    %4514 = vmatprep.subr.bf16.mxu0 0
    %4515 = vmatpush1.bf16.msra.mxu0 0
    %4516 = vmatprep.subr.bf16.mxu0 0
    %4517 = vmatpush1.bf16.msra.mxu0 0
    %4518 = vmatprep.subr.bf16.mxu0 0
    %4519 = vmatpush1.bf16.msra.mxu0 0
    %4520 = vmatprep.subr.bf16.mxu0 0
    %4521 = vmatpush1.bf16.msra.mxu0 0
    %4522 = vmatprep.subr.bf16.mxu0 0
    %4523 = vmatpush1.bf16.msra.mxu0 0
    %4524 = vmatprep.subr.bf16.mxu0 0
    %4525 = vmatpush1.bf16.msra.mxu0 0
    %4526 = vmatprep.subr.bf16.mxu0 0
    %4527 = vmatpush1.bf16.msra.mxu0 0
    %4528 = vmatprep.subr.bf16.mxu0 0
    %4529 = vmatpush1.bf16.msra.mxu0 0
    %4530 = vmatprep.subr.bf16.mxu0 0
    %4531 = vmatpush1.bf16.msra.mxu0 0
    %4532 = vmatprep.subr.bf16.mxu0 0
    %4533 = vmatpush1.bf16.msra.mxu0 0
    %4534 = vmatprep.subr.bf16.mxu0 0
    %4535 = vmatpush1.bf16.msra.mxu0 0
    %4536 = vmatprep.subr.bf16.mxu0 0
    %4537 = vmatpush1.bf16.msra.mxu0 0
    %4538 = vmatprep.mubr.bf16.mxu0 0
    %4539 = vmatmul.mubr.bf16.gmra.mrb[0].mxu0 %v4130
    %v4540 = vpop.f32.mrb[0].mxu0
    %v4541 = vadd.f32 %v4468, %v4540
    %v4542 = vpop.f32.mrb[0].mxu0
    %v4543 = vadd.f32 %v4470, %v4542
    %v4544 = vpop.f32.mrb[0].mxu0
    %v4545 = vadd.f32 %v4472, %v4544
    %v4546 = vpop.f32.mrb[0].mxu0
    %v4547 = vadd.f32 %v4474, %v4546
    %4548 = vmatprep.mubr.bf16.mxu0 0
    %4549 = vmatmul.mubr.bf16.gmra.mrb[0].mxu0 %v4133
    %v4550 = vpop.f32.mrb[0].mxu0
    %v4551 = vadd.f32 %v4478, %v4550
    %v4552 = vpop.f32.mrb[0].mxu0
    %v4553 = vadd.f32 %v4480, %v4552
    %v4554 = vpop.f32.mrb[0].mxu0
    %v4555 = vadd.f32 %v4482, %v4554
    %v4556 = vpop.f32.mrb[0].mxu0
    %v4557 = vadd.f32 %v4484, %v4556
    %4558 = vmatprep.mubr.bf16.mxu0 0
    %4559 = vmatmul.mubr.bf16.gmra.mrb[0].mxu0 %v4136
    %v4560 = vpop.f32.mrb[0].mxu0
    %v4561 = vadd.f32 %v4488, %v4560
    %v4562 = vpop.f32.mrb[0].mxu0
    %v4563 = vadd.f32 %v4490, %v4562
    %v4564 = vpop.f32.mrb[0].mxu0
    %v4565 = vadd.f32 %v4492, %v4564
    %v4566 = vpop.f32.mrb[0].mxu0
    %v4567 = vadd.f32 %v4494, %v4566
    %4568 = vmatprep.mubr.bf16.mxu0 0
    %4569 = vmatmul.mubr.bf16.gmra.mrb[0].mxu0 %v4139
    %v4570 = vpop.f32.mrb[0].mxu0
    %v4571 = vadd.f32 %v4498, %v4570
    %v4572 = vpop.f32.mrb[0].mxu0
    %v4573 = vadd.f32 %v4500, %v4572
    %v4574 = vpop.f32.mrb[0].mxu0
    %v4575 = vadd.f32 %v4502, %v4574
    %v4576 = vpop.f32.mrb[0].mxu0
    %v4577 = vadd.f32 %v4504, %v4576
    %4578 = vdwg.mxu0
    %v4579 = vadd.f32 %v4322, %v4324
    %v4580 = vadd.f32 %v4579, %v4541
    %v4581 = vadd.f32 %v4580, %v4543
    %4582 = vadd.xlane.f32.xlu0 %v4581
    %v4583 = vpop.xlane.xlu0 %4582
    %v4584 = vadd.f32 %v4326, %v4328
    %v4585 = vadd.f32 %v4584, %v4545
    %v4586 = vadd.f32 %v4585, %v4547
    %4587 = vadd.xlane.f32.xlu0 %v4586
    %v4588 = vpop.xlane.xlu0 %4587
    %v4589 = vadd.f32 %v4332, %v4334
    %v4590 = vadd.f32 %v4589, %v4551
    %v4591 = vadd.f32 %v4590, %v4553
    %4592 = vadd.xlane.f32.xlu0 %v4591
    %v4593 = vpop.xlane.xlu0 %4592
    %v4594 = vadd.f32 %v4336, %v4338
    %v4595 = vadd.f32 %v4594, %v4555
    %v4596 = vadd.f32 %v4595, %v4557
    %4597 = vadd.xlane.f32.xlu0 %v4596
    %v4598 = vpop.xlane.xlu0 %4597
    %v4599 = vadd.f32 %v4342, %v4344
    %v4600 = vadd.f32 %v4599, %v4561
    %v4601 = vadd.f32 %v4600, %v4563
    %4602 = vadd.xlane.f32.xlu0 %v4601
    %v4603 = vpop.xlane.xlu0 %4602
    %v4604 = vadd.f32 %v4346, %v4348
    %v4605 = vadd.f32 %v4604, %v4565
    %v4606 = vadd.f32 %v4605, %v4567
    %4607 = vadd.xlane.f32.xlu0 %v4606
    %v4608 = vpop.xlane.xlu0 %4607
    %v4609 = vadd.f32 %v4352, %v4354
    %v4610 = vadd.f32 %v4609, %v4571
    %v4611 = vadd.f32 %v4610, %v4573
    %4612 = vadd.xlane.f32.xlu0 %v4611
    %v4613 = vpop.xlane.xlu0 %4612
    %v4614 = vadd.f32 %v4356, %v4358
    %v4615 = vadd.f32 %v4614, %v4575
    %v4616 = vadd.f32 %v4615, %v4577
    %4617 = vadd.xlane.f32.xlu0 %v4616
    %v4618 = vpop.xlane.xlu0 %4617
    %v4619 = vmul.f32 %v4322, %v4322
    %v4620 = vmul.f32 %v4324, %v4324
    %v4621 = vmul.f32 %v4541, %v4541
    %v4622 = vmul.f32 %v4543, %v4543
    %v4623 = vmul.f32 %v4326, %v4326
    %v4624 = vmul.f32 %v4328, %v4328
    %v4625 = vmul.f32 %v4545, %v4545
    %v4626 = vmul.f32 %v4547, %v4547
    %v4627 = vmul.f32 %v4332, %v4332
    %v4628 = vmul.f32 %v4334, %v4334
    %v4629 = vmul.f32 %v4551, %v4551
    %v4630 = vmul.f32 %v4553, %v4553
    %v4631 = vmul.f32 %v4336, %v4336
    %v4632 = vmul.f32 %v4338, %v4338
    %v4633 = vmul.f32 %v4555, %v4555
    %v4634 = vmul.f32 %v4557, %v4557
    %v4635 = vmul.f32 %v4342, %v4342
    %v4636 = vmul.f32 %v4344, %v4344
    %v4637 = vmul.f32 %v4561, %v4561
    %v4638 = vmul.f32 %v4563, %v4563
    %v4639 = vmul.f32 %v4346, %v4346
    %v4640 = vmul.f32 %v4348, %v4348
    %v4641 = vmul.f32 %v4565, %v4565
    %v4642 = vmul.f32 %v4567, %v4567
    %v4643 = vmul.f32 %v4352, %v4352
    %v4644 = vmul.f32 %v4354, %v4354
    %v4645 = vmul.f32 %v4571, %v4571
    %v4646 = vmul.f32 %v4573, %v4573
    %v4647 = vmul.f32 %v4356, %v4356
    %v4648 = vmul.f32 %v4358, %v4358
    %v4649 = vmul.f32 %v4575, %v4575
    %v4650 = vmul.f32 %v4577, %v4577
    %v4651 = vadd.f32 %v4619, %v4620
    %v4652 = vadd.f32 %v4651, %v4621
    %v4653 = vadd.f32 %v4652, %v4622
    %4654 = vadd.xlane.f32.xlu0 %v4653
    %v4655 = vpop.xlane.xlu0 %4654
    %v4656 = vadd.f32 %v4623, %v4624
    %v4657 = vadd.f32 %v4656, %v4625
    %v4658 = vadd.f32 %v4657, %v4626
    %4659 = vadd.xlane.f32.xlu0 %v4658
    %v4660 = vpop.xlane.xlu0 %4659
    %v4661 = vadd.f32 %v4627, %v4628
    %v4662 = vadd.f32 %v4661, %v4629
    %v4663 = vadd.f32 %v4662, %v4630
    %4664 = vadd.xlane.f32.xlu0 %v4663
    %v4665 = vpop.xlane.xlu0 %4664
    %v4666 = vadd.f32 %v4631, %v4632
    %v4667 = vadd.f32 %v4666, %v4633
    %v4668 = vadd.f32 %v4667, %v4634
    %4669 = vadd.xlane.f32.xlu0 %v4668
    %v4670 = vpop.xlane.xlu0 %4669
    %v4671 = vadd.f32 %v4635, %v4636
    %v4672 = vadd.f32 %v4671, %v4637
    %v4673 = vadd.f32 %v4672, %v4638
    %4674 = vadd.xlane.f32.xlu0 %v4673
    %v4675 = vpop.xlane.xlu0 %4674
    %v4676 = vadd.f32 %v4639, %v4640
    %v4677 = vadd.f32 %v4676, %v4641
    %v4678 = vadd.f32 %v4677, %v4642
    %4679 = vadd.xlane.f32.xlu0 %v4678
    %v4680 = vpop.xlane.xlu0 %4679
    %v4681 = vadd.f32 %v4643, %v4644
    %v4682 = vadd.f32 %v4681, %v4645
    %v4683 = vadd.f32 %v4682, %v4646
    %4684 = vadd.xlane.f32.xlu0 %v4683
    %v4685 = vpop.xlane.xlu0 %4684
    %v4686 = vadd.f32 %v4647, %v4648
    %v4687 = vadd.f32 %v4686, %v4649
    %v4688 = vadd.f32 %v4687, %v4650
    %4689 = vadd.xlane.f32.xlu0 %v4688
    %v4690 = vpop.xlane.xlu0 %4689
    %v4691 = vmul.f32 %v4583, 0.001953125
    %v4692 = vmul.f32 %v4588, 0.001953125
    %v4693 = vmul.f32 %v4593, 0.001953125
    %v4694 = vmul.f32 %v4598, 0.001953125
    %v4695 = vmul.f32 %v4603, 0.001953125
    %v4696 = vmul.f32 %v4608, 0.001953125
    %v4697 = vmul.f32 %v4613, 0.001953125
    %v4698 = vmul.f32 %v4618, 0.001953125
    %v4699 = vmul.f32 %v4655, 0.001953125
    %v4700 = vmul.f32 %v4660, 0.001953125
    %v4701 = vmul.f32 %v4665, 0.001953125
    %v4702 = vmul.f32 %v4670, 0.001953125
    %v4703 = vmul.f32 %v4675, 0.001953125
    %v4704 = vmul.f32 %v4680, 0.001953125
    %v4705 = vmul.f32 %v4685, 0.001953125
    %v4706 = vmul.f32 %v4690, 0.001953125
    %v4707 = vmul.f32 %v4691, %v4691
    %v4708 = vmul.f32 %v4692, %v4692
    %v4709 = vmul.f32 %v4693, %v4693
    %v4710 = vmul.f32 %v4694, %v4694
    %v4711 = vmul.f32 %v4695, %v4695
    %v4712 = vmul.f32 %v4696, %v4696
    %v4713 = vmul.f32 %v4697, %v4697
    %v4714 = vmul.f32 %v4698, %v4698
    %v4715 = vsub.f32 %v4699, %v4707
    %v4716 = vsub.f32 %v4700, %v4708
    %v4717 = vsub.f32 %v4701, %v4709
    %v4718 = vsub.f32 %v4702, %v4710
    %v4719 = vsub.f32 %v4703, %v4711
    %v4720 = vsub.f32 %v4704, %v4712
    %v4721 = vsub.f32 %v4705, %v4713
    %v4722 = vsub.f32 %v4706, %v4714
    %v4723 = vld [vmem:[%s6] sm:$0xff]
    %v4724 = vld [vmem:[%s6 + $0x8] sm:$0xff]
    %v4725 = vld [vmem:[%s6 + $0x10] sm:$0xff]
    %v4726 = vld [vmem:[%s6 + $0x18] sm:$0xff]
    %v4727 = vld [vmem:[%s6 + $0x20] sm:$0xff]
    %v4728 = vld [vmem:[%s6 + $0x28] sm:$0xff]
    %v4729 = vld [vmem:[%s6 + $0x30] sm:$0xff]
    %v4730 = vld [vmem:[%s6 + $0x38] sm:$0xff]
    %v4731 = vadd.f32 %v4715, 1e-05
    %v4732 = vadd.f32 %v4716, 1e-05
    %v4733 = vadd.f32 %v4717, 1e-05
    %v4734 = vadd.f32 %v4718, 1e-05
    %v4735 = vadd.f32 %v4719, 1e-05
    %v4736 = vadd.f32 %v4720, 1e-05
    %v4737 = vadd.f32 %v4721, 1e-05
    %v4738 = vadd.f32 %v4722, 1e-05
    %v4739 = vrsqrt.pop %v4731
    %v4740 = vrsqrt.pop %v4732
    %v4741 = vrsqrt.pop %v4733
    %v4742 = vrsqrt.pop %v4734
    %v4743 = vrsqrt.pop %v4735
    %v4744 = vrsqrt.pop %v4736
    %v4745 = vrsqrt.pop %v4737
    %v4746 = vrsqrt.pop %v4738
    %v4747 = vmul.f32 %v4723, %v4739
    %v4748 = vmul.f32 %v4724, %v4740
    %v4749 = vmul.f32 %v4725, %v4741
    %v4750 = vmul.f32 %v4726, %v4742
    %v4751 = vmul.f32 %v4727, %v4743
    %v4752 = vmul.f32 %v4728, %v4744
    %v4753 = vmul.f32 %v4729, %v4745
    %v4754 = vmul.f32 %v4730, %v4746
    %v4755 = vld [vmem:[%s7] sm:$0xff]
    %v4756 = vld [vmem:[%s7 + $0x8] sm:$0xff]
    %v4757 = vld [vmem:[%s7 + $0x10] sm:$0xff]
    %v4758 = vld [vmem:[%s7 + $0x18] sm:$0xff]
    %v4759 = vld [vmem:[%s7 + $0x20] sm:$0xff]
    %v4760 = vld [vmem:[%s7 + $0x28] sm:$0xff]
    %v4761 = vld [vmem:[%s7 + $0x30] sm:$0xff]
    %v4762 = vld [vmem:[%s7 + $0x38] sm:$0xff]
    %v4763 = vmul.f32 %v4691, %v4747
    %v4764 = vmul.f32 %v4692, %v4748
    %v4765 = vmul.f32 %v4693, %v4749
    %v4766 = vmul.f32 %v4694, %v4750
    %v4767 = vmul.f32 %v4695, %v4751
    %v4768 = vmul.f32 %v4696, %v4752
    %v4769 = vmul.f32 %v4697, %v4753
    %v4770 = vmul.f32 %v4698, %v4754
    %v4771 = vsub.f32 %v4755, %v4763
    %v4772 = vsub.f32 %v4756, %v4764
    %v4773 = vsub.f32 %v4757, %v4765
    %v4774 = vsub.f32 %v4758, %v4766
    %v4775 = vsub.f32 %v4759, %v4767
    %v4776 = vsub.f32 %v4760, %v4768
    %v4777 = vsub.f32 %v4761, %v4769
    %v4778 = vsub.f32 %v4762, %v4770
    %4780 = vset.pattern.permute.xlu0 0
    %4781 = vperm.xlu0 %4780, %v4747
    %v4782 = vpop.permute.xlu0 %4781
    %4785 = vset.pattern.permute.xlu0 0
    %4786 = vperm.xlu0 %4785, %v4748
    %v4787 = vpop.permute.xlu0 %4786
    %4790 = vset.pattern.permute.xlu0 0
    %4791 = vperm.xlu0 %4790, %v4749
    %v4792 = vpop.permute.xlu0 %4791
    %4795 = vset.pattern.permute.xlu0 0
    %4796 = vperm.xlu0 %4795, %v4750
    %v4797 = vpop.permute.xlu0 %4796
    %4800 = vset.pattern.permute.xlu0 0
    %4801 = vperm.xlu0 %4800, %v4751
    %v4802 = vpop.permute.xlu0 %4801
    %4805 = vset.pattern.permute.xlu0 0
    %4806 = vperm.xlu0 %4805, %v4752
    %v4807 = vpop.permute.xlu0 %4806
    %4810 = vset.pattern.permute.xlu0 0
    %4811 = vperm.xlu0 %4810, %v4753
    %v4812 = vpop.permute.xlu0 %4811
    %4815 = vset.pattern.permute.xlu0 0
    %4816 = vperm.xlu0 %4815, %v4754
    %v4817 = vpop.permute.xlu0 %4816
    %v4819 = vmul.f32 %v4322, %v4782
    %v4820 = vmul.f32 %v4324, %v4782
    %v4821 = vmul.f32 %v4541, %v4782
    %v4822 = vmul.f32 %v4543, %v4782
    %v4823 = vmul.f32 %v4326, %v4787
    %v4824 = vmul.f32 %v4328, %v4787
    %v4825 = vmul.f32 %v4545, %v4787
    %v4826 = vmul.f32 %v4547, %v4787
    %v4827 = vmul.f32 %v4332, %v4792
    %v4828 = vmul.f32 %v4334, %v4792
    %v4829 = vmul.f32 %v4551, %v4792
    %v4830 = vmul.f32 %v4553, %v4792
    %v4831 = vmul.f32 %v4336, %v4797
    %v4832 = vmul.f32 %v4338, %v4797
    %v4833 = vmul.f32 %v4555, %v4797
    %v4834 = vmul.f32 %v4557, %v4797
    %v4835 = vmul.f32 %v4342, %v4802
    %v4836 = vmul.f32 %v4344, %v4802
    %v4837 = vmul.f32 %v4561, %v4802
    %v4838 = vmul.f32 %v4563, %v4802
    %v4839 = vmul.f32 %v4346, %v4807
    %v4840 = vmul.f32 %v4348, %v4807
    %v4841 = vmul.f32 %v4565, %v4807
    %v4842 = vmul.f32 %v4567, %v4807
    %v4843 = vmul.f32 %v4352, %v4812
    %v4844 = vmul.f32 %v4354, %v4812
    %v4845 = vmul.f32 %v4571, %v4812
    %v4846 = vmul.f32 %v4573, %v4812
    %v4847 = vmul.f32 %v4356, %v4817
    %v4848 = vmul.f32 %v4358, %v4817
    %v4849 = vmul.f32 %v4575, %v4817
    %v4850 = vmul.f32 %v4577, %v4817
    %4852 = vset.pattern.permute.xlu0 0
    %4853 = vperm.xlu0 %4852, %v4771
    %v4854 = vpop.permute.xlu0 %4853
    %4857 = vset.pattern.permute.xlu0 0
    %4858 = vperm.xlu0 %4857, %v4772
    %v4859 = vpop.permute.xlu0 %4858
    %4862 = vset.pattern.permute.xlu0 0
    %4863 = vperm.xlu0 %4862, %v4773
    %v4864 = vpop.permute.xlu0 %4863
    %4867 = vset.pattern.permute.xlu0 0
    %4868 = vperm.xlu0 %4867, %v4774
    %v4869 = vpop.permute.xlu0 %4868
    %4872 = vset.pattern.permute.xlu0 0
    %4873 = vperm.xlu0 %4872, %v4775
    %v4874 = vpop.permute.xlu0 %4873
    %4877 = vset.pattern.permute.xlu0 0
    %4878 = vperm.xlu0 %4877, %v4776
    %v4879 = vpop.permute.xlu0 %4878
    %4882 = vset.pattern.permute.xlu0 0
    %4883 = vperm.xlu0 %4882, %v4777
    %v4884 = vpop.permute.xlu0 %4883
    %4887 = vset.pattern.permute.xlu0 0
    %4888 = vperm.xlu0 %4887, %v4778
    %v4889 = vpop.permute.xlu0 %4888
    %v4891 = vadd.f32 %v4819, %v4854
    %v4892 = vadd.f32 %v4820, %v4854
    %v4893 = vadd.f32 %v4821, %v4854
    %v4894 = vadd.f32 %v4822, %v4854
    %v4895 = vadd.f32 %v4823, %v4859
    %v4896 = vadd.f32 %v4824, %v4859
    %v4897 = vadd.f32 %v4825, %v4859
    %v4898 = vadd.f32 %v4826, %v4859
    %v4899 = vadd.f32 %v4827, %v4864
    %v4900 = vadd.f32 %v4828, %v4864
    %v4901 = vadd.f32 %v4829, %v4864
    %v4902 = vadd.f32 %v4830, %v4864
    %v4903 = vadd.f32 %v4831, %v4869
    %v4904 = vadd.f32 %v4832, %v4869
    %v4905 = vadd.f32 %v4833, %v4869
    %v4906 = vadd.f32 %v4834, %v4869
    %v4907 = vadd.f32 %v4835, %v4874
    %v4908 = vadd.f32 %v4836, %v4874
    %v4909 = vadd.f32 %v4837, %v4874
    %v4910 = vadd.f32 %v4838, %v4874
    %v4911 = vadd.f32 %v4839, %v4879
    %v4912 = vadd.f32 %v4840, %v4879
    %v4913 = vadd.f32 %v4841, %v4879
    %v4914 = vadd.f32 %v4842, %v4879
    %v4915 = vadd.f32 %v4843, %v4884
    %v4916 = vadd.f32 %v4844, %v4884
    %v4917 = vadd.f32 %v4845, %v4884
    %v4918 = vadd.f32 %v4846, %v4884
    %v4919 = vadd.f32 %v4847, %v4889
    %v4920 = vadd.f32 %v4848, %v4889
    %v4921 = vadd.f32 %v4849, %v4889
    %v4922 = vadd.f32 %v4850, %v4889
    %v4923 = vld [vmem:[%s0] sm:$0xff]
    %v4924 = vld [vmem:[%s0 + $0x8] sm:$0xff]
    %v4925 = vld [vmem:[%s0 + $0x10] sm:$0xff]
    %v4926 = vld [vmem:[%s0 + $0x18] sm:$0xff]
    %v4927 = vld [vmem:[%s0 + $0x20] sm:$0xff]
    %v4928 = vld [vmem:[%s0 + $0x28] sm:$0xff]
    %v4929 = vld [vmem:[%s0 + $0x30] sm:$0xff]
    %v4930 = vld [vmem:[%s0 + $0x38] sm:$0xff]
    %v4931 = vld [vmem:[%s0 + $0x40] sm:$0xff]
    %v4932 = vld [vmem:[%s0 + $0x48] sm:$0xff]
    %v4933 = vld [vmem:[%s0 + $0x50] sm:$0xff]
    %v4934 = vld [vmem:[%s0 + $0x58] sm:$0xff]
    %v4935 = vld [vmem:[%s0 + $0x60] sm:$0xff]
    %v4936 = vld [vmem:[%s0 + $0x68] sm:$0xff]
    %v4937 = vld [vmem:[%s0 + $0x70] sm:$0xff]
    %v4938 = vld [vmem:[%s0 + $0x78] sm:$0xff]
    %v4939 = vadd.f32 %v4891, %v4923
    %v4940 = vadd.f32 %v4892, %v4924
    %v4941 = vadd.f32 %v4895, %v4925
    %v4942 = vadd.f32 %v4896, %v4926
    %v4943 = vadd.f32 %v4899, %v4927
    %v4944 = vadd.f32 %v4900, %v4928
    %v4945 = vadd.f32 %v4903, %v4929
    %v4946 = vadd.f32 %v4904, %v4930
    %v4947 = vadd.f32 %v4907, %v4931
    %v4948 = vadd.f32 %v4908, %v4932
    %v4949 = vadd.f32 %v4911, %v4933
    %v4950 = vadd.f32 %v4912, %v4934
    %v4951 = vadd.f32 %v4915, %v4935
    %v4952 = vadd.f32 %v4916, %v4936
    %v4953 = vadd.f32 %v4919, %v4937
    %v4954 = vadd.f32 %v4920, %v4938
    %4955 = vst [vmem:[#allocation10] sm:$0xff] %v4939
    %4956 = vst [vmem:[#allocation10 + $0x8] sm:$0xff] %v4940
    %4957 = vst [vmem:[#allocation10 + $0x10] sm:$0xff] %v4941
    %4958 = vst [vmem:[#allocation10 + $0x18] sm:$0xff] %v4942
    %4959 = vst [vmem:[#allocation10 + $0x20] sm:$0xff] %v4943
    %4960 = vst [vmem:[#allocation10 + $0x28] sm:$0xff] %v4944
    %4961 = vst [vmem:[#allocation10 + $0x30] sm:$0xff] %v4945
    %4962 = vst [vmem:[#allocation10 + $0x38] sm:$0xff] %v4946
    %4963 = vst [vmem:[#allocation10 + $0x40] sm:$0xff] %v4947
    %4964 = vst [vmem:[#allocation10 + $0x48] sm:$0xff] %v4948
    %4965 = vst [vmem:[#allocation10 + $0x50] sm:$0xff] %v4949
    %4966 = vst [vmem:[#allocation10 + $0x58] sm:$0xff] %v4950
    %4967 = vst [vmem:[#allocation10 + $0x60] sm:$0xff] %v4951
    %4968 = vst [vmem:[#allocation10 + $0x68] sm:$0xff] %v4952
    %4969 = vst [vmem:[#allocation10 + $0x70] sm:$0xff] %v4953
    %4970 = vst [vmem:[#allocation10 + $0x78] sm:$0xff] %v4954
    %v4971 = vld [vmem:[%s142] sm:$0xff]
    %v4972 = vld [vmem:[%s142 + $0x8] sm:$0xff]
    %v4973 = vld [vmem:[%s142 + $0x10] sm:$0xff]
    %v4974 = vld [vmem:[%s142 + $0x18] sm:$0xff]
    %v4975 = vld [vmem:[%s142 + $0x20] sm:$0xff]
    %v4976 = vld [vmem:[%s142 + $0x28] sm:$0xff]
    %v4977 = vld [vmem:[%s142 + $0x30] sm:$0xff]
    %v4978 = vld [vmem:[%s142 + $0x38] sm:$0xff]
    %v4979 = vld [vmem:[%s142 + $0x40] sm:$0xff]
    %v4980 = vld [vmem:[%s142 + $0x48] sm:$0xff]
    %v4981 = vld [vmem:[%s142 + $0x50] sm:$0xff]
    %v4982 = vld [vmem:[%s142 + $0x58] sm:$0xff]
    %v4983 = vld [vmem:[%s142 + $0x60] sm:$0xff]
    %v4984 = vld [vmem:[%s142 + $0x68] sm:$0xff]
    %v4985 = vld [vmem:[%s142 + $0x70] sm:$0xff]
    %v4986 = vld [vmem:[%s142 + $0x78] sm:$0xff]
    %v4987 = vadd.f32 %v4893, %v4971
    %v4988 = vadd.f32 %v4894, %v4972
    %v4989 = vadd.f32 %v4897, %v4973
    %v4990 = vadd.f32 %v4898, %v4974
    %v4991 = vadd.f32 %v4901, %v4975
    %v4992 = vadd.f32 %v4902, %v4976
    %v4993 = vadd.f32 %v4905, %v4977
    %v4994 = vadd.f32 %v4906, %v4978
    %v4995 = vadd.f32 %v4909, %v4979
    %v4996 = vadd.f32 %v4910, %v4980
    %v4997 = vadd.f32 %v4913, %v4981
    %v4998 = vadd.f32 %v4914, %v4982
    %v4999 = vadd.f32 %v4917, %v4983
    %v5000 = vadd.f32 %v4918, %v4984
    %v5001 = vadd.f32 %v4921, %v4985
    %v5002 = vadd.f32 %v4922, %v4986
    %s5003 = scalar_lea.vmem [#allocation10], 128
    %5004 = vst [vmem:[%s5003] sm:$0xff] %v4987
    %5005 = vst [vmem:[%s5003 + $0x8] sm:$0xff] %v4988
    %5006 = vst [vmem:[%s5003 + $0x10] sm:$0xff] %v4989
    %5007 = vst [vmem:[%s5003 + $0x18] sm:$0xff] %v4990
    %5008 = vst [vmem:[%s5003 + $0x20] sm:$0xff] %v4991
    %5009 = vst [vmem:[%s5003 + $0x28] sm:$0xff] %v4992
    %5010 = vst [vmem:[%s5003 + $0x30] sm:$0xff] %v4993
    %5011 = vst [vmem:[%s5003 + $0x38] sm:$0xff] %v4994
    %5012 = vst [vmem:[%s5003 + $0x40] sm:$0xff] %v4995
    %5013 = vst [vmem:[%s5003 + $0x48] sm:$0xff] %v4996
    %5014 = vst [vmem:[%s5003 + $0x50] sm:$0xff] %v4997
    %5015 = vst [vmem:[%s5003 + $0x58] sm:$0xff] %v4998
    %5016 = vst [vmem:[%s5003 + $0x60] sm:$0xff] %v4999
    %5017 = vst [vmem:[%s5003 + $0x68] sm:$0xff] %v5000
    %5018 = vst [vmem:[%s5003 + $0x70] sm:$0xff] %v5001
    %5019 = vst [vmem:[%s5003 + $0x78] sm:$0xff] %v5002
    // Predicated region
    $region42: #{tpu_custom_call.1} parent=1 // pred_check
      _
    $region43: #{tpu_custom_call.1} parent=1 // pred_check_branch
      %5021 = sbr.rel (0) target = $region45
    $region44: #{tpu_custom_call.1} parent=1 // pred_region
      %s5023 = ssub.s32 4096, 4096
      %5024 = vsyncadd [#allocation7], %s5023
      %s5025 = sshll.u32 [#allocation10], 4
      %s5026 = int_to_ptr.vmem [resolvable:$true] %s5025
      %5031 = dma.vmem_to_hbm [thread:$0]  %s5026, 4096, %s8, [#allocation7], 256, 256, 16
    $region45: #{tpu_custom_call.1} parent=1 // pred_fallthru
      _
    // Predicated region
    $region46: #{tpu_custom_call.1} parent=1 // pred_check
      _
    $region47: #{tpu_custom_call.1} parent=1 // pred_check_branch
      %5033 = sbr.rel (0) target = $region49
    $region48: #{tpu_custom_call.1} parent=1 // pred_region
      %5034 = dma.done [#allocation7], 4096
    $region49: #{tpu_custom_call.1} parent=1 // pred_fallthru
      _
    %5035 = vsyncpa [#allocation6], 1
    %5036 = vsyncpa [#allocation9], 1
    %5037 = vsyncpa [#allocation7], 1

</llo_original>
